<compile_context>
chip_gen: v6e
topology: v6e:2x2x1
jax: 0.10.0
libtpu: 0.0.40
codegen_flags: <defaults>
</compile_context>

<pallas_src>
import functools

import jax
import jax.numpy as jnp
from jax.experimental import pallas as pl
from jax.experimental.pallas import tpu as pltpu


def _round_up(x, m):
    return (x + m - 1) // m * m


# ----------------------------------------------------------------------------
# Pallas kernel: whole MLP fused, one batch tile per grid step.
# ----------------------------------------------------------------------------
def _reward_kernel(robot_ref, terrain_ref,
                   w_in_ref, b_in_ref, w_emb_ref, b_emb_ref,
                   w0a_ref, w0b_ref, b0_ref,
                   w1_ref, b1_ref,
                   w2_ref, b2_ref,
                   w_out_ref, b_out_ref,
                   out_ref):
    f32, bf16 = jnp.float32, jnp.bfloat16

    # Branch 1: robot -> Linear -> ReLU.
    x1 = jnp.maximum(
        jnp.dot(robot_ref[...], w_in_ref[...], preferred_element_type=f32)
        + b_in_ref[...], 0.0)

    # Branch 2: terrain -> (bn_conv_in folded into weights) Linear -> ReLU.
    x2 = jnp.maximum(
        jnp.dot(terrain_ref[...], w_emb_ref[...], preferred_element_type=f32)
        + b_emb_ref[...], 0.0)

    # Hidden 0 on cat(x1, x2): split-weight matmul.
    h = (jnp.dot(x1.astype(bf16), w0a_ref[...], preferred_element_type=f32)
         + jnp.dot(x2.astype(bf16), w0b_ref[...], preferred_element_type=f32)
         + b0_ref[...])
    h = jnp.maximum(h, 0.0)

    # Hidden 1 (BN0 folded into W1) and hidden 2 (BN1 folded into W2).
    h = jnp.maximum(
        jnp.dot(h.astype(bf16), w1_ref[...], preferred_element_type=f32)
        + b1_ref[...], 0.0)
    h = jnp.maximum(
        jnp.dot(h.astype(bf16), w2_ref[...], preferred_element_type=f32)
        + b2_ref[...], 0.0)

    # Output layer (128 -> 1, BN2 folded in): VPU multiply + lane reduction,
    # written lane-dense as a (1, tile) row.  Sigmoid runs on the EUP.
    y = jnp.sum(h * w_out_ref[...], axis=-1).reshape(1, -1) + b_out_ref[...]
    out_ref[...] = jax.nn.sigmoid(y).astype(out_ref.dtype)


# ----------------------------------------------------------------------------
# Wrapper
# ----------------------------------------------------------------------------
_PARAM_ORDER = ("w_in", "b_in", "w_emb", "b_emb",
                "w0a", "w0b", "b0",
                "w1", "b1", "w2", "b2",
                "w_out_row", "b_out")


@functools.partial(jax.jit, static_argnames=("batch_tile",))
def reward_net_forward(robot, terrain, params, *, batch_tile=256):
    """robot: (B, input_length), terrain: (B, env_size) -> (B, 1) f32."""
    B, L = robot.shape
    E = terrain.shape[1]
    assert batch_tile % 128 == 0, "batch_tile must be a multiple of 128"

    # Clamp the tile for tiny batches; pad the batch to a tile multiple.
    tile = min(batch_tile, _round_up(B, 8))
    B_pad = _round_up(B, tile)
    nb = B_pad // tile
    pad = B_pad - B

    robot_p = jnp.pad(robot.astype(jnp.bfloat16), ((0, pad), (0, 0)))
    terrain_p = jnp.pad(terrain.astype(jnp.bfloat16), ((0, pad), (0, 0)))

    def batch_spec(feat):
        return pl.BlockSpec((tile, feat), lambda i: (i, 0))

    def rep_spec(p):
        # Full-array block, constant index map: fetched once and held resident
        # in VMEM across grid steps (no per-step re-DMA).  Total weights are
        # only ~0.5 MB in bf16, so this fits easily even on v7x.
        return pl.BlockSpec(p.shape, lambda i: (0, 0))

    param_vals = [params[k] for k in _PARAM_ORDER]
    in_specs = [batch_spec(L), batch_spec(E)] + [rep_spec(p) for p in param_vals]

    out = pl.pallas_call(
        _reward_kernel,
        out_shape=jax.ShapeDtypeStruct((1, B_pad), jnp.float32),
        grid_spec=pltpu.PrefetchScalarGridSpec(
            num_scalar_prefetch=0,
            grid=(nb,),
            in_specs=in_specs,
            # Lane-dense output row: full-width stores instead of masked
            # (tile, 1) column stores.
            out_specs=pl.BlockSpec((1, tile), lambda i: (0, i)),
        ),
        compiler_params=pltpu.CompilerParams(
            dimension_semantics=("parallel",),
        ),
    )(robot_p, terrain_p, *param_vals)

    return out[0, :B].reshape(B, 1)


# ----------------------------------------------------------------------------
# Parameters: raw (PyTorch-equivalent) init + eval-mode BN folding / bf16 cast.
# ----------------------------------------------------------------------------
def init_raw_params(key, input_length, env_size=9, hidden_layer_size=128,
                    latent_layers=(128, 256, 512, 128)):
    half = hidden_layer_size // 2
    ks = jax.random.split(key, 10)

    def linear(k, fin, fout):
        k1, k2 = jax.random.split(k)
        bound = 1.0 / (fin ** 0.5)
        w = jax.random.uniform(k1, (fin, fout), jnp.float32, -bound, bound)
        b = jax.random.uniform(k2, (fout,), jnp.float32, -bound, bound)
        return w, b

    def bn(k, n):
        k1, k2, k3, k4 = jax.random.split(k, 4)
        return dict(
            gamma=1.0 + 0.1 * jax.random.normal(k1, (n,), jnp.float32),
            beta=0.1 * jax.random.normal(k2, (n,), jnp.float32),
            mean=0.1 * jax.random.normal(k3, (n,), jnp.float32),
            var=jax.random.uniform(k4, (n,), jnp.float32, 0.5, 1.5),
        )

    w_in, b_in = linear(ks[0], input_length, half)
    w_emb, b_emb = linear(ks[1], env_size, half)
    w0, b0 = linear(ks[2], latent_layers[0], latent_layers[1])
    w1, b1 = linear(ks[3], latent_layers[1], latent_layers[2])
    w2, b2 = linear(ks[4], latent_layers[2], latent_layers[3])
    w_out, b_out = linear(ks[5], latent_layers[3], 1)

    return dict(
        w_in=w_in, b_in=b_in, w_emb=w_emb, b_emb=b_emb,
        w0=w0, b0=b0, w1=w1, b1=b1, w2=w2, b2=b2,
        w_out=w_out, b_out=b_out,
        bn_in=bn(ks[6], env_size), bn0=bn(ks[7], latent_layers[1]),
        bn1=bn(ks[8], latent_layers[2]), bn2=bn(ks[9], latent_layers[3]),
    )


def fold_params(raw, eps=1e-5):
    """Fold eval-mode BatchNorms into adjacent Linears; cast weights to bf16."""
    f32, bf16 = jnp.float32, jnp.bfloat16

    def bn_scale_shift(p):
        s = p["gamma"] / jnp.sqrt(p["var"] + eps)
        t = p["beta"] - p["mean"] * s
        return s, t

    s_in, t_in = bn_scale_shift(raw["bn_in"])
    s0, t0 = bn_scale_shift(raw["bn0"])
    s1, t1 = bn_scale_shift(raw["bn1"])
    s2, t2 = bn_scale_shift(raw["bn2"])

    # bn_conv_in folds into the embedding Linear (BN precedes it).
    w_emb = raw["w_emb"] * s_in[:, None]
    b_emb = raw["b_emb"] + t_in @ raw["w_emb"]
    # BN_i follows hidden layer i, so it folds into the NEXT Linear's input.
    w1 = raw["w1"] * s0[:, None]
    b1 = raw["b1"] + t0 @ raw["w1"]
    w2 = raw["w2"] * s1[:, None]
    b2 = raw["b2"] + t1 @ raw["w2"]
    w_out = raw["w_out"] * s2[:, None]            # (128, 1)
    b_out = raw["b_out"] + t2 @ raw["w_out"]      # (1,)

    half = raw["w_in"].shape[1]                   # hidden_layer_size // 2
    return dict(
        w_in=raw["w_in"].astype(bf16), b_in=raw["b_in"].reshape(1, -1),
        w_emb=w_emb.astype(bf16), b_emb=b_emb.reshape(1, -1),
        w0a=raw["w0"][:half].astype(bf16), w0b=raw["w0"][half:].astype(bf16),
        b0=raw["b0"].reshape(1, -1),
        w1=w1.astype(bf16), b1=b1.reshape(1, -1),
        w2=w2.astype(bf16), b2=b2.reshape(1, -1),
        # Final layer stays on the VPU in f32 (a N=1 matmul wastes the MXU).
        w_out_row=w_out[:, 0].reshape(1, -1).astype(f32),
        b_out=b_out.reshape(1, 1).astype(f32),
    )


# ----------------------------------------------------------------------------
# Pure-JAX references.
# ----------------------------------------------------------------------------
def reference_forward(robot, terrain, raw, eps=1e-5):
    """f32 eval-mode forward matching the PyTorch module exactly."""
    def bn(x, p):
        return (x - p["mean"]) / jnp.sqrt(p["var"] + eps) * p["gamma"] + p["beta"]
    x1 = jax.nn.relu(robot @ raw["w_in"] + raw["b_in"])
    x2 = jax.nn.relu(bn(terrain, raw["bn_in"]) @ raw["w_emb"] + raw["b_emb"])
    x = jnp.concatenate([x1, x2], axis=-1)
    x = bn(jax.nn.relu(x @ raw["w0"] + raw["b0"]), raw["bn0"])   # dropout(eval)=id
    x = bn(jax.nn.relu(x @ raw["w1"] + raw["b1"]), raw["bn1"])
    x = bn(jax.nn.relu(x @ raw["w2"] + raw["b2"]), raw["bn2"])
    return jax.nn.sigmoid(x @ raw["w_out"] + raw["b_out"])


def reference_forward_folded(robot, terrain, p):
    """Mirror of the kernel math (folded params, bf16 operands, f32 accum)."""
    f32, bf16 = jnp.float32, jnp.bfloat16
    dot = lambda a, b: jnp.dot(a.astype(bf16), b, preferred_element_type=f32)
    x1 = jax.nn.relu(dot(robot, p["w_in"]) + p["b_in"])
    x2 = jax.nn.relu(dot(terrain, p["w_emb"]) + p["b_emb"])
    h = jax.nn.relu(dot(x1, p["w0a"]) + dot(x2, p["w0b"]) + p["b0"])
    h = jax.nn.relu(dot(h, p["w1"]) + p["b1"])
    h = jax.nn.relu(dot(h, p["w2"]) + p["b2"])
    y = jnp.sum(h * p["w_out_row"], axis=-1, keepdims=True) + p["b_out"]
    return jax.nn.sigmoid(y)


if __name__ == "__main__":
    input_length = 32
    env_size = 9

    key = jax.random.PRNGKey(0)
    k_r, k_t, k_p = jax.random.split(key, 3)

    raw = init_raw_params(k_p, input_length, env_size=env_size)
    params = fold_params(raw)

    # batch=300 exercises padding + a 2-step parallel grid (both v7x cores);
    # batch=8 exercises the clamped-tile small-batch path.
    for batch in (300, 8):
        kr, kt = jax.random.split(jax.random.fold_in(key, batch))
        robot = jax.random.normal(kr, (batch, input_length), jnp.float32)
        terrain = jax.nn.one_hot(
            jax.random.randint(kt, (batch,), 0, env_size), env_size,
            dtype=jnp.float32)

        out = jax.block_until_ready(
            reward_net_forward(robot, terrain, params, batch_tile=256))
        assert out.shape == (batch, 1)

        # Tight check vs a pure-JAX mirror of the same folded/bf16 math.
        ref_folded = reference_forward_folded(robot, terrain, params)
        err_f = float(jnp.max(jnp.abs(out - ref_folded)))
        assert jnp.allclose(out, ref_folded, atol=1e-4, rtol=1e-4), err_f

        # Loose check vs exact f32 eval-mode module semantics (difference is
        # only the bf16 weight/activation quantization).
        ref_f32 = reference_forward(robot, terrain, raw)
        err = float(jnp.max(jnp.abs(out - ref_f32)))
        assert jnp.allclose(out, ref_f32, atol=5e-2), err

    print("KERNEL_OK")
</pallas_src>

<mosaic_0001>
module attributes {stable_mosaic.version = 11 : i64} {
  func.func @_reward_kernel(%arg0: i32, %arg1: memref<256x32xbf16, #tpu.memory_space<vmem>>, %arg2: memref<256x9xbf16, #tpu.memory_space<vmem>>, %arg3: memref<32x64xbf16, #tpu.memory_space<vmem>>, %arg4: memref<1x64xf32, #tpu.memory_space<vmem>>, %arg5: memref<9x64xbf16, #tpu.memory_space<vmem>>, %arg6: memref<1x64xf32, #tpu.memory_space<vmem>>, %arg7: memref<64x256xbf16, #tpu.memory_space<vmem>>, %arg8: memref<64x256xbf16, #tpu.memory_space<vmem>>, %arg9: memref<1x256xf32, #tpu.memory_space<vmem>>, %arg10: memref<256x512xbf16, #tpu.memory_space<vmem>>, %arg11: memref<1x512xf32, #tpu.memory_space<vmem>>, %arg12: memref<512x128xbf16, #tpu.memory_space<vmem>>, %arg13: memref<1x128xf32, #tpu.memory_space<vmem>>, %arg14: memref<1x128xf32, #tpu.memory_space<vmem>>, %arg15: memref<1x1xf32, #tpu.memory_space<vmem>>, %arg16: memref<1x256xf32, #tpu.memory_space<vmem>>) attributes {dimension_semantics = [#tpu.dimension_semantics<parallel>], iteration_bounds = array<i64: 2>, scalar_prefetch = 0 : i64, scratch_operands = 0 : i64, tpu.core_type = #tpu.core_type<tc>, window_params = [{transform_indices = @transform_0, window_bounds = array<i64: 256, 32>}, {transform_indices = @transform_1, window_bounds = array<i64: 256, 9>}, {pipeline_mode = #tpu.pipeline_mode<synchronous>, transform_indices = @transform_2, window_bounds = array<i64: 32, 64>}, {pipeline_mode = #tpu.pipeline_mode<synchronous>, transform_indices = @transform_3, window_bounds = array<i64: 1, 64>}, {pipeline_mode = #tpu.pipeline_mode<synchronous>, transform_indices = @transform_4, window_bounds = array<i64: 9, 64>}, {pipeline_mode = #tpu.pipeline_mode<synchronous>, transform_indices = @transform_5, window_bounds = array<i64: 1, 64>}, {pipeline_mode = #tpu.pipeline_mode<synchronous>, transform_indices = @transform_6, window_bounds = array<i64: 64, 256>}, {pipeline_mode = #tpu.pipeline_mode<synchronous>, transform_indices = @transform_7, window_bounds = array<i64: 64, 256>}, {pipeline_mode = #tpu.pipeline_mode<synchronous>, transform_indices = @transform_8, window_bounds = array<i64: 1, 256>}, {pipeline_mode = #tpu.pipeline_mode<synchronous>, transform_indices = @transform_9, window_bounds = array<i64: 256, 512>}, {pipeline_mode = #tpu.pipeline_mode<synchronous>, transform_indices = @transform_10, window_bounds = array<i64: 1, 512>}, {pipeline_mode = #tpu.pipeline_mode<synchronous>, transform_indices = @transform_11, window_bounds = array<i64: 512, 128>}, {pipeline_mode = #tpu.pipeline_mode<synchronous>, transform_indices = @transform_12, window_bounds = array<i64: 1, 128>}, {pipeline_mode = #tpu.pipeline_mode<synchronous>, transform_indices = @transform_13, window_bounds = array<i64: 1, 128>}, {pipeline_mode = #tpu.pipeline_mode<synchronous>, transform_indices = @transform_14, window_bounds = array<i64: 1, 1>}, {transform_indices = @transform_15, window_bounds = array<i64: 1, 256>}]} {
    %c0 = arith.constant 0 : index
    %c0_0 = arith.constant 0 : index
    %0 = vector.load %arg1[%c0, %c0_0] : memref<256x32xbf16, #tpu.memory_space<vmem>>, vector<256x32xbf16>
    %c0_1 = arith.constant 0 : index
    %c0_2 = arith.constant 0 : index
    %1 = vector.load %arg3[%c0_1, %c0_2] : memref<32x64xbf16, #tpu.memory_space<vmem>>, vector<32x64xbf16>
    %cst = arith.constant dense<0.000000e+00> : vector<256x64xf32>
    %2 = tpu.matmul %0, %1, %cst {dimension_numbers = #tpu.dot_dimension_numbers<[1], [0], [0], [1], [0, 0, 1, 1], [], []>} : vector<256x32xbf16>, vector<32x64xbf16>, vector<256x64xf32> -> vector<256x64xf32>
    %c0_3 = arith.constant 0 : index
    %c0_4 = arith.constant 0 : index
    %3 = vector.load %arg4[%c0_3, %c0_4] : memref<1x64xf32, #tpu.memory_space<vmem>>, vector<1x64xf32>
    %4 = vector.broadcast %3 : vector<1x64xf32> to vector<256x64xf32>
    %5 = arith.addf %2, %4 : vector<256x64xf32>
    %cst_5 = arith.constant 0.000000e+00 : f32
    %6 = vector.broadcast %cst_5 : f32 to vector<256x64xf32>
    %7 = arith.maximumf %5, %6 : vector<256x64xf32>
    %c0_6 = arith.constant 0 : index
    %c0_7 = arith.constant 0 : index
    %8 = vector.load %arg2[%c0_6, %c0_7] : memref<256x9xbf16, #tpu.memory_space<vmem>>, vector<256x9xbf16>
    %c0_8 = arith.constant 0 : index
    %c0_9 = arith.constant 0 : index
    %9 = vector.load %arg5[%c0_8, %c0_9] : memref<9x64xbf16, #tpu.memory_space<vmem>>, vector<9x64xbf16>
    %cst_10 = arith.constant dense<0.000000e+00> : vector<256x64xf32>
    %10 = tpu.matmul %8, %9, %cst_10 {dimension_numbers = #tpu.dot_dimension_numbers<[1], [0], [0], [1], [0, 0, 1, 1], [], []>} : vector<256x9xbf16>, vector<9x64xbf16>, vector<256x64xf32> -> vector<256x64xf32>
    %c0_11 = arith.constant 0 : index
    %c0_12 = arith.constant 0 : index
    %11 = vector.load %arg6[%c0_11, %c0_12] : memref<1x64xf32, #tpu.memory_space<vmem>>, vector<1x64xf32>
    %12 = vector.broadcast %11 : vector<1x64xf32> to vector<256x64xf32>
    %13 = arith.addf %10, %12 : vector<256x64xf32>
    %cst_13 = arith.constant 0.000000e+00 : f32
    %14 = vector.broadcast %cst_13 : f32 to vector<256x64xf32>
    %15 = arith.maximumf %13, %14 : vector<256x64xf32>
    %16 = arith.truncf %7 : vector<256x64xf32> to vector<256x64xbf16>
    %c0_14 = arith.constant 0 : index
    %c0_15 = arith.constant 0 : index
    %17 = vector.load %arg7[%c0_14, %c0_15] : memref<64x256xbf16, #tpu.memory_space<vmem>>, vector<64x256xbf16>
    %cst_16 = arith.constant dense<0.000000e+00> : vector<256x256xf32>
    %18 = tpu.matmul %16, %17, %cst_16 {dimension_numbers = #tpu.dot_dimension_numbers<[1], [0], [0], [1], [0, 0, 1, 1], [], []>} : vector<256x64xbf16>, vector<64x256xbf16>, vector<256x256xf32> -> vector<256x256xf32>
    %19 = arith.truncf %15 : vector<256x64xf32> to vector<256x64xbf16>
    %c0_17 = arith.constant 0 : index
    %c0_18 = arith.constant 0 : index
    %20 = vector.load %arg8[%c0_17, %c0_18] : memref<64x256xbf16, #tpu.memory_space<vmem>>, vector<64x256xbf16>
    %cst_19 = arith.constant dense<0.000000e+00> : vector<256x256xf32>
    %21 = tpu.matmul %19, %20, %cst_19 {dimension_numbers = #tpu.dot_dimension_numbers<[1], [0], [0], [1], [0, 0, 1, 1], [], []>} : vector<256x64xbf16>, vector<64x256xbf16>, vector<256x256xf32> -> vector<256x256xf32>
    %22 = arith.addf %18, %21 : vector<256x256xf32>
    %c0_20 = arith.constant 0 : index
    %c0_21 = arith.constant 0 : index
    %23 = vector.load %arg9[%c0_20, %c0_21] : memref<1x256xf32, #tpu.memory_space<vmem>>, vector<1x256xf32>
    %24 = vector.broadcast %23 : vector<1x256xf32> to vector<256x256xf32>
    %25 = arith.addf %22, %24 : vector<256x256xf32>
    %cst_22 = arith.constant 0.000000e+00 : f32
    %26 = vector.broadcast %cst_22 : f32 to vector<256x256xf32>
    %27 = arith.maximumf %25, %26 : vector<256x256xf32>
    %28 = arith.truncf %27 : vector<256x256xf32> to vector<256x256xbf16>
    %c0_23 = arith.constant 0 : index
    %c0_24 = arith.constant 0 : index
    %29 = vector.load %arg10[%c0_23, %c0_24] : memref<256x512xbf16, #tpu.memory_space<vmem>>, vector<256x512xbf16>
    %cst_25 = arith.constant dense<0.000000e+00> : vector<256x512xf32>
    %30 = tpu.matmul %28, %29, %cst_25 {dimension_numbers = #tpu.dot_dimension_numbers<[1], [0], [0], [1], [0, 0, 1, 1], [], []>} : vector<256x256xbf16>, vector<256x512xbf16>, vector<256x512xf32> -> vector<256x512xf32>
    %c0_26 = arith.constant 0 : index
    %c0_27 = arith.constant 0 : index
    %31 = vector.load %arg11[%c0_26, %c0_27] : memref<1x512xf32, #tpu.memory_space<vmem>>, vector<1x512xf32>
    %32 = vector.broadcast %31 : vector<1x512xf32> to vector<256x512xf32>
    %33 = arith.addf %30, %32 : vector<256x512xf32>
    %cst_28 = arith.constant 0.000000e+00 : f32
    %34 = vector.broadcast %cst_28 : f32 to vector<256x512xf32>
    %35 = arith.maximumf %33, %34 : vector<256x512xf32>
    %36 = arith.truncf %35 : vector<256x512xf32> to vector<256x512xbf16>
    %c0_29 = arith.constant 0 : index
    %c0_30 = arith.constant 0 : index
    %37 = vector.load %arg12[%c0_29, %c0_30] : memref<512x128xbf16, #tpu.memory_space<vmem>>, vector<512x128xbf16>
    %cst_31 = arith.constant dense<0.000000e+00> : vector<256x128xf32>
    %38 = tpu.matmul %36, %37, %cst_31 {dimension_numbers = #tpu.dot_dimension_numbers<[1], [0], [0], [1], [0, 0, 1, 1], [], []>} : vector<256x512xbf16>, vector<512x128xbf16>, vector<256x128xf32> -> vector<256x128xf32>
    %c0_32 = arith.constant 0 : index
    %c0_33 = arith.constant 0 : index
    %39 = vector.load %arg13[%c0_32, %c0_33] : memref<1x128xf32, #tpu.memory_space<vmem>>, vector<1x128xf32>
    %40 = vector.broadcast %39 : vector<1x128xf32> to vector<256x128xf32>
    %41 = arith.addf %38, %40 : vector<256x128xf32>
    %cst_34 = arith.constant 0.000000e+00 : f32
    %42 = vector.broadcast %cst_34 : f32 to vector<256x128xf32>
    %43 = arith.maximumf %41, %42 : vector<256x128xf32>
    %c0_35 = arith.constant 0 : index
    %c0_36 = arith.constant 0 : index
    %44 = vector.load %arg14[%c0_35, %c0_36] : memref<1x128xf32, #tpu.memory_space<vmem>>, vector<1x128xf32>
    %45 = vector.broadcast %44 : vector<1x128xf32> to vector<256x128xf32>
    %46 = arith.mulf %43, %45 : vector<256x128xf32>
    %cst_37 = arith.constant dense<0.000000e+00> : vector<256xf32>
    %47 = vector.multi_reduction <add>, %46, %cst_37 [1] : vector<256x128xf32> to vector<256xf32>
    %48 = vector.shape_cast %47 : vector<256xf32> to vector<1x256xf32>
    %c0_38 = arith.constant 0 : index
    %c0_39 = arith.constant 0 : index
    %49 = vector.load %arg15[%c0_38, %c0_39] : memref<1x1xf32, #tpu.memory_space<vmem>>, vector<1x1xf32>
    %50 = vector.broadcast %49 : vector<1x1xf32> to vector<1x256xf32>
    %51 = arith.addf %48, %50 : vector<1x256xf32>
    %52 = arith.negf %51 : vector<1x256xf32>
    %53 = math.exp %52 : vector<1x256xf32>
    %cst_40 = arith.constant 1.000000e+00 : f32
    %54 = vector.broadcast %cst_40 : f32 to vector<1x256xf32>
    %55 = arith.addf %54, %53 : vector<1x256xf32>
    %56 = arith.divf %54, %55 : vector<1x256xf32>
    %c0_41 = arith.constant 0 : index
    %c0_42 = arith.constant 0 : index
    %57 = vector.load %arg16[%c0_41, %c0_42] : memref<1x256xf32, #tpu.memory_space<vmem>>, vector<1x256xf32>
    tpu.vector_store %arg16[%c0_41, %c0_42], %56 {strides = array<i32>} : memref<1x256xf32, #tpu.memory_space<vmem>>, vector<1x256xf32>,
    return
  }
  func.func @transform_0(%arg0: i32) -> (i32, i32) {
    %c0_i32 = arith.constant 0 : i32
    %c0_i32_0 = arith.constant 0 : i32
    return %arg0, %c0_i32 : i32, i32
  }
  func.func @transform_1(%arg0: i32) -> (i32, i32) {
    %c0_i32 = arith.constant 0 : i32
    %c0_i32_0 = arith.constant 0 : i32
    return %arg0, %c0_i32 : i32, i32
  }
  func.func @transform_2(%arg0: i32) -> (i32, i32) {
    %c0_i32 = arith.constant 0 : i32
    %c0_i32_0 = arith.constant 0 : i32
    %c0_i32_1 = arith.constant 0 : i32
    return %c0_i32, %c0_i32_0 : i32, i32
  }
  func.func @transform_3(%arg0: i32) -> (i32, i32) {
    %c0_i32 = arith.constant 0 : i32
    %c0_i32_0 = arith.constant 0 : i32
    %c0_i32_1 = arith.constant 0 : i32
    return %c0_i32, %c0_i32_0 : i32, i32
  }
  func.func @transform_4(%arg0: i32) -> (i32, i32) {
    %c0_i32 = arith.constant 0 : i32
    %c0_i32_0 = arith.constant 0 : i32
    %c0_i32_1 = arith.constant 0 : i32
    return %c0_i32, %c0_i32_0 : i32, i32
  }
  func.func @transform_5(%arg0: i32) -> (i32, i32) {
    %c0_i32 = arith.constant 0 : i32
    %c0_i32_0 = arith.constant 0 : i32
    %c0_i32_1 = arith.constant 0 : i32
    return %c0_i32, %c0_i32_0 : i32, i32
  }
  func.func @transform_6(%arg0: i32) -> (i32, i32) {
    %c0_i32 = arith.constant 0 : i32
    %c0_i32_0 = arith.constant 0 : i32
    %c0_i32_1 = arith.constant 0 : i32
    return %c0_i32, %c0_i32_0 : i32, i32
  }
  func.func @transform_7(%arg0: i32) -> (i32, i32) {
    %c0_i32 = arith.constant 0 : i32
    %c0_i32_0 = arith.constant 0 : i32
    %c0_i32_1 = arith.constant 0 : i32
    return %c0_i32, %c0_i32_0 : i32, i32
  }
  func.func @transform_8(%arg0: i32) -> (i32, i32) {
    %c0_i32 = arith.constant 0 : i32
    %c0_i32_0 = arith.constant 0 : i32
    %c0_i32_1 = arith.constant 0 : i32
    return %c0_i32, %c0_i32_0 : i32, i32
  }
  func.func @transform_9(%arg0: i32) -> (i32, i32) {
    %c0_i32 = arith.constant 0 : i32
    %c0_i32_0 = arith.constant 0 : i32
    %c0_i32_1 = arith.constant 0 : i32
    return %c0_i32, %c0_i32_0 : i32, i32
  }
  func.func @transform_10(%arg0: i32) -> (i32, i32) {
    %c0_i32 = arith.constant 0 : i32
    %c0_i32_0 = arith.constant 0 : i32
    %c0_i32_1 = arith.constant 0 : i32
    return %c0_i32, %c0_i32_0 : i32, i32
  }
  func.func @transform_11(%arg0: i32) -> (i32, i32) {
    %c0_i32 = arith.constant 0 : i32
    %c0_i32_0 = arith.constant 0 : i32
    %c0_i32_1 = arith.constant 0 : i32
    return %c0_i32, %c0_i32_0 : i32, i32
  }
  func.func @transform_12(%arg0: i32) -> (i32, i32) {
    %c0_i32 = arith.constant 0 : i32
    %c0_i32_0 = arith.constant 0 : i32
    %c0_i32_1 = arith.constant 0 : i32
    return %c0_i32, %c0_i32_0 : i32, i32
  }
  func.func @transform_13(%arg0: i32) -> (i32, i32) {
    %c0_i32 = arith.constant 0 : i32
    %c0_i32_0 = arith.constant 0 : i32
    %c0_i32_1 = arith.constant 0 : i32
    return %c0_i32, %c0_i32_0 : i32, i32
  }
  func.func @transform_14(%arg0: i32) -> (i32, i32) {
    %c0_i32 = arith.constant 0 : i32
    %c0_i32_0 = arith.constant 0 : i32
    %c0_i32_1 = arith.constant 0 : i32
    return %c0_i32, %c0_i32_0 : i32, i32
  }
  func.func @transform_15(%arg0: i32) -> (i32, i32) {
    %c0_i32 = arith.constant 0 : i32
    %c0_i32_0 = arith.constant 0 : i32
    return %c0_i32, %arg0 : i32, i32
  }
}

</mosaic_0001>

<llo_original>
// kernel: reward_net_forward.1
$region0: #{reward_net_forward.1}
  #allocation0 [shape = 'u32[]', space=smem, size = 0x4, offset = 0x4, fixed_abs, tag = 'smem constant byte address 0x4 - core index']
  #allocation1 [shape = 'u32[144,128]{1,0:T(1,128)}', space=vmem, size = 0x12000, scoped, tag = 'internal scratch']
  #allocation2 [shape = 'f32[1,1]{1,0:T(1,128)S(1)}', space=vmem, size = 0x200, scoped, tag = 'scoped memory for reward_net_forward.1']
  %s0 = inlined_call_operand.vmem [shape: bf16[512,32], index: 0, kind: input, shape index: {}]
  %s1 = inlined_call_operand.vmem [shape: bf16[512,9], index: 1, kind: input, shape index: {}]
  %s2 = inlined_call_operand.vmem [shape: bf16[32,64], index: 2, kind: input, shape index: {}]
  %s3 = inlined_call_operand.vmem [shape: f32[1,64], index: 3, kind: input, shape index: {}]
  %s4 = inlined_call_operand.vmem [shape: bf16[9,64], index: 4, kind: input, shape index: {}]
  %s5 = inlined_call_operand.vmem [shape: f32[1,64], index: 5, kind: input, shape index: {}]
  %s6 = inlined_call_operand.vmem [shape: bf16[64,256], index: 6, kind: input, shape index: {}]
  %s7 = inlined_call_operand.vmem [shape: bf16[64,256], index: 7, kind: input, shape index: {}]
  %s8 = inlined_call_operand.vmem [shape: f32[1,256], index: 8, kind: input, shape index: {}]
  %s9 = inlined_call_operand.vmem [shape: bf16[256,512], index: 9, kind: input, shape index: {}]
  %s10 = inlined_call_operand.vmem [shape: f32[1,512], index: 10, kind: input, shape index: {}]
  %s11 = inlined_call_operand.vmem [shape: bf16[512,128], index: 11, kind: input, shape index: {}]
  %s12 = inlined_call_operand.vmem [shape: f32[1,128], index: 12, kind: input, shape index: {}]
  %s13 = inlined_call_operand.vmem [shape: f32[1,128], index: 13, kind: input, shape index: {}]
  %s14 = inlined_call_operand.<no memory space> [shape: f32[1,1], index: 14, kind: input, shape index: {}]
  %s15 = inlined_call_operand.vmem [shape: f32[1,512], index: 15, kind: output, shape index: {}]
  %s16 = sld [smem:[#allocation0]]
  $region93: #{reward_net_forward.1} parent=0
    _
  %s18 = ssub.s32 1, %s16
  %s19 = scalar_select 0, %s18, %s16
  %v20 = vstv %s14
  %21 = vst [vmem:[#allocation2] sm:$0x1] %v20
  loop: start=0, step=1, limit=4
  $region2: #{reward_net_forward.1} parent=0 // loop_pre_header
    _
  $region3: #{reward_net_forward.1} parent=0 // loop_header
    %s23 = sphi 0, %s27
    %p24 = scmp.ge.s32.totalorder %s23, 4
    %s33 = sphi 0, %s35
    %s36 = sphi 0, %s33
    %s37 = sphi 0, %s36
    %s53 = sphi 0, %s37
    %s59 = sphi 0, %s61
    %s62 = sphi 0, %s59
    %s63 = sphi 0, %s62
    %s79 = sphi 0, %s63
    %s83 = sphi 0, %s83
    %s85 = sphi 0, %s83
    %s86 = sphi 0, %s85
    %s100 = sphi 0, %s86
    %s104 = sphi 0, %s104
    %s106 = sphi 0, %s104
    %s107 = sphi 0, %s106
    %s121 = sphi 0, %s107
    %s125 = sphi 0, %s125
    %s127 = sphi 0, %s125
    %s128 = sphi 0, %s127
    %s142 = sphi 0, %s128
    %s146 = sphi 0, %s146
    %s148 = sphi 0, %s146
    %s149 = sphi 0, %s148
    %s163 = sphi 0, %s149
    %s167 = sphi 0, %s167
    %s169 = sphi 0, %s167
    %s170 = sphi 0, %s169
    %s184 = sphi 0, %s170
    %s188 = sphi 0, %s188
    %s190 = sphi 0, %s188
    %s191 = sphi 0, %s190
    %s205 = sphi 0, %s191
    %s209 = sphi 0, %s209
    %s211 = sphi 0, %s209
    %s212 = sphi 0, %s211
    %s226 = sphi 0, %s212
    %s230 = sphi 0, %s230
    %s232 = sphi 0, %s230
    %s233 = sphi 0, %s232
    %s247 = sphi 0, %s233
    %s251 = sphi 0, %s251
    %s253 = sphi 0, %s251
    %s254 = sphi 0, %s253
    %s268 = sphi 0, %s254
    %s272 = sphi 0, %s272
    %s274 = sphi 0, %s272
    %s275 = sphi 0, %s274
    %s289 = sphi 0, %s275
    %s293 = sphi 0, %s293
    %s295 = sphi 0, %s293
    %s296 = sphi 0, %s295
    %s310 = sphi 0, %s296
    %s314 = sphi 0, %s314
    %s316 = sphi 0, %s314
    %s317 = sphi 0, %s316
    %s331 = sphi 0, %s317
    %s335 = sphi 0, %s335
    %s337 = sphi 0, %s335
    %s338 = sphi 0, %s337
    %s352 = sphi 0, %s338
    %s358 = sphi 0, %s360
    %s361 = sphi 0, %s358
    %s362 = sphi 0, %s361
    %s378 = sphi 0, %s362
  $region4: #{reward_net_forward.1} parent=0 // loop_header_branch
    %26 = sbr.rel (%p24) target = $region8
  $region5: #{reward_net_forward.1} parent=0 // loop_body
    %s28 = ssub.s32 %s23, 1
    %s29 = ssub.s32 %s23, 2
    %s30 = sadd.s32 %s23, 1
    %s31 = ssub.s32 %s23, %s30
    %p32 = scmp.eq.s32.totalorder %s31, 0
    %s34 = sadd.s32 %s33, 1
    %s35 = scalar_select %p32, %s33, %s34
    %p38 = pneg %p32
    %p39 = scmp.eq.s32.totalorder %s23, 1
    %p40 = por %p38, %p39
    %p41 = scmp.ne.s32.totalorder %s33, %s36
    %p42 = scmp.eq.s32.totalorder %s23, 0
    %p43 = por %p41, %p42
    %p44 = scmp.ne.s32.totalorder %s33, %s36
    %p45 = scmp.eq.s32.totalorder %s28, 1
    %p46 = por %p44, %p45
    %p47 = scmp.ne.s32.totalorder %s36, %s37
    %p48 = scmp.eq.s32.totalorder %s28, 0
    %p49 = por %p47, %p48
    %p50 = scmp.ne.s32.totalorder %s36, %s37
    %p51 = scmp.eq.s32.totalorder %s29, 1
    %p52 = por %p50, %p51
    %p54 = scmp.ne.s32.totalorder %s37, %s53
    %p55 = scmp.eq.s32.totalorder %s29, 0
    %p56 = por %p54, %p55
    %s57 = ssub.s32 %s23, %s30
    %p58 = scmp.eq.s32.totalorder %s57, 0
    %s60 = sadd.s32 %s59, 1
    %s61 = scalar_select %p58, %s59, %s60
    %p64 = pneg %p58
    %p65 = scmp.eq.s32.totalorder %s23, 1
    %p66 = por %p64, %p65
    %p67 = scmp.ne.s32.totalorder %s59, %s62
    %p68 = scmp.eq.s32.totalorder %s23, 0
    %p69 = por %p67, %p68
    %p70 = scmp.ne.s32.totalorder %s59, %s62
    %p71 = scmp.eq.s32.totalorder %s28, 1
    %p72 = por %p70, %p71
    %p73 = scmp.ne.s32.totalorder %s62, %s63
    %p74 = scmp.eq.s32.totalorder %s28, 0
    %p75 = por %p73, %p74
    %p76 = scmp.ne.s32.totalorder %s62, %s63
    %p77 = scmp.eq.s32.totalorder %s29, 1
    %p78 = por %p76, %p77
    %p80 = scmp.ne.s32.totalorder %s63, %s79
    %p81 = scmp.eq.s32.totalorder %s29, 0
    %p82 = por %p80, %p81
    %s84 = sadd.s32 %s83, 1
    %p87 = scmp.eq.s32.totalorder %s23, 1
    %p88 = scmp.ne.s32.totalorder %s83, %s85
    %p89 = scmp.eq.s32.totalorder %s23, 0
    %p90 = por %p88, %p89
    %p91 = scmp.ne.s32.totalorder %s83, %s85
    %p92 = scmp.eq.s32.totalorder %s28, 1
    %p93 = por %p91, %p92
    %p94 = scmp.ne.s32.totalorder %s85, %s86
    %p95 = scmp.eq.s32.totalorder %s28, 0
    %p96 = por %p94, %p95
    %p97 = scmp.ne.s32.totalorder %s85, %s86
    %p98 = scmp.eq.s32.totalorder %s29, 1
    %p99 = por %p97, %p98
    %p101 = scmp.ne.s32.totalorder %s86, %s100
    %p102 = scmp.eq.s32.totalorder %s29, 0
    %p103 = por %p101, %p102
    %s105 = sadd.s32 %s104, 1
    %p108 = scmp.eq.s32.totalorder %s23, 1
    %p109 = scmp.ne.s32.totalorder %s104, %s106
    %p110 = scmp.eq.s32.totalorder %s23, 0
    %p111 = por %p109, %p110
    %p112 = scmp.ne.s32.totalorder %s104, %s106
    %p113 = scmp.eq.s32.totalorder %s28, 1
    %p114 = por %p112, %p113
    %p115 = scmp.ne.s32.totalorder %s106, %s107
    %p116 = scmp.eq.s32.totalorder %s28, 0
    %p117 = por %p115, %p116
    %p118 = scmp.ne.s32.totalorder %s106, %s107
    %p119 = scmp.eq.s32.totalorder %s29, 1
    %p120 = por %p118, %p119
    %p122 = scmp.ne.s32.totalorder %s107, %s121
    %p123 = scmp.eq.s32.totalorder %s29, 0
    %p124 = por %p122, %p123
    %s126 = sadd.s32 %s125, 1
    %p129 = scmp.eq.s32.totalorder %s23, 1
    %p130 = scmp.ne.s32.totalorder %s125, %s127
    %p131 = scmp.eq.s32.totalorder %s23, 0
    %p132 = por %p130, %p131
    %p133 = scmp.ne.s32.totalorder %s125, %s127
    %p134 = scmp.eq.s32.totalorder %s28, 1
    %p135 = por %p133, %p134
    %p136 = scmp.ne.s32.totalorder %s127, %s128
    %p137 = scmp.eq.s32.totalorder %s28, 0
    %p138 = por %p136, %p137
    %p139 = scmp.ne.s32.totalorder %s127, %s128
    %p140 = scmp.eq.s32.totalorder %s29, 1
    %p141 = por %p139, %p140
    %p143 = scmp.ne.s32.totalorder %s128, %s142
    %p144 = scmp.eq.s32.totalorder %s29, 0
    %p145 = por %p143, %p144
    %s147 = sadd.s32 %s146, 1
    %p150 = scmp.eq.s32.totalorder %s23, 1
    %p151 = scmp.ne.s32.totalorder %s146, %s148
    %p152 = scmp.eq.s32.totalorder %s23, 0
    %p153 = por %p151, %p152
    %p154 = scmp.ne.s32.totalorder %s146, %s148
    %p155 = scmp.eq.s32.totalorder %s28, 1
    %p156 = por %p154, %p155
    %p157 = scmp.ne.s32.totalorder %s148, %s149
    %p158 = scmp.eq.s32.totalorder %s28, 0
    %p159 = por %p157, %p158
    %p160 = scmp.ne.s32.totalorder %s148, %s149
    %p161 = scmp.eq.s32.totalorder %s29, 1
    %p162 = por %p160, %p161
    %p164 = scmp.ne.s32.totalorder %s149, %s163
    %p165 = scmp.eq.s32.totalorder %s29, 0
    %p166 = por %p164, %p165
    %s168 = sadd.s32 %s167, 1
    %p171 = scmp.eq.s32.totalorder %s23, 1
    %p172 = scmp.ne.s32.totalorder %s167, %s169
    %p173 = scmp.eq.s32.totalorder %s23, 0
    %p174 = por %p172, %p173
    %p175 = scmp.ne.s32.totalorder %s167, %s169
    %p176 = scmp.eq.s32.totalorder %s28, 1
    %p177 = por %p175, %p176
    %p178 = scmp.ne.s32.totalorder %s169, %s170
    %p179 = scmp.eq.s32.totalorder %s28, 0
    %p180 = por %p178, %p179
    %p181 = scmp.ne.s32.totalorder %s169, %s170
    %p182 = scmp.eq.s32.totalorder %s29, 1
    %p183 = por %p181, %p182
    %p185 = scmp.ne.s32.totalorder %s170, %s184
    %p186 = scmp.eq.s32.totalorder %s29, 0
    %p187 = por %p185, %p186
    %s189 = sadd.s32 %s188, 1
    %p192 = scmp.eq.s32.totalorder %s23, 1
    %p193 = scmp.ne.s32.totalorder %s188, %s190
    %p194 = scmp.eq.s32.totalorder %s23, 0
    %p195 = por %p193, %p194
    %p196 = scmp.ne.s32.totalorder %s188, %s190
    %p197 = scmp.eq.s32.totalorder %s28, 1
    %p198 = por %p196, %p197
    %p199 = scmp.ne.s32.totalorder %s190, %s191
    %p200 = scmp.eq.s32.totalorder %s28, 0
    %p201 = por %p199, %p200
    %p202 = scmp.ne.s32.totalorder %s190, %s191
    %p203 = scmp.eq.s32.totalorder %s29, 1
    %p204 = por %p202, %p203
    %p206 = scmp.ne.s32.totalorder %s191, %s205
    %p207 = scmp.eq.s32.totalorder %s29, 0
    %p208 = por %p206, %p207
    %s210 = sadd.s32 %s209, 1
    %p213 = scmp.eq.s32.totalorder %s23, 1
    %p214 = scmp.ne.s32.totalorder %s209, %s211
    %p215 = scmp.eq.s32.totalorder %s23, 0
    %p216 = por %p214, %p215
    %p217 = scmp.ne.s32.totalorder %s209, %s211
    %p218 = scmp.eq.s32.totalorder %s28, 1
    %p219 = por %p217, %p218
    %p220 = scmp.ne.s32.totalorder %s211, %s212
    %p221 = scmp.eq.s32.totalorder %s28, 0
    %p222 = por %p220, %p221
    %p223 = scmp.ne.s32.totalorder %s211, %s212
    %p224 = scmp.eq.s32.totalorder %s29, 1
    %p225 = por %p223, %p224
    %p227 = scmp.ne.s32.totalorder %s212, %s226
    %p228 = scmp.eq.s32.totalorder %s29, 0
    %p229 = por %p227, %p228
    %s231 = sadd.s32 %s230, 1
    %p234 = scmp.eq.s32.totalorder %s23, 1
    %p235 = scmp.ne.s32.totalorder %s230, %s232
    %p236 = scmp.eq.s32.totalorder %s23, 0
    %p237 = por %p235, %p236
    %p238 = scmp.ne.s32.totalorder %s230, %s232
    %p239 = scmp.eq.s32.totalorder %s28, 1
    %p240 = por %p238, %p239
    %p241 = scmp.ne.s32.totalorder %s232, %s233
    %p242 = scmp.eq.s32.totalorder %s28, 0
    %p243 = por %p241, %p242
    %p244 = scmp.ne.s32.totalorder %s232, %s233
    %p245 = scmp.eq.s32.totalorder %s29, 1
    %p246 = por %p244, %p245
    %p248 = scmp.ne.s32.totalorder %s233, %s247
    %p249 = scmp.eq.s32.totalorder %s29, 0
    %p250 = por %p248, %p249
    %s252 = sadd.s32 %s251, 1
    %p255 = scmp.eq.s32.totalorder %s23, 1
    %p256 = scmp.ne.s32.totalorder %s251, %s253
    %p257 = scmp.eq.s32.totalorder %s23, 0
    %p258 = por %p256, %p257
    %p259 = scmp.ne.s32.totalorder %s251, %s253
    %p260 = scmp.eq.s32.totalorder %s28, 1
    %p261 = por %p259, %p260
    %p262 = scmp.ne.s32.totalorder %s253, %s254
    %p263 = scmp.eq.s32.totalorder %s28, 0
    %p264 = por %p262, %p263
    %p265 = scmp.ne.s32.totalorder %s253, %s254
    %p266 = scmp.eq.s32.totalorder %s29, 1
    %p267 = por %p265, %p266
    %p269 = scmp.ne.s32.totalorder %s254, %s268
    %p270 = scmp.eq.s32.totalorder %s29, 0
    %p271 = por %p269, %p270
    %s273 = sadd.s32 %s272, 1
    %p276 = scmp.eq.s32.totalorder %s23, 1
    %p277 = scmp.ne.s32.totalorder %s272, %s274
    %p278 = scmp.eq.s32.totalorder %s23, 0
    %p279 = por %p277, %p278
    %p280 = scmp.ne.s32.totalorder %s272, %s274
    %p281 = scmp.eq.s32.totalorder %s28, 1
    %p282 = por %p280, %p281
    %p283 = scmp.ne.s32.totalorder %s274, %s275
    %p284 = scmp.eq.s32.totalorder %s28, 0
    %p285 = por %p283, %p284
    %p286 = scmp.ne.s32.totalorder %s274, %s275
    %p287 = scmp.eq.s32.totalorder %s29, 1
    %p288 = por %p286, %p287
    %p290 = scmp.ne.s32.totalorder %s275, %s289
    %p291 = scmp.eq.s32.totalorder %s29, 0
    %p292 = por %p290, %p291
    %s294 = sadd.s32 %s293, 1
    %p297 = scmp.eq.s32.totalorder %s23, 1
    %p298 = scmp.ne.s32.totalorder %s293, %s295
    %p299 = scmp.eq.s32.totalorder %s23, 0
    %p300 = por %p298, %p299
    %p301 = scmp.ne.s32.totalorder %s293, %s295
    %p302 = scmp.eq.s32.totalorder %s28, 1
    %p303 = por %p301, %p302
    %p304 = scmp.ne.s32.totalorder %s295, %s296
    %p305 = scmp.eq.s32.totalorder %s28, 0
    %p306 = por %p304, %p305
    %p307 = scmp.ne.s32.totalorder %s295, %s296
    %p308 = scmp.eq.s32.totalorder %s29, 1
    %p309 = por %p307, %p308
    %p311 = scmp.ne.s32.totalorder %s296, %s310
    %p312 = scmp.eq.s32.totalorder %s29, 0
    %p313 = por %p311, %p312
    %s315 = sadd.s32 %s314, 1
    %p318 = scmp.eq.s32.totalorder %s23, 1
    %p319 = scmp.ne.s32.totalorder %s314, %s316
    %p320 = scmp.eq.s32.totalorder %s23, 0
    %p321 = por %p319, %p320
    %p322 = scmp.ne.s32.totalorder %s314, %s316
    %p323 = scmp.eq.s32.totalorder %s28, 1
    %p324 = por %p322, %p323
    %p325 = scmp.ne.s32.totalorder %s316, %s317
    %p326 = scmp.eq.s32.totalorder %s28, 0
    %p327 = por %p325, %p326
    %p328 = scmp.ne.s32.totalorder %s316, %s317
    %p329 = scmp.eq.s32.totalorder %s29, 1
    %p330 = por %p328, %p329
    %p332 = scmp.ne.s32.totalorder %s317, %s331
    %p333 = scmp.eq.s32.totalorder %s29, 0
    %p334 = por %p332, %p333
    %s336 = sadd.s32 %s335, 1
    %p339 = scmp.eq.s32.totalorder %s23, 1
    %p340 = scmp.ne.s32.totalorder %s335, %s337
    %p341 = scmp.eq.s32.totalorder %s23, 0
    %p342 = por %p340, %p341
    %p343 = scmp.ne.s32.totalorder %s335, %s337
    %p344 = scmp.eq.s32.totalorder %s28, 1
    %p345 = por %p343, %p344
    %p346 = scmp.ne.s32.totalorder %s337, %s338
    %p347 = scmp.eq.s32.totalorder %s28, 0
    %p348 = por %p346, %p347
    %p349 = scmp.ne.s32.totalorder %s337, %s338
    %p350 = scmp.eq.s32.totalorder %s29, 1
    %p351 = por %p349, %p350
    %p353 = scmp.ne.s32.totalorder %s338, %s352
    %p354 = scmp.eq.s32.totalorder %s29, 0
    %p355 = por %p353, %p354
    %s356 = ssub.s32 %s23, %s30
    %p357 = scmp.eq.s32.totalorder %s356, 0
    %s359 = sadd.s32 %s358, 1
    %s360 = scalar_select %p357, %s358, %s359
    %p363 = pneg %p357
    %p364 = scmp.eq.s32.totalorder %s23, 1
    %p365 = por %p363, %p364
    %p366 = scmp.ne.s32.totalorder %s358, %s361
    %p367 = scmp.eq.s32.totalorder %s23, 0
    %p368 = por %p366, %p367
    %p369 = scmp.ne.s32.totalorder %s358, %s361
    %p370 = scmp.eq.s32.totalorder %s28, 1
    %p371 = por %p369, %p370
    %p372 = scmp.ne.s32.totalorder %s361, %s362
    %p373 = scmp.eq.s32.totalorder %s28, 0
    %p374 = por %p372, %p373
    %p375 = scmp.ne.s32.totalorder %s361, %s362
    %p376 = scmp.eq.s32.totalorder %s29, 1
    %p377 = por %p375, %p376
    %p379 = scmp.ne.s32.totalorder %s362, %s378
    %p380 = scmp.eq.s32.totalorder %s29, 0
    %p381 = por %p379, %p380
    %p382 = scmp.le.s32.totalorder 1, %s23
    %p383 = scmp.lt.s32.totalorder %s23, 3
    %p384 = pnand %p382, %p383
    %p385 = pneg %p384
    // Predicated region
    $region9: #{reward_net_forward.1} parent=5 // pred_check
      _
    $region10: #{reward_net_forward.1} parent=5 // pred_check_branch
      %387 = sbr.rel (%p384) target = $region12
    $region11: #{reward_net_forward.1} parent=5 // pred_region
      %s388 = ssub.s32 %s23, 1
      // Predicated region
      $region13: #{reward_net_forward.1} parent=11 // pred_check
        %p389 = pneg %p96
      $region14: #{reward_net_forward.1} parent=11 // pred_check_branch
        %391 = sbr.rel (%p389) target = $region16
      $region15: #{reward_net_forward.1} parent=11 // pred_region
        _
      $region16: #{reward_net_forward.1} parent=11 // pred_fallthru
        _
      // Predicated region
      $region17: #{reward_net_forward.1} parent=11 // pred_check
        %p392 = pneg %p117
      $region18: #{reward_net_forward.1} parent=11 // pred_check_branch
        %394 = sbr.rel (%p392) target = $region20
      $region19: #{reward_net_forward.1} parent=11 // pred_region
        _
      $region20: #{reward_net_forward.1} parent=11 // pred_fallthru
        _
      // Predicated region
      $region21: #{reward_net_forward.1} parent=11 // pred_check
        %p395 = pneg %p138
      $region22: #{reward_net_forward.1} parent=11 // pred_check_branch
        %397 = sbr.rel (%p395) target = $region24
      $region23: #{reward_net_forward.1} parent=11 // pred_region
        _
      $region24: #{reward_net_forward.1} parent=11 // pred_fallthru
        _
      // Predicated region
      $region25: #{reward_net_forward.1} parent=11 // pred_check
        %p398 = pneg %p159
      $region26: #{reward_net_forward.1} parent=11 // pred_check_branch
        %400 = sbr.rel (%p398) target = $region28
      $region27: #{reward_net_forward.1} parent=11 // pred_region
        _
      $region28: #{reward_net_forward.1} parent=11 // pred_fallthru
        _
      // Predicated region
      $region29: #{reward_net_forward.1} parent=11 // pred_check
        %p401 = pneg %p180
      $region30: #{reward_net_forward.1} parent=11 // pred_check_branch
        %403 = sbr.rel (%p401) target = $region32
      $region31: #{reward_net_forward.1} parent=11 // pred_region
        _
      $region32: #{reward_net_forward.1} parent=11 // pred_fallthru
        _
      // Predicated region
      $region33: #{reward_net_forward.1} parent=11 // pred_check
        %p404 = pneg %p201
      $region34: #{reward_net_forward.1} parent=11 // pred_check_branch
        %406 = sbr.rel (%p404) target = $region36
      $region35: #{reward_net_forward.1} parent=11 // pred_region
        _
      $region36: #{reward_net_forward.1} parent=11 // pred_fallthru
        _
      // Predicated region
      $region37: #{reward_net_forward.1} parent=11 // pred_check
        %p407 = pneg %p222
      $region38: #{reward_net_forward.1} parent=11 // pred_check_branch
        %409 = sbr.rel (%p407) target = $region40
      $region39: #{reward_net_forward.1} parent=11 // pred_region
        _
      $region40: #{reward_net_forward.1} parent=11 // pred_fallthru
        _
      // Predicated region
      $region41: #{reward_net_forward.1} parent=11 // pred_check
        %p410 = pneg %p243
      $region42: #{reward_net_forward.1} parent=11 // pred_check_branch
        %412 = sbr.rel (%p410) target = $region44
      $region43: #{reward_net_forward.1} parent=11 // pred_region
        _
      $region44: #{reward_net_forward.1} parent=11 // pred_fallthru
        _
      // Predicated region
      $region45: #{reward_net_forward.1} parent=11 // pred_check
        %p413 = pneg %p264
      $region46: #{reward_net_forward.1} parent=11 // pred_check_branch
        %415 = sbr.rel (%p413) target = $region48
      $region47: #{reward_net_forward.1} parent=11 // pred_region
        _
      $region48: #{reward_net_forward.1} parent=11 // pred_fallthru
        _
      // Predicated region
      $region49: #{reward_net_forward.1} parent=11 // pred_check
        %p416 = pneg %p285
      $region50: #{reward_net_forward.1} parent=11 // pred_check_branch
        %418 = sbr.rel (%p416) target = $region52
      $region51: #{reward_net_forward.1} parent=11 // pred_region
        _
      $region52: #{reward_net_forward.1} parent=11 // pred_fallthru
        _
      // Predicated region
      $region53: #{reward_net_forward.1} parent=11 // pred_check
        %p419 = pneg %p306
      $region54: #{reward_net_forward.1} parent=11 // pred_check_branch
        %421 = sbr.rel (%p419) target = $region56
      $region55: #{reward_net_forward.1} parent=11 // pred_region
        _
      $region56: #{reward_net_forward.1} parent=11 // pred_fallthru
        _
      // Predicated region
      $region57: #{reward_net_forward.1} parent=11 // pred_check
        %p422 = pneg %p327
      $region58: #{reward_net_forward.1} parent=11 // pred_check_branch
        %424 = sbr.rel (%p422) target = $region60
      $region59: #{reward_net_forward.1} parent=11 // pred_region
        _
      $region60: #{reward_net_forward.1} parent=11 // pred_fallthru
        _
      // Predicated region
      $region61: #{reward_net_forward.1} parent=11 // pred_check
        %p425 = pneg %p348
      $region62: #{reward_net_forward.1} parent=11 // pred_check_branch
        %427 = sbr.rel (%p425) target = $region64
      $region63: #{reward_net_forward.1} parent=11 // pred_region
        _
      $region64: #{reward_net_forward.1} parent=11 // pred_fallthru
        _
    $region12: #{reward_net_forward.1} parent=5 // pred_fallthru
      _
    %p428 = scmp.lt.s32.totalorder %s23, 2
    // Predicated region
    $region65: #{reward_net_forward.1} parent=5 // pred_check
      %p429 = pneg %p428
    $region66: #{reward_net_forward.1} parent=5 // pred_check_branch
      %431 = sbr.rel (%p429) target = $region68
    $region67: #{reward_net_forward.1} parent=5 // pred_region
      // Predicated region
      $region69: #{reward_net_forward.1} parent=67 // pred_check
        %p432 = pneg %p43
      $region70: #{reward_net_forward.1} parent=67 // pred_check_branch
        %434 = sbr.rel (%p432) target = $region72
      $region71: #{reward_net_forward.1} parent=67 // pred_region
        %s435 = smul.u32 32, %s23
        %p436 = scmp.lt.s32.totalorder %s435, 63
        %s437 = scalar_select %p436, %s435, 63
        %s438 = smul.addr %s437, 4
        %s439 = scalar_lea.vmem %s0, %s438
        %s440 = smul.u32 32, %s23
      $region72: #{reward_net_forward.1} parent=67 // pred_fallthru
        _
      // Predicated region
      $region73: #{reward_net_forward.1} parent=67 // pred_check
        %p441 = pneg %p69
      $region74: #{reward_net_forward.1} parent=67 // pred_check_branch
        %443 = sbr.rel (%p441) target = $region76
      $region75: #{reward_net_forward.1} parent=67 // pred_region
        %s444 = smul.u32 32, %s23
        %p445 = scmp.lt.s32.totalorder %s444, 63
        %s446 = scalar_select %p445, %s444, 63
        %s447 = smul.addr %s446, 4
        %s448 = scalar_lea.vmem %s1, %s447
        %s449 = smul.u32 32, %s23
      $region76: #{reward_net_forward.1} parent=67 // pred_fallthru
        _
    $region68: #{reward_net_forward.1} parent=5 // pred_fallthru
      _
    %p450 = scmp.le.s32.totalorder 1, %s23
    %p451 = scmp.lt.s32.totalorder %s23, 3
    %p452 = pnand %p450, %p451
    %p453 = pneg %p452
    // Predicated region
    $region77: #{reward_net_forward.1} parent=5 // pred_check
      _
    $region78: #{reward_net_forward.1} parent=5 // pred_check_branch
      %455 = sbr.rel (%p452) target = $region80
    $region79: #{reward_net_forward.1} parent=5 // pred_region
      %s456 = ssub.s32 %s23, 1
      %s457 = smul.u32 32, %s28
      %p458 = scmp.lt.s32.totalorder %s457, 63
      %s459 = scalar_select %p458, %s457, 63
      %s460 = smul.addr %s459, 4
      %s461 = scalar_lea.vmem %s0, %s460
      %p462 = pneg %p49
      %p463 = pneg %p46
      %s464 = smul.u32 32, %s28
      %p465 = scmp.lt.s32.totalorder %s464, 63
      %s466 = scalar_select %p465, %s464, 63
      %s467 = smul.addr %s466, 4
      %s468 = scalar_lea.vmem %s1, %s467
      %p469 = pneg %p75
      %p470 = pneg %p72
      %p471 = pneg %p96
      %p472 = pneg %p93
      %p473 = pneg %p117
      %p474 = pneg %p114
      %p475 = pneg %p138
      %p476 = pneg %p135
      %p477 = pneg %p159
      %p478 = pneg %p156
      %p479 = pneg %p180
      %p480 = pneg %p177
      %p481 = pneg %p201
      %p482 = pneg %p198
      %p483 = pneg %p222
      %p484 = pneg %p219
      %p485 = pneg %p243
      %p486 = pneg %p240
      %p487 = pneg %p264
      %p488 = pneg %p261
      %p489 = pneg %p285
      %p490 = pneg %p282
      %p491 = pneg %p306
      %p492 = pneg %p303
      %p493 = pneg %p327
      %p494 = pneg %p324
      %p495 = pneg %p348
      %p496 = pneg %p345
      %p497 = pneg %p374
      %p498 = pneg %p371
      %s499 = smul.u32 2, %s28
      %p500 = scmp.lt.s32.totalorder %s499, 3
      %s501 = scalar_select %p500, %s499, 3
      %s502 = scalar_lea.vmem %s15, %s501
      %s503 = smul.u32 32, %s28
      %p504 = scmp.lt.s32.totalorder %s503, 63
      %s505 = scalar_select %p504, %s503, 63
      %s506 = smul.addr %s505, 4
      %s507 = scalar_lea.vmem %s0, %s506
      %s508 = smul.u32 32, %s28
      %s509 = smul.u32 32, %s28
      %p510 = scmp.lt.s32.totalorder %s509, 63
      %s511 = scalar_select %p510, %s509, 63
      %s512 = smul.addr %s511, 4
      %s513 = scalar_lea.vmem %s1, %s512
      %s514 = smul.u32 32, %s28
      %s515 = smul.u32 2, %s28
      %p516 = scmp.lt.s32.totalorder %s515, 3
      %s517 = scalar_select %p516, %s515, 3
      %s518 = scalar_lea.vmem %s15, %s517
      %s519 = smul.u32 2, %s28
      %v521 = vld [vmem:[%s507] sm:$0xf]
      %v522 = vld [vmem:[%s507 + $0x4] sm:$0xf]
      %v523 = vld [vmem:[%s507 + $0x8] sm:$0xf]
      %v524 = vld [vmem:[%s507 + $0xc] sm:$0xf]
      %v525 = vld [vmem:[%s507 + $0x10] sm:$0xf]
      %v526 = vld [vmem:[%s507 + $0x14] sm:$0xf]
      %v527 = vld [vmem:[%s507 + $0x18] sm:$0xf]
      %v528 = vld [vmem:[%s507 + $0x1c] sm:$0xf]
      %v529 = vld [vmem:[%s507 + $0x20] sm:$0xf]
      %v530 = vld [vmem:[%s507 + $0x24] sm:$0xf]
      %v531 = vld [vmem:[%s507 + $0x28] sm:$0xf]
      %v532 = vld [vmem:[%s507 + $0x2c] sm:$0xf]
      %v533 = vld [vmem:[%s507 + $0x30] sm:$0xf]
      %v534 = vld [vmem:[%s507 + $0x34] sm:$0xf]
      %v535 = vld [vmem:[%s507 + $0x38] sm:$0xf]
      %v536 = vld [vmem:[%s507 + $0x3c] sm:$0xf]
      %v537 = vld [vmem:[%s507 + $0x40] sm:$0xf]
      %v538 = vld [vmem:[%s507 + $0x44] sm:$0xf]
      %v539 = vld [vmem:[%s507 + $0x48] sm:$0xf]
      %v540 = vld [vmem:[%s507 + $0x4c] sm:$0xf]
      %v541 = vld [vmem:[%s507 + $0x50] sm:$0xf]
      %v542 = vld [vmem:[%s507 + $0x54] sm:$0xf]
      %v543 = vld [vmem:[%s507 + $0x58] sm:$0xf]
      %v544 = vld [vmem:[%s507 + $0x5c] sm:$0xf]
      %v545 = vld [vmem:[%s507 + $0x60] sm:$0xf]
      %v546 = vld [vmem:[%s507 + $0x64] sm:$0xf]
      %v547 = vld [vmem:[%s507 + $0x68] sm:$0xf]
      %v548 = vld [vmem:[%s507 + $0x6c] sm:$0xf]
      %v549 = vld [vmem:[%s507 + $0x70] sm:$0xf]
      %v550 = vld [vmem:[%s507 + $0x74] sm:$0xf]
      %v551 = vld [vmem:[%s507 + $0x78] sm:$0xf]
      %v552 = vld [vmem:[%s507 + $0x7c] sm:$0xf]
      %v553 = vld [vmem:[%s2] sm:$0xf]
      %v554 = vld [vmem:[%s2 + $0x4] sm:$0xf]
      %v555 = vld [vmem:[%s2 + $0x8] sm:$0xf]
      %v556 = vld [vmem:[%s2 + $0xc] sm:$0xf]
      %v557 = vld [vmem:[%s3] sm:$0x1]
      %v559 = vlaneseq
      %v560 = vshrl.u32 %v559, 7
      %v561 = vsub.s32 0, %v560
      %v562 = vrot.slane %v557, %v561
      %v596 = vunpack.c.l.b16 %v521
      %v597 = vunpack.c.l.b16 %v522
      %v598 = vunpack.c.l.b16 %v523
      %v599 = vunpack.c.l.b16 %v524
      %v600 = vunpack.c.l.b16 %v525
      %v601 = vunpack.c.l.b16 %v526
      %v602 = vunpack.c.l.b16 %v527
      %v603 = vunpack.c.l.b16 %v528
      %v604 = vunpack.c.l.b16 %v529
      %v605 = vunpack.c.l.b16 %v530
      %v606 = vunpack.c.l.b16 %v531
      %v607 = vunpack.c.l.b16 %v532
      %v608 = vunpack.c.l.b16 %v533
      %v609 = vunpack.c.l.b16 %v534
      %v610 = vunpack.c.l.b16 %v535
      %v611 = vunpack.c.l.b16 %v536
      %v612 = vunpack.c.l.b16 %v537
      %v613 = vunpack.c.l.b16 %v538
      %v614 = vunpack.c.l.b16 %v539
      %v615 = vunpack.c.l.b16 %v540
      %v616 = vunpack.c.l.b16 %v541
      %v617 = vunpack.c.l.b16 %v542
      %v618 = vunpack.c.l.b16 %v543
      %v619 = vunpack.c.l.b16 %v544
      %v620 = vunpack.c.l.b16 %v545
      %v621 = vunpack.c.l.b16 %v546
      %v622 = vunpack.c.l.b16 %v547
      %v623 = vunpack.c.l.b16 %v548
      %v624 = vunpack.c.l.b16 %v549
      %v625 = vunpack.c.l.b16 %v550
      %v626 = vunpack.c.l.b16 %v551
      %v627 = vunpack.c.l.b16 %v552
      %v628 = vpack.c.b16 %v597, %v596
      %v629 = vpack.c.b16 %v599, %v598
      %v630 = vpack.c.b16 %v601, %v600
      %v631 = vpack.c.b16 %v603, %v602
      %v632 = vpack.c.b16 %v605, %v604
      %v633 = vpack.c.b16 %v607, %v606
      %v634 = vpack.c.b16 %v609, %v608
      %v635 = vpack.c.b16 %v611, %v610
      %v636 = vpack.c.b16 %v613, %v612
      %v637 = vpack.c.b16 %v615, %v614
      %v638 = vpack.c.b16 %v617, %v616
      %v639 = vpack.c.b16 %v619, %v618
      %v640 = vpack.c.b16 %v621, %v620
      %v641 = vpack.c.b16 %v623, %v622
      %v642 = vpack.c.b16 %v625, %v624
      %v643 = vpack.c.b16 %v627, %v626
      %v648 = vunpack.c.l.b16 %v553
      %v649 = vunpack.c.l.b16 %v554
      %v650 = vunpack.c.l.b16 %v555
      %v651 = vunpack.c.l.b16 %v556
      %v652 = vpack.c.b16 %v649, %v648
      %v653 = vpack.c.b16 %v651, %v650
      %vm656 = vcmask 261120
      %v658 = vsel %vm656, %v628, 0
      %v661 = vsel %vm656, %v629, 0
      %v664 = vsel %vm656, %v630, 0
      %v667 = vsel %vm656, %v631, 0
      %v670 = vsel %vm656, %v632, 0
      %v673 = vsel %vm656, %v633, 0
      %v676 = vsel %vm656, %v634, 0
      %v679 = vsel %vm656, %v635, 0
      %v682 = vsel %vm656, %v636, 0
      %v685 = vsel %vm656, %v637, 0
      %v688 = vsel %vm656, %v638, 0
      %v691 = vsel %vm656, %v639, 0
      %v694 = vsel %vm656, %v640, 0
      %v697 = vsel %vm656, %v641, 0
      %v700 = vsel %vm656, %v642, 0
      %v703 = vsel %vm656, %v643, 0
      %705 = vmatprep.subr.bf16.mxu0 0
      %706 = vmatpush1.bf16.msra.mxu0 0
      %707 = vmatprep.subr.bf16.mxu0 0
      %708 = vmatpush1.bf16.msra.mxu0 0
      %709 = vmatprep.subr.bf16.mxu0 0
      %710 = vmatpush1.bf16.msra.mxu0 0
      %711 = vmatprep.subr.bf16.mxu0 0
      %712 = vmatpush1.bf16.msra.mxu0 0
      %713 = vmatprep.subr.bf16.mxu0 0
      %714 = vmatpush1.bf16.msra.mxu0 0
      %715 = vmatprep.subr.bf16.mxu0 0
      %716 = vmatpush1.bf16.msra.mxu0 0
      %717 = vmatprep.subr.bf16.mxu0 0
      %718 = vmatpush1.bf16.msra.mxu0 %v653
      %719 = vmatprep.subr.bf16.mxu0 0
      %720 = vmatpush1.bf16.msra.mxu0 %v652
      %721 = vmatprep.subr.bf16.mxu0 0
      %722 = vmatpush2.bf16.msra.mxu0 0
      %723 = vmatprep.subr.bf16.mxu0 0
      %724 = vmatpush2.bf16.msra.mxu0 0
      %725 = vmatprep.subr.bf16.mxu0 0
      %726 = vmatpush2.bf16.msra.mxu0 0
      %727 = vmatprep.subr.bf16.mxu0 0
      %728 = vmatpush2.bf16.msra.mxu0 0
      %729 = vmatprep.subr.bf16.mxu0 0
      %730 = vmatpush2.bf16.msra.mxu0 0
      %731 = vmatprep.subr.bf16.mxu0 0
      %732 = vmatpush2.bf16.msra.mxu0 0
      %733 = vmatprep.subr.bf16.mxu0 0
      %734 = vmatpush2.bf16.msra.mxu0 0
      %735 = vmatprep.subr.bf16.mxu0 0
      %736 = vmatpush2.bf16.msra.mxu0 0
      %737 = vmatprep.mubr.bf16.mxu0 0
      %738 = vmatmul.mubr.bf16.gmra.mxu0 %v658
      %v739 = vpop.f32.mrf.mxu0
      %v740 = vadd.f32 %v562, %v739
      %v741 = vpop.f32.mrf.mxu0
      %v742 = vpop.f32.mrf.mxu0
      %v743 = vadd.f32 %v562, %v742
      %v744 = vpop.f32.mrf.mxu0
      %745 = vmatprep.mubr.bf16.mxu0 0
      %746 = vmatmul.mubr.bf16.gmra.mxu0 %v661
      %v747 = vpop.f32.mrf.mxu0
      %v748 = vadd.f32 %v562, %v747
      %v749 = vpop.f32.mrf.mxu0
      %v750 = vpop.f32.mrf.mxu0
      %v751 = vadd.f32 %v562, %v750
      %v752 = vpop.f32.mrf.mxu0
      %753 = vmatprep.mubr.bf16.mxu0 0
      %754 = vmatmul.mubr.bf16.gmra.mxu0 %v664
      %v755 = vpop.f32.mrf.mxu0
      %v756 = vadd.f32 %v562, %v755
      %v757 = vpop.f32.mrf.mxu0
      %v758 = vpop.f32.mrf.mxu0
      %v759 = vadd.f32 %v562, %v758
      %v760 = vpop.f32.mrf.mxu0
      %761 = vmatprep.mubr.bf16.mxu0 0
      %762 = vmatmul.mubr.bf16.gmra.mxu0 %v667
      %v763 = vpop.f32.mrf.mxu0
      %v764 = vadd.f32 %v562, %v763
      %v765 = vpop.f32.mrf.mxu0
      %v766 = vpop.f32.mrf.mxu0
      %v767 = vadd.f32 %v562, %v766
      %v768 = vpop.f32.mrf.mxu0
      %769 = vmatprep.mubr.bf16.mxu0 0
      %770 = vmatmul.mubr.bf16.gmra.mxu0 %v670
      %v771 = vpop.f32.mrf.mxu0
      %v772 = vadd.f32 %v562, %v771
      %v773 = vpop.f32.mrf.mxu0
      %v774 = vpop.f32.mrf.mxu0
      %v775 = vadd.f32 %v562, %v774
      %v776 = vpop.f32.mrf.mxu0
      %777 = vmatprep.mubr.bf16.mxu0 0
      %778 = vmatmul.mubr.bf16.gmra.mxu0 %v673
      %v779 = vpop.f32.mrf.mxu0
      %v780 = vadd.f32 %v562, %v779
      %v781 = vpop.f32.mrf.mxu0
      %v782 = vpop.f32.mrf.mxu0
      %v783 = vadd.f32 %v562, %v782
      %v784 = vpop.f32.mrf.mxu0
      %785 = vmatprep.mubr.bf16.mxu0 0
      %786 = vmatmul.mubr.bf16.gmra.mxu0 %v676
      %v787 = vpop.f32.mrf.mxu0
      %v788 = vadd.f32 %v562, %v787
      %v789 = vpop.f32.mrf.mxu0
      %v790 = vpop.f32.mrf.mxu0
      %v791 = vadd.f32 %v562, %v790
      %v792 = vpop.f32.mrf.mxu0
      %793 = vmatprep.mubr.bf16.mxu0 0
      %794 = vmatmul.mubr.bf16.gmra.mxu0 %v679
      %v795 = vpop.f32.mrf.mxu0
      %v796 = vadd.f32 %v562, %v795
      %v797 = vpop.f32.mrf.mxu0
      %v798 = vpop.f32.mrf.mxu0
      %v799 = vadd.f32 %v562, %v798
      %v800 = vpop.f32.mrf.mxu0
      %801 = vmatprep.mubr.bf16.mxu0 0
      %802 = vmatmul.mubr.bf16.gmra.mxu0 %v682
      %v803 = vpop.f32.mrf.mxu0
      %v804 = vadd.f32 %v562, %v803
      %v805 = vpop.f32.mrf.mxu0
      %v806 = vpop.f32.mrf.mxu0
      %v807 = vadd.f32 %v562, %v806
      %v808 = vpop.f32.mrf.mxu0
      %809 = vmatprep.mubr.bf16.mxu0 0
      %810 = vmatmul.mubr.bf16.gmra.mxu0 %v685
      %v811 = vpop.f32.mrf.mxu0
      %v812 = vadd.f32 %v562, %v811
      %v813 = vpop.f32.mrf.mxu0
      %v814 = vpop.f32.mrf.mxu0
      %v815 = vadd.f32 %v562, %v814
      %v816 = vpop.f32.mrf.mxu0
      %817 = vmatprep.mubr.bf16.mxu0 0
      %818 = vmatmul.mubr.bf16.gmra.mxu0 %v688
      %v819 = vpop.f32.mrf.mxu0
      %v820 = vadd.f32 %v562, %v819
      %v821 = vpop.f32.mrf.mxu0
      %v822 = vpop.f32.mrf.mxu0
      %v823 = vadd.f32 %v562, %v822
      %v824 = vpop.f32.mrf.mxu0
      %825 = vmatprep.mubr.bf16.mxu0 0
      %826 = vmatmul.mubr.bf16.gmra.mxu0 %v691
      %v827 = vpop.f32.mrf.mxu0
      %v828 = vadd.f32 %v562, %v827
      %v829 = vpop.f32.mrf.mxu0
      %v830 = vpop.f32.mrf.mxu0
      %v831 = vadd.f32 %v562, %v830
      %v832 = vpop.f32.mrf.mxu0
      %833 = vmatprep.mubr.bf16.mxu0 0
      %834 = vmatmul.mubr.bf16.gmra.mxu0 %v694
      %v835 = vpop.f32.mrf.mxu0
      %v836 = vadd.f32 %v562, %v835
      %v837 = vpop.f32.mrf.mxu0
      %v838 = vpop.f32.mrf.mxu0
      %v839 = vadd.f32 %v562, %v838
      %v840 = vpop.f32.mrf.mxu0
      %841 = vmatprep.mubr.bf16.mxu0 0
      %842 = vmatmul.mubr.bf16.gmra.mxu0 %v697
      %v843 = vpop.f32.mrf.mxu0
      %v844 = vadd.f32 %v562, %v843
      %v845 = vpop.f32.mrf.mxu0
      %v846 = vpop.f32.mrf.mxu0
      %v847 = vadd.f32 %v562, %v846
      %v848 = vpop.f32.mrf.mxu0
      %849 = vmatprep.mubr.bf16.mxu0 0
      %850 = vmatmul.mubr.bf16.gmra.mxu0 %v700
      %v851 = vpop.f32.mrf.mxu0
      %v852 = vadd.f32 %v562, %v851
      %v853 = vpop.f32.mrf.mxu0
      %v854 = vpop.f32.mrf.mxu0
      %v855 = vadd.f32 %v562, %v854
      %v856 = vpop.f32.mrf.mxu0
      %857 = vmatprep.mubr.bf16.mxu0 0
      %858 = vmatmul.mubr.bf16.gmra.mxu0 %v703
      %v859 = vpop.f32.mrf.mxu0
      %v860 = vadd.f32 %v562, %v859
      %v861 = vpop.f32.mrf.mxu0
      %v862 = vpop.f32.mrf.mxu0
      %v863 = vadd.f32 %v562, %v862
      %v864 = vpop.f32.mrf.mxu0
      %865 = vdwg.mxu0
      %v866 = vmax.f32 %v740, 0.0
      %v867 = vmax.f32 %v743, 0.0
      %v868 = vmax.f32 %v748, 0.0
      %v869 = vmax.f32 %v751, 0.0
      %v870 = vmax.f32 %v756, 0.0
      %v871 = vmax.f32 %v759, 0.0
      %v872 = vmax.f32 %v764, 0.0
      %v873 = vmax.f32 %v767, 0.0
      %v874 = vmax.f32 %v772, 0.0
      %v875 = vmax.f32 %v775, 0.0
      %v876 = vmax.f32 %v780, 0.0
      %v877 = vmax.f32 %v783, 0.0
      %v878 = vmax.f32 %v788, 0.0
      %v879 = vmax.f32 %v791, 0.0
      %v880 = vmax.f32 %v796, 0.0
      %v881 = vmax.f32 %v799, 0.0
      %v882 = vmax.f32 %v804, 0.0
      %v883 = vmax.f32 %v807, 0.0
      %v884 = vmax.f32 %v812, 0.0
      %v885 = vmax.f32 %v815, 0.0
      %v886 = vmax.f32 %v820, 0.0
      %v887 = vmax.f32 %v823, 0.0
      %v888 = vmax.f32 %v828, 0.0
      %v889 = vmax.f32 %v831, 0.0
      %v890 = vmax.f32 %v836, 0.0
      %v891 = vmax.f32 %v839, 0.0
      %v892 = vmax.f32 %v844, 0.0
      %v893 = vmax.f32 %v847, 0.0
      %v894 = vmax.f32 %v852, 0.0
      %v895 = vmax.f32 %v855, 0.0
      %v896 = vmax.f32 %v860, 0.0
      %v897 = vmax.f32 %v863, 0.0
      %v898 = vld [vmem:[%s513] sm:$0xf]
      %v899 = vld [vmem:[%s513 + $0x4] sm:$0xf]
      %v900 = vld [vmem:[%s513 + $0x8] sm:$0xf]
      %v901 = vld [vmem:[%s513 + $0xc] sm:$0xf]
      %v902 = vld [vmem:[%s513 + $0x10] sm:$0xf]
      %v903 = vld [vmem:[%s513 + $0x14] sm:$0xf]
      %v904 = vld [vmem:[%s513 + $0x18] sm:$0xf]
      %v905 = vld [vmem:[%s513 + $0x1c] sm:$0xf]
      %v906 = vld [vmem:[%s513 + $0x20] sm:$0xf]
      %v907 = vld [vmem:[%s513 + $0x24] sm:$0xf]
      %v908 = vld [vmem:[%s513 + $0x28] sm:$0xf]
      %v909 = vld [vmem:[%s513 + $0x2c] sm:$0xf]
      %v910 = vld [vmem:[%s513 + $0x30] sm:$0xf]
      %v911 = vld [vmem:[%s513 + $0x34] sm:$0xf]
      %v912 = vld [vmem:[%s513 + $0x38] sm:$0xf]
      %v913 = vld [vmem:[%s513 + $0x3c] sm:$0xf]
      %v914 = vld [vmem:[%s513 + $0x40] sm:$0xf]
      %v915 = vld [vmem:[%s513 + $0x44] sm:$0xf]
      %v916 = vld [vmem:[%s513 + $0x48] sm:$0xf]
      %v917 = vld [vmem:[%s513 + $0x4c] sm:$0xf]
      %v918 = vld [vmem:[%s513 + $0x50] sm:$0xf]
      %v919 = vld [vmem:[%s513 + $0x54] sm:$0xf]
      %v920 = vld [vmem:[%s513 + $0x58] sm:$0xf]
      %v921 = vld [vmem:[%s513 + $0x5c] sm:$0xf]
      %v922 = vld [vmem:[%s513 + $0x60] sm:$0xf]
      %v923 = vld [vmem:[%s513 + $0x64] sm:$0xf]
      %v924 = vld [vmem:[%s513 + $0x68] sm:$0xf]
      %v925 = vld [vmem:[%s513 + $0x6c] sm:$0xf]
      %v926 = vld [vmem:[%s513 + $0x70] sm:$0xf]
      %v927 = vld [vmem:[%s513 + $0x74] sm:$0xf]
      %v928 = vld [vmem:[%s513 + $0x78] sm:$0xf]
      %v929 = vld [vmem:[%s513 + $0x7c] sm:$0xf]
      %v930 = vld [vmem:[%s4] sm:$0xf]
      %v931 = vld [vmem:[%s4 + $0x4] sm:$0x1]
      %v932 = vld [vmem:[%s5] sm:$0x1]
      %v934 = vlaneseq
      %v935 = vshrl.u32 %v934, 7
      %v936 = vsub.s32 0, %v935
      %v937 = vrot.slane %v932, %v936
      %v971 = vunpack.c.l.b16 %v898
      %v972 = vunpack.c.l.b16 %v899
      %v973 = vunpack.c.l.b16 %v900
      %v974 = vunpack.c.l.b16 %v901
      %v975 = vunpack.c.l.b16 %v902
      %v976 = vunpack.c.l.b16 %v903
      %v977 = vunpack.c.l.b16 %v904
      %v978 = vunpack.c.l.b16 %v905
      %v979 = vunpack.c.l.b16 %v906
      %v980 = vunpack.c.l.b16 %v907
      %v981 = vunpack.c.l.b16 %v908
      %v982 = vunpack.c.l.b16 %v909
      %v983 = vunpack.c.l.b16 %v910
      %v984 = vunpack.c.l.b16 %v911
      %v985 = vunpack.c.l.b16 %v912
      %v986 = vunpack.c.l.b16 %v913
      %v987 = vunpack.c.l.b16 %v914
      %v988 = vunpack.c.l.b16 %v915
      %v989 = vunpack.c.l.b16 %v916
      %v990 = vunpack.c.l.b16 %v917
      %v991 = vunpack.c.l.b16 %v918
      %v992 = vunpack.c.l.b16 %v919
      %v993 = vunpack.c.l.b16 %v920
      %v994 = vunpack.c.l.b16 %v921
      %v995 = vunpack.c.l.b16 %v922
      %v996 = vunpack.c.l.b16 %v923
      %v997 = vunpack.c.l.b16 %v924
      %v998 = vunpack.c.l.b16 %v925
      %v999 = vunpack.c.l.b16 %v926
      %v1000 = vunpack.c.l.b16 %v927
      %v1001 = vunpack.c.l.b16 %v928
      %v1002 = vunpack.c.l.b16 %v929
      %v1003 = vpack.c.b16 %v972, %v971
      %v1004 = vpack.c.b16 %v974, %v973
      %v1005 = vpack.c.b16 %v976, %v975
      %v1006 = vpack.c.b16 %v978, %v977
      %v1007 = vpack.c.b16 %v980, %v979
      %v1008 = vpack.c.b16 %v982, %v981
      %v1009 = vpack.c.b16 %v984, %v983
      %v1010 = vpack.c.b16 %v986, %v985
      %v1011 = vpack.c.b16 %v988, %v987
      %v1012 = vpack.c.b16 %v990, %v989
      %v1013 = vpack.c.b16 %v992, %v991
      %v1014 = vpack.c.b16 %v994, %v993
      %v1015 = vpack.c.b16 %v996, %v995
      %v1016 = vpack.c.b16 %v998, %v997
      %v1017 = vpack.c.b16 %v1000, %v999
      %v1018 = vpack.c.b16 %v1002, %v1001
      %v1021 = vunpack.c.l.b16 %v930
      %v1022 = vunpack.c.l.b16 %v931
      %v1023 = vpack.c.b16 %v1022, %v1021
      %vm1024 = vcmask 72704
      %v1026 = vsel %vm1024, %v1003, 0
      %v1029 = vsel %vm1024, %v1004, 0
      %v1032 = vsel %vm1024, %v1005, 0
      %v1035 = vsel %vm1024, %v1006, 0
      %v1038 = vsel %vm1024, %v1007, 0
      %v1041 = vsel %vm1024, %v1008, 0
      %v1044 = vsel %vm1024, %v1009, 0
      %v1047 = vsel %vm1024, %v1010, 0
      %v1050 = vsel %vm1024, %v1011, 0
      %v1053 = vsel %vm1024, %v1012, 0
      %v1056 = vsel %vm1024, %v1013, 0
      %v1059 = vsel %vm1024, %v1014, 0
      %v1062 = vsel %vm1024, %v1015, 0
      %v1065 = vsel %vm1024, %v1016, 0
      %v1068 = vsel %vm1024, %v1017, 0
      %v1071 = vsel %vm1024, %v1018, 0
      %vm1073 = vcmask 1043456
      %vm1074 = vcmask 1044480
      %v1075 = vsel %vm1073, 4294967295, 65535
      %v1076 = vsel %vm1074, %v1075, 0
      %v1078 = vand.u32 %v1023, %v1076
      %1080 = vmatprep.subr.bf16.mxu0 0
      %1081 = vmatpush1.bf16.msra.mxu0 0
      %1082 = vmatprep.subr.bf16.mxu0 0
      %1083 = vmatpush1.bf16.msra.mxu0 0
      %1084 = vmatprep.subr.bf16.mxu0 0
      %1085 = vmatpush1.bf16.msra.mxu0 0
      %1086 = vmatprep.subr.bf16.mxu0 0
      %1087 = vmatpush1.bf16.msra.mxu0 0
      %1088 = vmatprep.subr.bf16.mxu0 0
      %1089 = vmatpush1.bf16.msra.mxu0 0
      %1090 = vmatprep.subr.bf16.mxu0 0
      %1091 = vmatpush1.bf16.msra.mxu0 0
      %1092 = vmatprep.subr.bf16.mxu0 0
      %1093 = vmatpush1.bf16.msra.mxu0 0
      %1094 = vmatprep.subr.bf16.mxu0 0
      %1095 = vmatpush1.bf16.msra.mxu0 %v1078
      %1096 = vmatprep.subr.bf16.mxu0 0
      %1097 = vmatpush2.bf16.msra.mxu0 0
      %1098 = vmatprep.subr.bf16.mxu0 0
      %1099 = vmatpush2.bf16.msra.mxu0 0
      %1100 = vmatprep.subr.bf16.mxu0 0
      %1101 = vmatpush2.bf16.msra.mxu0 0
      %1102 = vmatprep.subr.bf16.mxu0 0
      %1103 = vmatpush2.bf16.msra.mxu0 0
      %1104 = vmatprep.subr.bf16.mxu0 0
      %1105 = vmatpush2.bf16.msra.mxu0 0
      %1106 = vmatprep.subr.bf16.mxu0 0
      %1107 = vmatpush2.bf16.msra.mxu0 0
      %1108 = vmatprep.subr.bf16.mxu0 0
      %1109 = vmatpush2.bf16.msra.mxu0 0
      %1110 = vmatprep.subr.bf16.mxu0 0
      %1111 = vmatpush2.bf16.msra.mxu0 0
      %1112 = vmatprep.mubr.bf16.mxu0 0
      %1113 = vmatmul.mubr.bf16.gmra.mxu0 %v1026
      %v1114 = vpop.f32.mrf.mxu0
      %v1115 = vadd.f32 %v937, %v1114
      %v1116 = vpop.f32.mrf.mxu0
      %v1117 = vpop.f32.mrf.mxu0
      %v1118 = vadd.f32 %v937, %v1117
      %v1119 = vpop.f32.mrf.mxu0
      %1120 = vmatprep.mubr.bf16.mxu0 0
      %1121 = vmatmul.mubr.bf16.gmra.mxu0 %v1029
      %v1122 = vpop.f32.mrf.mxu0
      %v1123 = vadd.f32 %v937, %v1122
      %v1124 = vpop.f32.mrf.mxu0
      %v1125 = vpop.f32.mrf.mxu0
      %v1126 = vadd.f32 %v937, %v1125
      %v1127 = vpop.f32.mrf.mxu0
      %1128 = vmatprep.mubr.bf16.mxu0 0
      %1129 = vmatmul.mubr.bf16.gmra.mxu0 %v1032
      %v1130 = vpop.f32.mrf.mxu0
      %v1131 = vadd.f32 %v937, %v1130
      %v1132 = vpop.f32.mrf.mxu0
      %v1133 = vpop.f32.mrf.mxu0
      %v1134 = vadd.f32 %v937, %v1133
      %v1135 = vpop.f32.mrf.mxu0
      %1136 = vmatprep.mubr.bf16.mxu0 0
      %1137 = vmatmul.mubr.bf16.gmra.mxu0 %v1035
      %v1138 = vpop.f32.mrf.mxu0
      %v1139 = vadd.f32 %v937, %v1138
      %v1140 = vpop.f32.mrf.mxu0
      %v1141 = vpop.f32.mrf.mxu0
      %v1142 = vadd.f32 %v937, %v1141
      %v1143 = vpop.f32.mrf.mxu0
      %1144 = vmatprep.mubr.bf16.mxu0 0
      %1145 = vmatmul.mubr.bf16.gmra.mxu0 %v1038
      %v1146 = vpop.f32.mrf.mxu0
      %v1147 = vadd.f32 %v937, %v1146
      %v1148 = vpop.f32.mrf.mxu0
      %v1149 = vpop.f32.mrf.mxu0
      %v1150 = vadd.f32 %v937, %v1149
      %v1151 = vpop.f32.mrf.mxu0
      %1152 = vmatprep.mubr.bf16.mxu0 0
      %1153 = vmatmul.mubr.bf16.gmra.mxu0 %v1041
      %v1154 = vpop.f32.mrf.mxu0
      %v1155 = vadd.f32 %v937, %v1154
      %v1156 = vpop.f32.mrf.mxu0
      %v1157 = vpop.f32.mrf.mxu0
      %v1158 = vadd.f32 %v937, %v1157
      %v1159 = vpop.f32.mrf.mxu0
      %1160 = vmatprep.mubr.bf16.mxu0 0
      %1161 = vmatmul.mubr.bf16.gmra.mxu0 %v1044
      %v1162 = vpop.f32.mrf.mxu0
      %v1163 = vadd.f32 %v937, %v1162
      %v1164 = vpop.f32.mrf.mxu0
      %v1165 = vpop.f32.mrf.mxu0
      %v1166 = vadd.f32 %v937, %v1165
      %v1167 = vpop.f32.mrf.mxu0
      %1168 = vmatprep.mubr.bf16.mxu0 0
      %1169 = vmatmul.mubr.bf16.gmra.mxu0 %v1047
      %v1170 = vpop.f32.mrf.mxu0
      %v1171 = vadd.f32 %v937, %v1170
      %v1172 = vpop.f32.mrf.mxu0
      %v1173 = vpop.f32.mrf.mxu0
      %v1174 = vadd.f32 %v937, %v1173
      %v1175 = vpop.f32.mrf.mxu0
      %1176 = vmatprep.mubr.bf16.mxu0 0
      %1177 = vmatmul.mubr.bf16.gmra.mxu0 %v1050
      %v1178 = vpop.f32.mrf.mxu0
      %v1179 = vadd.f32 %v937, %v1178
      %v1180 = vpop.f32.mrf.mxu0
      %v1181 = vpop.f32.mrf.mxu0
      %v1182 = vadd.f32 %v937, %v1181
      %v1183 = vpop.f32.mrf.mxu0
      %1184 = vmatprep.mubr.bf16.mxu0 0
      %1185 = vmatmul.mubr.bf16.gmra.mxu0 %v1053
      %v1186 = vpop.f32.mrf.mxu0
      %v1187 = vadd.f32 %v937, %v1186
      %v1188 = vpop.f32.mrf.mxu0
      %v1189 = vpop.f32.mrf.mxu0
      %v1190 = vadd.f32 %v937, %v1189
      %v1191 = vpop.f32.mrf.mxu0
      %1192 = vmatprep.mubr.bf16.mxu0 0
      %1193 = vmatmul.mubr.bf16.gmra.mxu0 %v1056
      %v1194 = vpop.f32.mrf.mxu0
      %v1195 = vadd.f32 %v937, %v1194
      %v1196 = vpop.f32.mrf.mxu0
      %v1197 = vpop.f32.mrf.mxu0
      %v1198 = vadd.f32 %v937, %v1197
      %v1199 = vpop.f32.mrf.mxu0
      %1200 = vmatprep.mubr.bf16.mxu0 0
      %1201 = vmatmul.mubr.bf16.gmra.mxu0 %v1059
      %v1202 = vpop.f32.mrf.mxu0
      %v1203 = vadd.f32 %v937, %v1202
      %v1204 = vpop.f32.mrf.mxu0
      %v1205 = vpop.f32.mrf.mxu0
      %v1206 = vadd.f32 %v937, %v1205
      %v1207 = vpop.f32.mrf.mxu0
      %1208 = vmatprep.mubr.bf16.mxu0 0
      %1209 = vmatmul.mubr.bf16.gmra.mxu0 %v1062
      %v1210 = vpop.f32.mrf.mxu0
      %v1211 = vadd.f32 %v937, %v1210
      %v1212 = vpop.f32.mrf.mxu0
      %v1213 = vpop.f32.mrf.mxu0
      %v1214 = vadd.f32 %v937, %v1213
      %v1215 = vpop.f32.mrf.mxu0
      %1216 = vmatprep.mubr.bf16.mxu0 0
      %1217 = vmatmul.mubr.bf16.gmra.mxu0 %v1065
      %v1218 = vpop.f32.mrf.mxu0
      %v1219 = vadd.f32 %v937, %v1218
      %v1220 = vpop.f32.mrf.mxu0
      %v1221 = vpop.f32.mrf.mxu0
      %v1222 = vadd.f32 %v937, %v1221
      %v1223 = vpop.f32.mrf.mxu0
      %1224 = vmatprep.mubr.bf16.mxu0 0
      %1225 = vmatmul.mubr.bf16.gmra.mxu0 %v1068
      %v1226 = vpop.f32.mrf.mxu0
      %v1227 = vadd.f32 %v937, %v1226
      %v1228 = vpop.f32.mrf.mxu0
      %v1229 = vpop.f32.mrf.mxu0
      %v1230 = vadd.f32 %v937, %v1229
      %v1231 = vpop.f32.mrf.mxu0
      %1232 = vmatprep.mubr.bf16.mxu0 0
      %1233 = vmatmul.mubr.bf16.gmra.mxu0 %v1071
      %v1234 = vpop.f32.mrf.mxu0
      %v1235 = vadd.f32 %v937, %v1234
      %v1236 = vpop.f32.mrf.mxu0
      %v1237 = vpop.f32.mrf.mxu0
      %v1238 = vadd.f32 %v937, %v1237
      %v1239 = vpop.f32.mrf.mxu0
      %1240 = vdwg.mxu0
      %v1241 = vmax.f32 %v1115, 0.0
      %v1242 = vmax.f32 %v1118, 0.0
      %v1243 = vmax.f32 %v1123, 0.0
      %v1244 = vmax.f32 %v1126, 0.0
      %v1245 = vmax.f32 %v1131, 0.0
      %v1246 = vmax.f32 %v1134, 0.0
      %v1247 = vmax.f32 %v1139, 0.0
      %v1248 = vmax.f32 %v1142, 0.0
      %v1249 = vmax.f32 %v1147, 0.0
      %v1250 = vmax.f32 %v1150, 0.0
      %v1251 = vmax.f32 %v1155, 0.0
      %v1252 = vmax.f32 %v1158, 0.0
      %v1253 = vmax.f32 %v1163, 0.0
      %v1254 = vmax.f32 %v1166, 0.0
      %v1255 = vmax.f32 %v1171, 0.0
      %v1256 = vmax.f32 %v1174, 0.0
      %v1257 = vmax.f32 %v1179, 0.0
      %v1258 = vmax.f32 %v1182, 0.0
      %v1259 = vmax.f32 %v1187, 0.0
      %v1260 = vmax.f32 %v1190, 0.0
      %v1261 = vmax.f32 %v1195, 0.0
      %v1262 = vmax.f32 %v1198, 0.0
      %v1263 = vmax.f32 %v1203, 0.0
      %v1264 = vmax.f32 %v1206, 0.0
      %v1265 = vmax.f32 %v1211, 0.0
      %v1266 = vmax.f32 %v1214, 0.0
      %v1267 = vmax.f32 %v1219, 0.0
      %v1268 = vmax.f32 %v1222, 0.0
      %v1269 = vmax.f32 %v1227, 0.0
      %v1270 = vmax.f32 %v1230, 0.0
      %v1271 = vmax.f32 %v1235, 0.0
      %v1272 = vmax.f32 %v1238, 0.0
      %v1273 = vpack.c.bf16 %v867, %v866
      %v1274 = vpack.c.bf16 %v869, %v868
      %v1275 = vpack.c.bf16 %v871, %v870
      %v1276 = vpack.c.bf16 %v873, %v872
      %v1277 = vpack.c.bf16 %v875, %v874
      %v1278 = vpack.c.bf16 %v877, %v876
      %v1279 = vpack.c.bf16 %v879, %v878
      %v1280 = vpack.c.bf16 %v881, %v880
      %v1281 = vpack.c.bf16 %v883, %v882
      %v1282 = vpack.c.bf16 %v885, %v884
      %v1283 = vpack.c.bf16 %v887, %v886
      %v1284 = vpack.c.bf16 %v889, %v888
      %v1285 = vpack.c.bf16 %v891, %v890
      %v1286 = vpack.c.bf16 %v893, %v892
      %v1287 = vpack.c.bf16 %v895, %v894
      %v1288 = vpack.c.bf16 %v897, %v896
      %v1289 = vld [vmem:[%s6] sm:$0xff]
      %v1290 = vld [vmem:[%s6 + $0x8] sm:$0xff]
      %v1291 = vld [vmem:[%s6 + $0x10] sm:$0xff]
      %v1292 = vld [vmem:[%s6 + $0x18] sm:$0xff]
      %v1293 = vld [vmem:[%s6 + $0x20] sm:$0xff]
      %v1294 = vld [vmem:[%s6 + $0x28] sm:$0xff]
      %v1295 = vld [vmem:[%s6 + $0x30] sm:$0xff]
      %v1296 = vld [vmem:[%s6 + $0x38] sm:$0xff]
      %v1297 = vpack.c.bf16 %v1242, %v1241
      %v1298 = vpack.c.bf16 %v1244, %v1243
      %v1299 = vpack.c.bf16 %v1246, %v1245
      %v1300 = vpack.c.bf16 %v1248, %v1247
      %v1301 = vpack.c.bf16 %v1250, %v1249
      %v1302 = vpack.c.bf16 %v1252, %v1251
      %v1303 = vpack.c.bf16 %v1254, %v1253
      %v1304 = vpack.c.bf16 %v1256, %v1255
      %v1305 = vpack.c.bf16 %v1258, %v1257
      %v1306 = vpack.c.bf16 %v1260, %v1259
      %v1307 = vpack.c.bf16 %v1262, %v1261
      %v1308 = vpack.c.bf16 %v1264, %v1263
      %v1309 = vpack.c.bf16 %v1266, %v1265
      %v1310 = vpack.c.bf16 %v1268, %v1267
      %v1311 = vpack.c.bf16 %v1270, %v1269
      %v1312 = vpack.c.bf16 %v1272, %v1271
      %v1313 = vld [vmem:[%s7] sm:$0xff]
      %v1314 = vld [vmem:[%s7 + $0x8] sm:$0xff]
      %v1315 = vld [vmem:[%s7 + $0x10] sm:$0xff]
      %v1316 = vld [vmem:[%s7 + $0x18] sm:$0xff]
      %v1317 = vld [vmem:[%s7 + $0x20] sm:$0xff]
      %v1318 = vld [vmem:[%s7 + $0x28] sm:$0xff]
      %v1319 = vld [vmem:[%s7 + $0x30] sm:$0xff]
      %v1320 = vld [vmem:[%s7 + $0x38] sm:$0xff]
      %v1329 = vunpack.c.l.b16 %v1313
      %v1330 = vunpack.c.h.b16 %v1313
      %v1331 = vunpack.c.l.b16 %v1314
      %v1332 = vunpack.c.h.b16 %v1314
      %v1333 = vunpack.c.l.b16 %v1315
      %v1334 = vunpack.c.h.b16 %v1315
      %v1335 = vunpack.c.l.b16 %v1316
      %v1336 = vunpack.c.h.b16 %v1316
      %v1337 = vunpack.c.l.b16 %v1317
      %v1338 = vunpack.c.h.b16 %v1317
      %v1339 = vunpack.c.l.b16 %v1318
      %v1340 = vunpack.c.h.b16 %v1318
      %v1341 = vunpack.c.l.b16 %v1319
      %v1342 = vunpack.c.h.b16 %v1319
      %v1343 = vunpack.c.l.b16 %v1320
      %v1344 = vunpack.c.h.b16 %v1320
      %v1345 = vpack.c.b16 %v1331, %v1329
      %v1346 = vpack.c.b16 %v1332, %v1330
      %v1347 = vpack.c.b16 %v1335, %v1333
      %v1348 = vpack.c.b16 %v1336, %v1334
      %v1349 = vpack.c.b16 %v1339, %v1337
      %v1350 = vpack.c.b16 %v1340, %v1338
      %v1351 = vpack.c.b16 %v1343, %v1341
      %v1352 = vpack.c.b16 %v1344, %v1342
      %vm1361 = vcmask 523264
      %v1363 = vsel %vm1361, %v1297, 0
      %v1366 = vsel %vm1361, %v1298, 0
      %v1369 = vsel %vm1361, %v1299, 0
      %v1372 = vsel %vm1361, %v1300, 0
      %v1375 = vsel %vm1361, %v1301, 0
      %v1378 = vsel %vm1361, %v1302, 0
      %v1381 = vsel %vm1361, %v1303, 0
      %v1384 = vsel %vm1361, %v1304, 0
      %v1387 = vsel %vm1361, %v1305, 0
      %v1390 = vsel %vm1361, %v1306, 0
      %v1393 = vsel %vm1361, %v1307, 0
      %v1396 = vsel %vm1361, %v1308, 0
      %v1399 = vsel %vm1361, %v1309, 0
      %v1402 = vsel %vm1361, %v1310, 0
      %v1405 = vsel %vm1361, %v1311, 0
      %v1408 = vsel %vm1361, %v1312, 0
      %1410 = vmatprep.subr.bf16.mxu0 0
      %1411 = vmatpush1.bf16.msra.mxu0 0
      %1412 = vmatprep.subr.bf16.mxu0 0
      %1413 = vmatpush1.bf16.msra.mxu0 0
      %1414 = vmatprep.subr.bf16.mxu0 0
      %1415 = vmatpush1.bf16.msra.mxu0 0
      %1416 = vmatprep.subr.bf16.mxu0 0
      %1417 = vmatpush1.bf16.msra.mxu0 0
      %1418 = vmatprep.subr.bf16.mxu0 %v1352
      %1419 = vmatpush1.bf16.msra.mxu0 %v1351
      %1420 = vmatprep.subr.bf16.mxu0 %v1350
      %1421 = vmatpush1.bf16.msra.mxu0 %v1349
      %1422 = vmatprep.subr.bf16.mxu0 %v1348
      %1423 = vmatpush1.bf16.msra.mxu0 %v1347
      %1424 = vmatprep.subr.bf16.mxu0 %v1346
      %1425 = vmatpush1.bf16.msra.mxu0 %v1345
      %1426 = vmatprep.subr.bf16.mxu0 0
      %1427 = vmatpush2.bf16.msra.mxu0 0
      %1428 = vmatprep.subr.bf16.mxu0 0
      %1429 = vmatpush2.bf16.msra.mxu0 0
      %1430 = vmatprep.subr.bf16.mxu0 0
      %1431 = vmatpush2.bf16.msra.mxu0 0
      %1432 = vmatprep.subr.bf16.mxu0 0
      %1433 = vmatpush2.bf16.msra.mxu0 0
      %1434 = vmatprep.subr.bf16.mxu0 0
      %1435 = vmatpush2.bf16.msra.mxu0 0
      %1436 = vmatprep.subr.bf16.mxu0 0
      %1437 = vmatpush2.bf16.msra.mxu0 0
      %1438 = vmatprep.subr.bf16.mxu0 0
      %1439 = vmatpush2.bf16.msra.mxu0 0
      %1440 = vmatprep.subr.bf16.mxu0 0
      %1441 = vmatpush2.bf16.msra.mxu0 0
      %1442 = vmatprep.mubr.bf16.mxu0 0
      %1443 = vmatmul.mubr.bf16.gmra.mxu0 %v1363
      %v1444 = vpop.f32.mrf.mxu0
      %v1445 = vadd.f32 0.0, %v1444
      %v1446 = vpop.f32.mrf.mxu0
      %v1447 = vadd.f32 0.0, %v1446
      %v1448 = vpop.f32.mrf.mxu0
      %v1449 = vadd.f32 0.0, %v1448
      %v1450 = vpop.f32.mrf.mxu0
      %v1451 = vadd.f32 0.0, %v1450
      %1452 = vmatprep.mubr.bf16.mxu0 0
      %1453 = vmatmul.mubr.bf16.gmra.mxu0 %v1366
      %v1454 = vpop.f32.mrf.mxu0
      %v1455 = vadd.f32 0.0, %v1454
      %v1456 = vpop.f32.mrf.mxu0
      %v1457 = vadd.f32 0.0, %v1456
      %v1458 = vpop.f32.mrf.mxu0
      %v1459 = vadd.f32 0.0, %v1458
      %v1460 = vpop.f32.mrf.mxu0
      %v1461 = vadd.f32 0.0, %v1460
      %1462 = vmatprep.mubr.bf16.mxu0 0
      %1463 = vmatmul.mubr.bf16.gmra.mxu0 %v1369
      %v1464 = vpop.f32.mrf.mxu0
      %v1465 = vadd.f32 0.0, %v1464
      %v1466 = vpop.f32.mrf.mxu0
      %v1467 = vadd.f32 0.0, %v1466
      %v1468 = vpop.f32.mrf.mxu0
      %v1469 = vadd.f32 0.0, %v1468
      %v1470 = vpop.f32.mrf.mxu0
      %v1471 = vadd.f32 0.0, %v1470
      %1472 = vmatprep.mubr.bf16.mxu0 0
      %1473 = vmatmul.mubr.bf16.gmra.mxu0 %v1372
      %v1474 = vpop.f32.mrf.mxu0
      %v1475 = vadd.f32 0.0, %v1474
      %v1476 = vpop.f32.mrf.mxu0
      %v1477 = vadd.f32 0.0, %v1476
      %v1478 = vpop.f32.mrf.mxu0
      %v1479 = vadd.f32 0.0, %v1478
      %v1480 = vpop.f32.mrf.mxu0
      %v1481 = vadd.f32 0.0, %v1480
      %1482 = vmatprep.mubr.bf16.mxu0 0
      %1483 = vmatmul.mubr.bf16.gmra.mxu0 %v1375
      %v1484 = vpop.f32.mrf.mxu0
      %v1485 = vadd.f32 0.0, %v1484
      %v1486 = vpop.f32.mrf.mxu0
      %v1487 = vadd.f32 0.0, %v1486
      %v1488 = vpop.f32.mrf.mxu0
      %v1489 = vadd.f32 0.0, %v1488
      %v1490 = vpop.f32.mrf.mxu0
      %v1491 = vadd.f32 0.0, %v1490
      %1492 = vmatprep.mubr.bf16.mxu0 0
      %1493 = vmatmul.mubr.bf16.gmra.mxu0 %v1378
      %v1494 = vpop.f32.mrf.mxu0
      %v1495 = vadd.f32 0.0, %v1494
      %v1496 = vpop.f32.mrf.mxu0
      %v1497 = vadd.f32 0.0, %v1496
      %v1498 = vpop.f32.mrf.mxu0
      %v1499 = vadd.f32 0.0, %v1498
      %v1500 = vpop.f32.mrf.mxu0
      %v1501 = vadd.f32 0.0, %v1500
      %1502 = vmatprep.mubr.bf16.mxu0 0
      %1503 = vmatmul.mubr.bf16.gmra.mxu0 %v1381
      %v1504 = vpop.f32.mrf.mxu0
      %v1505 = vadd.f32 0.0, %v1504
      %v1506 = vpop.f32.mrf.mxu0
      %v1507 = vadd.f32 0.0, %v1506
      %v1508 = vpop.f32.mrf.mxu0
      %v1509 = vadd.f32 0.0, %v1508
      %v1510 = vpop.f32.mrf.mxu0
      %v1511 = vadd.f32 0.0, %v1510
      %1512 = vmatprep.mubr.bf16.mxu0 0
      %1513 = vmatmul.mubr.bf16.gmra.mxu0 %v1384
      %v1514 = vpop.f32.mrf.mxu0
      %v1515 = vadd.f32 0.0, %v1514
      %v1516 = vpop.f32.mrf.mxu0
      %v1517 = vadd.f32 0.0, %v1516
      %v1518 = vpop.f32.mrf.mxu0
      %v1519 = vadd.f32 0.0, %v1518
      %v1520 = vpop.f32.mrf.mxu0
      %v1521 = vadd.f32 0.0, %v1520
      %1522 = vmatprep.mubr.bf16.mxu0 0
      %1523 = vmatmul.mubr.bf16.gmra.mxu0 %v1387
      %v1524 = vpop.f32.mrf.mxu0
      %v1525 = vadd.f32 0.0, %v1524
      %v1526 = vpop.f32.mrf.mxu0
      %v1527 = vadd.f32 0.0, %v1526
      %v1528 = vpop.f32.mrf.mxu0
      %v1529 = vadd.f32 0.0, %v1528
      %v1530 = vpop.f32.mrf.mxu0
      %v1531 = vadd.f32 0.0, %v1530
      %1532 = vmatprep.mubr.bf16.mxu0 0
      %1533 = vmatmul.mubr.bf16.gmra.mxu0 %v1390
      %v1534 = vpop.f32.mrf.mxu0
      %v1535 = vadd.f32 0.0, %v1534
      %v1536 = vpop.f32.mrf.mxu0
      %v1537 = vadd.f32 0.0, %v1536
      %v1538 = vpop.f32.mrf.mxu0
      %v1539 = vadd.f32 0.0, %v1538
      %v1540 = vpop.f32.mrf.mxu0
      %v1541 = vadd.f32 0.0, %v1540
      %1542 = vmatprep.mubr.bf16.mxu0 0
      %1543 = vmatmul.mubr.bf16.gmra.mxu0 %v1393
      %v1544 = vpop.f32.mrf.mxu0
      %v1545 = vadd.f32 0.0, %v1544
      %v1546 = vpop.f32.mrf.mxu0
      %v1547 = vadd.f32 0.0, %v1546
      %v1548 = vpop.f32.mrf.mxu0
      %v1549 = vadd.f32 0.0, %v1548
      %v1550 = vpop.f32.mrf.mxu0
      %v1551 = vadd.f32 0.0, %v1550
      %1552 = vmatprep.mubr.bf16.mxu0 0
      %1553 = vmatmul.mubr.bf16.gmra.mxu0 %v1396
      %v1554 = vpop.f32.mrf.mxu0
      %v1555 = vadd.f32 0.0, %v1554
      %v1556 = vpop.f32.mrf.mxu0
      %v1557 = vadd.f32 0.0, %v1556
      %v1558 = vpop.f32.mrf.mxu0
      %v1559 = vadd.f32 0.0, %v1558
      %v1560 = vpop.f32.mrf.mxu0
      %v1561 = vadd.f32 0.0, %v1560
      %1562 = vmatprep.mubr.bf16.mxu0 0
      %1563 = vmatmul.mubr.bf16.gmra.mxu0 %v1399
      %v1564 = vpop.f32.mrf.mxu0
      %v1565 = vadd.f32 0.0, %v1564
      %v1566 = vpop.f32.mrf.mxu0
      %v1567 = vadd.f32 0.0, %v1566
      %v1568 = vpop.f32.mrf.mxu0
      %v1569 = vadd.f32 0.0, %v1568
      %v1570 = vpop.f32.mrf.mxu0
      %v1571 = vadd.f32 0.0, %v1570
      %1572 = vmatprep.mubr.bf16.mxu0 0
      %1573 = vmatmul.mubr.bf16.gmra.mxu0 %v1402
      %v1574 = vpop.f32.mrf.mxu0
      %v1575 = vadd.f32 0.0, %v1574
      %v1576 = vpop.f32.mrf.mxu0
      %v1577 = vadd.f32 0.0, %v1576
      %v1578 = vpop.f32.mrf.mxu0
      %v1579 = vadd.f32 0.0, %v1578
      %v1580 = vpop.f32.mrf.mxu0
      %v1581 = vadd.f32 0.0, %v1580
      %1582 = vmatprep.mubr.bf16.mxu0 0
      %1583 = vmatmul.mubr.bf16.gmra.mxu0 %v1405
      %v1584 = vpop.f32.mrf.mxu0
      %v1585 = vadd.f32 0.0, %v1584
      %v1586 = vpop.f32.mrf.mxu0
      %v1587 = vadd.f32 0.0, %v1586
      %v1588 = vpop.f32.mrf.mxu0
      %v1589 = vadd.f32 0.0, %v1588
      %v1590 = vpop.f32.mrf.mxu0
      %v1591 = vadd.f32 0.0, %v1590
      %1592 = vmatprep.mubr.bf16.mxu0 0
      %1593 = vmatmul.mubr.bf16.gmra.mxu0 %v1408
      %v1594 = vpop.f32.mrf.mxu0
      %v1595 = vadd.f32 0.0, %v1594
      %v1596 = vpop.f32.mrf.mxu0
      %v1597 = vadd.f32 0.0, %v1596
      %v1598 = vpop.f32.mrf.mxu0
      %v1599 = vadd.f32 0.0, %v1598
      %v1600 = vpop.f32.mrf.mxu0
      %v1601 = vadd.f32 0.0, %v1600
      %1602 = vdwg.mxu0
      %v1611 = vunpack.c.l.b16 %v1289
      %v1612 = vunpack.c.h.b16 %v1289
      %v1613 = vunpack.c.l.b16 %v1290
      %v1614 = vunpack.c.h.b16 %v1290
      %v1615 = vunpack.c.l.b16 %v1291
      %v1616 = vunpack.c.h.b16 %v1291
      %v1617 = vunpack.c.l.b16 %v1292
      %v1618 = vunpack.c.h.b16 %v1292
      %v1619 = vunpack.c.l.b16 %v1293
      %v1620 = vunpack.c.h.b16 %v1293
      %v1621 = vunpack.c.l.b16 %v1294
      %v1622 = vunpack.c.h.b16 %v1294
      %v1623 = vunpack.c.l.b16 %v1295
      %v1624 = vunpack.c.h.b16 %v1295
      %v1625 = vunpack.c.l.b16 %v1296
      %v1626 = vunpack.c.h.b16 %v1296
      %v1627 = vpack.c.b16 %v1613, %v1611
      %v1628 = vpack.c.b16 %v1614, %v1612
      %v1629 = vpack.c.b16 %v1617, %v1615
      %v1630 = vpack.c.b16 %v1618, %v1616
      %v1631 = vpack.c.b16 %v1621, %v1619
      %v1632 = vpack.c.b16 %v1622, %v1620
      %v1633 = vpack.c.b16 %v1625, %v1623
      %v1634 = vpack.c.b16 %v1626, %v1624
      %v1644 = vsel %vm1361, %v1273, 0
      %v1647 = vsel %vm1361, %v1274, 0
      %v1650 = vsel %vm1361, %v1275, 0
      %v1653 = vsel %vm1361, %v1276, 0
      %v1656 = vsel %vm1361, %v1277, 0
      %v1659 = vsel %vm1361, %v1278, 0
      %v1662 = vsel %vm1361, %v1279, 0
      %v1665 = vsel %vm1361, %v1280, 0
      %v1668 = vsel %vm1361, %v1281, 0
      %v1671 = vsel %vm1361, %v1282, 0
      %v1674 = vsel %vm1361, %v1283, 0
      %v1677 = vsel %vm1361, %v1284, 0
      %v1680 = vsel %vm1361, %v1285, 0
      %v1683 = vsel %vm1361, %v1286, 0
      %v1686 = vsel %vm1361, %v1287, 0
      %v1689 = vsel %vm1361, %v1288, 0
      %1691 = vmatprep.subr.bf16.mxu0 0
      %1692 = vmatpush1.bf16.msra.mxu0 0
      %1693 = vmatprep.subr.bf16.mxu0 0
      %1694 = vmatpush1.bf16.msra.mxu0 0
      %1695 = vmatprep.subr.bf16.mxu0 0
      %1696 = vmatpush1.bf16.msra.mxu0 0
      %1697 = vmatprep.subr.bf16.mxu0 0
      %1698 = vmatpush1.bf16.msra.mxu0 0
      %1699 = vmatprep.subr.bf16.mxu0 %v1634
      %1700 = vmatpush1.bf16.msra.mxu0 %v1633
      %1701 = vmatprep.subr.bf16.mxu0 %v1632
      %1702 = vmatpush1.bf16.msra.mxu0 %v1631
      %1703 = vmatprep.subr.bf16.mxu0 %v1630
      %1704 = vmatpush1.bf16.msra.mxu0 %v1629
      %1705 = vmatprep.subr.bf16.mxu0 %v1628
      %1706 = vmatpush1.bf16.msra.mxu0 %v1627
      %1707 = vmatprep.subr.bf16.mxu0 0
      %1708 = vmatpush2.bf16.msra.mxu0 0
      %1709 = vmatprep.subr.bf16.mxu0 0
      %1710 = vmatpush2.bf16.msra.mxu0 0
      %1711 = vmatprep.subr.bf16.mxu0 0
      %1712 = vmatpush2.bf16.msra.mxu0 0
      %1713 = vmatprep.subr.bf16.mxu0 0
      %1714 = vmatpush2.bf16.msra.mxu0 0
      %1715 = vmatprep.subr.bf16.mxu0 0
      %1716 = vmatpush2.bf16.msra.mxu0 0
      %1717 = vmatprep.subr.bf16.mxu0 0
      %1718 = vmatpush2.bf16.msra.mxu0 0
      %1719 = vmatprep.subr.bf16.mxu0 0
      %1720 = vmatpush2.bf16.msra.mxu0 0
      %1721 = vmatprep.subr.bf16.mxu0 0
      %1722 = vmatpush2.bf16.msra.mxu0 0
      %1723 = vmatprep.mubr.bf16.mxu0 0
      %1724 = vmatmul.mubr.bf16.gmra.mxu0 %v1644
      %v1725 = vpop.f32.mrf.mxu0
      %v1726 = vadd.f32 %v1445, %v1725
      %v1727 = vpop.f32.mrf.mxu0
      %v1728 = vadd.f32 %v1447, %v1727
      %v1729 = vpop.f32.mrf.mxu0
      %v1730 = vadd.f32 %v1449, %v1729
      %v1731 = vpop.f32.mrf.mxu0
      %v1732 = vadd.f32 %v1451, %v1731
      %1733 = vmatprep.mubr.bf16.mxu0 0
      %1734 = vmatmul.mubr.bf16.gmra.mxu0 %v1647
      %v1735 = vpop.f32.mrf.mxu0
      %v1736 = vadd.f32 %v1455, %v1735
      %v1737 = vpop.f32.mrf.mxu0
      %v1738 = vadd.f32 %v1457, %v1737
      %v1739 = vpop.f32.mrf.mxu0
      %v1740 = vadd.f32 %v1459, %v1739
      %v1741 = vpop.f32.mrf.mxu0
      %v1742 = vadd.f32 %v1461, %v1741
      %1743 = vmatprep.mubr.bf16.mxu0 0
      %1744 = vmatmul.mubr.bf16.gmra.mxu0 %v1650
      %v1745 = vpop.f32.mrf.mxu0
      %v1746 = vadd.f32 %v1465, %v1745
      %v1747 = vpop.f32.mrf.mxu0
      %v1748 = vadd.f32 %v1467, %v1747
      %v1749 = vpop.f32.mrf.mxu0
      %v1750 = vadd.f32 %v1469, %v1749
      %v1751 = vpop.f32.mrf.mxu0
      %v1752 = vadd.f32 %v1471, %v1751
      %1753 = vmatprep.mubr.bf16.mxu0 0
      %1754 = vmatmul.mubr.bf16.gmra.mxu0 %v1653
      %v1755 = vpop.f32.mrf.mxu0
      %v1756 = vadd.f32 %v1475, %v1755
      %v1757 = vpop.f32.mrf.mxu0
      %v1758 = vadd.f32 %v1477, %v1757
      %v1759 = vpop.f32.mrf.mxu0
      %v1760 = vadd.f32 %v1479, %v1759
      %v1761 = vpop.f32.mrf.mxu0
      %v1762 = vadd.f32 %v1481, %v1761
      %1763 = vmatprep.mubr.bf16.mxu0 0
      %1764 = vmatmul.mubr.bf16.gmra.mxu0 %v1656
      %v1765 = vpop.f32.mrf.mxu0
      %v1766 = vadd.f32 %v1485, %v1765
      %v1767 = vpop.f32.mrf.mxu0
      %v1768 = vadd.f32 %v1487, %v1767
      %v1769 = vpop.f32.mrf.mxu0
      %v1770 = vadd.f32 %v1489, %v1769
      %v1771 = vpop.f32.mrf.mxu0
      %v1772 = vadd.f32 %v1491, %v1771
      %1773 = vmatprep.mubr.bf16.mxu0 0
      %1774 = vmatmul.mubr.bf16.gmra.mxu0 %v1659
      %v1775 = vpop.f32.mrf.mxu0
      %v1776 = vadd.f32 %v1495, %v1775
      %v1777 = vpop.f32.mrf.mxu0
      %v1778 = vadd.f32 %v1497, %v1777
      %v1779 = vpop.f32.mrf.mxu0
      %v1780 = vadd.f32 %v1499, %v1779
      %v1781 = vpop.f32.mrf.mxu0
      %v1782 = vadd.f32 %v1501, %v1781
      %1783 = vmatprep.mubr.bf16.mxu0 0
      %1784 = vmatmul.mubr.bf16.gmra.mxu0 %v1662
      %v1785 = vpop.f32.mrf.mxu0
      %v1786 = vadd.f32 %v1505, %v1785
      %v1787 = vpop.f32.mrf.mxu0
      %v1788 = vadd.f32 %v1507, %v1787
      %v1789 = vpop.f32.mrf.mxu0
      %v1790 = vadd.f32 %v1509, %v1789
      %v1791 = vpop.f32.mrf.mxu0
      %v1792 = vadd.f32 %v1511, %v1791
      %1793 = vmatprep.mubr.bf16.mxu0 0
      %1794 = vmatmul.mubr.bf16.gmra.mxu0 %v1665
      %v1795 = vpop.f32.mrf.mxu0
      %v1796 = vadd.f32 %v1515, %v1795
      %v1797 = vpop.f32.mrf.mxu0
      %v1798 = vadd.f32 %v1517, %v1797
      %v1799 = vpop.f32.mrf.mxu0
      %v1800 = vadd.f32 %v1519, %v1799
      %v1801 = vpop.f32.mrf.mxu0
      %v1802 = vadd.f32 %v1521, %v1801
      %1803 = vmatprep.mubr.bf16.mxu0 0
      %1804 = vmatmul.mubr.bf16.gmra.mxu0 %v1668
      %v1805 = vpop.f32.mrf.mxu0
      %v1806 = vadd.f32 %v1525, %v1805
      %v1807 = vpop.f32.mrf.mxu0
      %v1808 = vadd.f32 %v1527, %v1807
      %v1809 = vpop.f32.mrf.mxu0
      %v1810 = vadd.f32 %v1529, %v1809
      %v1811 = vpop.f32.mrf.mxu0
      %v1812 = vadd.f32 %v1531, %v1811
      %1813 = vmatprep.mubr.bf16.mxu0 0
      %1814 = vmatmul.mubr.bf16.gmra.mxu0 %v1671
      %v1815 = vpop.f32.mrf.mxu0
      %v1816 = vadd.f32 %v1535, %v1815
      %v1817 = vpop.f32.mrf.mxu0
      %v1818 = vadd.f32 %v1537, %v1817
      %v1819 = vpop.f32.mrf.mxu0
      %v1820 = vadd.f32 %v1539, %v1819
      %v1821 = vpop.f32.mrf.mxu0
      %v1822 = vadd.f32 %v1541, %v1821
      %1823 = vmatprep.mubr.bf16.mxu0 0
      %1824 = vmatmul.mubr.bf16.gmra.mxu0 %v1674
      %v1825 = vpop.f32.mrf.mxu0
      %v1826 = vadd.f32 %v1545, %v1825
      %v1827 = vpop.f32.mrf.mxu0
      %v1828 = vadd.f32 %v1547, %v1827
      %v1829 = vpop.f32.mrf.mxu0
      %v1830 = vadd.f32 %v1549, %v1829
      %v1831 = vpop.f32.mrf.mxu0
      %v1832 = vadd.f32 %v1551, %v1831
      %1833 = vmatprep.mubr.bf16.mxu0 0
      %1834 = vmatmul.mubr.bf16.gmra.mxu0 %v1677
      %v1835 = vpop.f32.mrf.mxu0
      %v1836 = vadd.f32 %v1555, %v1835
      %v1837 = vpop.f32.mrf.mxu0
      %v1838 = vadd.f32 %v1557, %v1837
      %v1839 = vpop.f32.mrf.mxu0
      %v1840 = vadd.f32 %v1559, %v1839
      %v1841 = vpop.f32.mrf.mxu0
      %v1842 = vadd.f32 %v1561, %v1841
      %1843 = vmatprep.mubr.bf16.mxu0 0
      %1844 = vmatmul.mubr.bf16.gmra.mxu0 %v1680
      %v1845 = vpop.f32.mrf.mxu0
      %v1846 = vadd.f32 %v1565, %v1845
      %v1847 = vpop.f32.mrf.mxu0
      %v1848 = vadd.f32 %v1567, %v1847
      %v1849 = vpop.f32.mrf.mxu0
      %v1850 = vadd.f32 %v1569, %v1849
      %v1851 = vpop.f32.mrf.mxu0
      %v1852 = vadd.f32 %v1571, %v1851
      %1853 = vmatprep.mubr.bf16.mxu0 0
      %1854 = vmatmul.mubr.bf16.gmra.mxu0 %v1683
      %v1855 = vpop.f32.mrf.mxu0
      %v1856 = vadd.f32 %v1575, %v1855
      %v1857 = vpop.f32.mrf.mxu0
      %v1858 = vadd.f32 %v1577, %v1857
      %v1859 = vpop.f32.mrf.mxu0
      %v1860 = vadd.f32 %v1579, %v1859
      %v1861 = vpop.f32.mrf.mxu0
      %v1862 = vadd.f32 %v1581, %v1861
      %1863 = vmatprep.mubr.bf16.mxu0 0
      %1864 = vmatmul.mubr.bf16.gmra.mxu0 %v1686
      %v1865 = vpop.f32.mrf.mxu0
      %v1866 = vadd.f32 %v1585, %v1865
      %v1867 = vpop.f32.mrf.mxu0
      %v1868 = vadd.f32 %v1587, %v1867
      %v1869 = vpop.f32.mrf.mxu0
      %v1870 = vadd.f32 %v1589, %v1869
      %v1871 = vpop.f32.mrf.mxu0
      %v1872 = vadd.f32 %v1591, %v1871
      %1873 = vmatprep.mubr.bf16.mxu0 0
      %1874 = vmatmul.mubr.bf16.gmra.mxu0 %v1689
      %v1875 = vpop.f32.mrf.mxu0
      %v1876 = vadd.f32 %v1595, %v1875
      %v1877 = vpop.f32.mrf.mxu0
      %v1878 = vadd.f32 %v1597, %v1877
      %v1879 = vpop.f32.mrf.mxu0
      %v1880 = vadd.f32 %v1599, %v1879
      %v1881 = vpop.f32.mrf.mxu0
      %v1882 = vadd.f32 %v1601, %v1881
      %1883 = vdwg.mxu0
      %v1884 = vld [vmem:[%s8] sm:$0x3]
      %v1886 = vlaneseq
      %v1887 = vshrl.u32 %v1886, 7
      %v1888 = vsub.s32 0, %v1887
      %v1889 = vrot.slane %v1884, %v1888
      %v1890 = vlaneseq
      %v1891 = vshrl.u32 %v1890, 7
      %v1892 = vsub.s32 1, %v1891
      %v1893 = vrot.slane %v1884, %v1892
      %v1896 = vadd.f32 %v1726, %v1889
      %v1897 = vadd.f32 %v1728, %v1893
      %v1898 = vadd.f32 %v1730, %v1889
      %v1899 = vadd.f32 %v1732, %v1893
      %v1900 = vadd.f32 %v1736, %v1889
      %v1901 = vadd.f32 %v1738, %v1893
      %v1902 = vadd.f32 %v1740, %v1889
      %v1903 = vadd.f32 %v1742, %v1893
      %v1904 = vadd.f32 %v1746, %v1889
      %v1905 = vadd.f32 %v1748, %v1893
      %v1906 = vadd.f32 %v1750, %v1889
      %v1907 = vadd.f32 %v1752, %v1893
      %v1908 = vadd.f32 %v1756, %v1889
      %v1909 = vadd.f32 %v1758, %v1893
      %v1910 = vadd.f32 %v1760, %v1889
      %v1911 = vadd.f32 %v1762, %v1893
      %v1912 = vadd.f32 %v1766, %v1889
      %v1913 = vadd.f32 %v1768, %v1893
      %v1914 = vadd.f32 %v1770, %v1889
      %v1915 = vadd.f32 %v1772, %v1893
      %v1916 = vadd.f32 %v1776, %v1889
      %v1917 = vadd.f32 %v1778, %v1893
      %v1918 = vadd.f32 %v1780, %v1889
      %v1919 = vadd.f32 %v1782, %v1893
      %v1920 = vadd.f32 %v1786, %v1889
      %v1921 = vadd.f32 %v1788, %v1893
      %v1922 = vadd.f32 %v1790, %v1889
      %v1923 = vadd.f32 %v1792, %v1893
      %v1924 = vadd.f32 %v1796, %v1889
      %v1925 = vadd.f32 %v1798, %v1893
      %v1926 = vadd.f32 %v1800, %v1889
      %v1927 = vadd.f32 %v1802, %v1893
      %v1928 = vadd.f32 %v1806, %v1889
      %v1929 = vadd.f32 %v1808, %v1893
      %v1930 = vadd.f32 %v1810, %v1889
      %v1931 = vadd.f32 %v1812, %v1893
      %v1932 = vadd.f32 %v1816, %v1889
      %v1933 = vadd.f32 %v1818, %v1893
      %v1934 = vadd.f32 %v1820, %v1889
      %v1935 = vadd.f32 %v1822, %v1893
      %v1936 = vadd.f32 %v1826, %v1889
      %v1937 = vadd.f32 %v1828, %v1893
      %v1938 = vadd.f32 %v1830, %v1889
      %v1939 = vadd.f32 %v1832, %v1893
      %v1940 = vadd.f32 %v1836, %v1889
      %v1941 = vadd.f32 %v1838, %v1893
      %v1942 = vadd.f32 %v1840, %v1889
      %v1943 = vadd.f32 %v1842, %v1893
      %v1944 = vadd.f32 %v1846, %v1889
      %v1945 = vadd.f32 %v1848, %v1893
      %v1946 = vadd.f32 %v1850, %v1889
      %v1947 = vadd.f32 %v1852, %v1893
      %v1948 = vadd.f32 %v1856, %v1889
      %v1949 = vadd.f32 %v1858, %v1893
      %v1950 = vadd.f32 %v1860, %v1889
      %v1951 = vadd.f32 %v1862, %v1893
      %v1952 = vadd.f32 %v1866, %v1889
      %v1953 = vadd.f32 %v1868, %v1893
      %v1954 = vadd.f32 %v1870, %v1889
      %v1955 = vadd.f32 %v1872, %v1893
      %v1956 = vadd.f32 %v1876, %v1889
      %v1957 = vadd.f32 %v1878, %v1893
      %v1958 = vadd.f32 %v1880, %v1889
      %v1959 = vadd.f32 %v1882, %v1893
      %v1960 = vmax.f32 %v1896, 0.0
      %v1961 = vmax.f32 %v1897, 0.0
      %v1962 = vmax.f32 %v1898, 0.0
      %v1963 = vmax.f32 %v1899, 0.0
      %v1964 = vmax.f32 %v1900, 0.0
      %v1965 = vmax.f32 %v1901, 0.0
      %v1966 = vmax.f32 %v1902, 0.0
      %v1967 = vmax.f32 %v1903, 0.0
      %v1968 = vmax.f32 %v1904, 0.0
      %v1969 = vmax.f32 %v1905, 0.0
      %v1970 = vmax.f32 %v1906, 0.0
      %v1971 = vmax.f32 %v1907, 0.0
      %v1972 = vmax.f32 %v1908, 0.0
      %v1973 = vmax.f32 %v1909, 0.0
      %v1974 = vmax.f32 %v1910, 0.0
      %v1975 = vmax.f32 %v1911, 0.0
      %v1976 = vmax.f32 %v1912, 0.0
      %v1977 = vmax.f32 %v1913, 0.0
      %v1978 = vmax.f32 %v1914, 0.0
      %v1979 = vmax.f32 %v1915, 0.0
      %v1980 = vmax.f32 %v1916, 0.0
      %v1981 = vmax.f32 %v1917, 0.0
      %v1982 = vmax.f32 %v1918, 0.0
      %v1983 = vmax.f32 %v1919, 0.0
      %v1984 = vmax.f32 %v1920, 0.0
      %v1985 = vmax.f32 %v1921, 0.0
      %v1986 = vmax.f32 %v1922, 0.0
      %v1987 = vmax.f32 %v1923, 0.0
      %v1988 = vmax.f32 %v1924, 0.0
      %v1989 = vmax.f32 %v1925, 0.0
      %v1990 = vmax.f32 %v1926, 0.0
      %v1991 = vmax.f32 %v1927, 0.0
      %v1992 = vmax.f32 %v1928, 0.0
      %v1993 = vmax.f32 %v1929, 0.0
      %v1994 = vmax.f32 %v1930, 0.0
      %v1995 = vmax.f32 %v1931, 0.0
      %v1996 = vmax.f32 %v1932, 0.0
      %v1997 = vmax.f32 %v1933, 0.0
      %v1998 = vmax.f32 %v1934, 0.0
      %v1999 = vmax.f32 %v1935, 0.0
      %v2000 = vmax.f32 %v1936, 0.0
      %v2001 = vmax.f32 %v1937, 0.0
      %v2002 = vmax.f32 %v1938, 0.0
      %v2003 = vmax.f32 %v1939, 0.0
      %v2004 = vmax.f32 %v1940, 0.0
      %v2005 = vmax.f32 %v1941, 0.0
      %v2006 = vmax.f32 %v1942, 0.0
      %v2007 = vmax.f32 %v1943, 0.0
      %v2008 = vmax.f32 %v1944, 0.0
      %v2009 = vmax.f32 %v1945, 0.0
      %v2010 = vmax.f32 %v1946, 0.0
      %v2011 = vmax.f32 %v1947, 0.0
      %v2012 = vmax.f32 %v1948, 0.0
      %v2013 = vmax.f32 %v1949, 0.0
      %v2014 = vmax.f32 %v1950, 0.0
      %v2015 = vmax.f32 %v1951, 0.0
      %v2016 = vmax.f32 %v1952, 0.0
      %v2017 = vmax.f32 %v1953, 0.0
      %v2018 = vmax.f32 %v1954, 0.0
      %v2019 = vmax.f32 %v1955, 0.0
      %v2020 = vmax.f32 %v1956, 0.0
      %v2021 = vmax.f32 %v1957, 0.0
      %v2022 = vmax.f32 %v1958, 0.0
      %v2023 = vmax.f32 %v1959, 0.0
      %v2024 = vpack.c.bf16 %v1962, %v1960
      %v2025 = vpack.c.bf16 %v1963, %v1961
      %v2026 = vpack.c.bf16 %v1966, %v1964
      %v2027 = vpack.c.bf16 %v1967, %v1965
      %v2028 = vpack.c.bf16 %v1970, %v1968
      %v2029 = vpack.c.bf16 %v1971, %v1969
      %v2030 = vpack.c.bf16 %v1974, %v1972
      %v2031 = vpack.c.bf16 %v1975, %v1973
      %v2032 = vpack.c.bf16 %v1978, %v1976
      %v2033 = vpack.c.bf16 %v1979, %v1977
      %v2034 = vpack.c.bf16 %v1982, %v1980
      %v2035 = vpack.c.bf16 %v1983, %v1981
      %v2036 = vpack.c.bf16 %v1986, %v1984
      %v2037 = vpack.c.bf16 %v1987, %v1985
      %v2038 = vpack.c.bf16 %v1990, %v1988
      %v2039 = vpack.c.bf16 %v1991, %v1989
      %v2040 = vpack.c.bf16 %v1994, %v1992
      %v2041 = vpack.c.bf16 %v1995, %v1993
      %v2042 = vpack.c.bf16 %v1998, %v1996
      %v2043 = vpack.c.bf16 %v1999, %v1997
      %v2044 = vpack.c.bf16 %v2002, %v2000
      %v2045 = vpack.c.bf16 %v2003, %v2001
      %v2046 = vpack.c.bf16 %v2006, %v2004
      %v2047 = vpack.c.bf16 %v2007, %v2005
      %v2048 = vpack.c.bf16 %v2010, %v2008
      %v2049 = vpack.c.bf16 %v2011, %v2009
      %v2050 = vpack.c.bf16 %v2014, %v2012
      %v2051 = vpack.c.bf16 %v2015, %v2013
      %v2052 = vpack.c.bf16 %v2018, %v2016
      %v2053 = vpack.c.bf16 %v2019, %v2017
      %v2054 = vpack.c.bf16 %v2022, %v2020
      %v2055 = vpack.c.bf16 %v2023, %v2021
      %v2056 = vld [vmem:[%s9] sm:$0xff]
      %v2057 = vld [vmem:[%s9 + $0x8] sm:$0xff]
      %v2058 = vld [vmem:[%s9 + $0x10] sm:$0xff]
      %v2059 = vld [vmem:[%s9 + $0x18] sm:$0xff]
      %v2060 = vld [vmem:[%s9 + $0x20] sm:$0xff]
      %v2061 = vld [vmem:[%s9 + $0x28] sm:$0xff]
      %v2062 = vld [vmem:[%s9 + $0x30] sm:$0xff]
      %v2063 = vld [vmem:[%s9 + $0x38] sm:$0xff]
      %v2064 = vld [vmem:[%s9 + $0x40] sm:$0xff]
      %v2065 = vld [vmem:[%s9 + $0x48] sm:$0xff]
      %v2066 = vld [vmem:[%s9 + $0x50] sm:$0xff]
      %v2067 = vld [vmem:[%s9 + $0x58] sm:$0xff]
      %v2068 = vld [vmem:[%s9 + $0x60] sm:$0xff]
      %v2069 = vld [vmem:[%s9 + $0x68] sm:$0xff]
      %v2070 = vld [vmem:[%s9 + $0x70] sm:$0xff]
      %v2071 = vld [vmem:[%s9 + $0x78] sm:$0xff]
      %v2072 = vld [vmem:[%s9 + $0x80] sm:$0xff]
      %v2073 = vld [vmem:[%s9 + $0x88] sm:$0xff]
      %v2074 = vld [vmem:[%s9 + $0x90] sm:$0xff]
      %v2075 = vld [vmem:[%s9 + $0x98] sm:$0xff]
      %v2076 = vld [vmem:[%s9 + $0xa0] sm:$0xff]
      %v2077 = vld [vmem:[%s9 + $0xa8] sm:$0xff]
      %v2078 = vld [vmem:[%s9 + $0xb0] sm:$0xff]
      %v2079 = vld [vmem:[%s9 + $0xb8] sm:$0xff]
      %v2080 = vld [vmem:[%s9 + $0xc0] sm:$0xff]
      %v2081 = vld [vmem:[%s9 + $0xc8] sm:$0xff]
      %v2082 = vld [vmem:[%s9 + $0xd0] sm:$0xff]
      %v2083 = vld [vmem:[%s9 + $0xd8] sm:$0xff]
      %v2084 = vld [vmem:[%s9 + $0xe0] sm:$0xff]
      %v2085 = vld [vmem:[%s9 + $0xe8] sm:$0xff]
      %v2086 = vld [vmem:[%s9 + $0xf0] sm:$0xff]
      %v2087 = vld [vmem:[%s9 + $0xf8] sm:$0xff]
      %v2088 = vld [vmem:[%s9 + $0x100] sm:$0xff]
      %v2089 = vld [vmem:[%s9 + $0x108] sm:$0xff]
      %v2090 = vld [vmem:[%s9 + $0x110] sm:$0xff]
      %v2091 = vld [vmem:[%s9 + $0x118] sm:$0xff]
      %v2092 = vld [vmem:[%s9 + $0x120] sm:$0xff]
      %v2093 = vld [vmem:[%s9 + $0x128] sm:$0xff]
      %v2094 = vld [vmem:[%s9 + $0x130] sm:$0xff]
      %v2095 = vld [vmem:[%s9 + $0x138] sm:$0xff]
      %v2096 = vld [vmem:[%s9 + $0x140] sm:$0xff]
      %v2097 = vld [vmem:[%s9 + $0x148] sm:$0xff]
      %v2098 = vld [vmem:[%s9 + $0x150] sm:$0xff]
      %v2099 = vld [vmem:[%s9 + $0x158] sm:$0xff]
      %v2100 = vld [vmem:[%s9 + $0x160] sm:$0xff]
      %v2101 = vld [vmem:[%s9 + $0x168] sm:$0xff]
      %v2102 = vld [vmem:[%s9 + $0x170] sm:$0xff]
      %v2103 = vld [vmem:[%s9 + $0x178] sm:$0xff]
      %v2104 = vld [vmem:[%s9 + $0x180] sm:$0xff]
      %v2105 = vld [vmem:[%s9 + $0x188] sm:$0xff]
      %v2106 = vld [vmem:[%s9 + $0x190] sm:$0xff]
      %v2107 = vld [vmem:[%s9 + $0x198] sm:$0xff]
      %v2108 = vld [vmem:[%s9 + $0x1a0] sm:$0xff]
      %v2109 = vld [vmem:[%s9 + $0x1a8] sm:$0xff]
      %v2110 = vld [vmem:[%s9 + $0x1b0] sm:$0xff]
      %v2111 = vld [vmem:[%s9 + $0x1b8] sm:$0xff]
      %v2112 = vld [vmem:[%s9 + $0x1c0] sm:$0xff]
      %v2113 = vld [vmem:[%s9 + $0x1c8] sm:$0xff]
      %v2114 = vld [vmem:[%s9 + $0x1d0] sm:$0xff]
      %v2115 = vld [vmem:[%s9 + $0x1d8] sm:$0xff]
      %v2116 = vld [vmem:[%s9 + $0x1e0] sm:$0xff]
      %v2117 = vld [vmem:[%s9 + $0x1e8] sm:$0xff]
      %v2118 = vld [vmem:[%s9 + $0x1f0] sm:$0xff]
      %v2119 = vld [vmem:[%s9 + $0x1f8] sm:$0xff]
      %v2120 = vld [vmem:[%s10] sm:$0xf]
      %v2122 = vlaneseq
      %v2123 = vshrl.u32 %v2122, 7
      %v2124 = vsub.s32 0, %v2123
      %v2125 = vrot.slane %v2120, %v2124
      %v2126 = vlaneseq
      %v2127 = vshrl.u32 %v2126, 7
      %v2128 = vsub.s32 1, %v2127
      %v2129 = vrot.slane %v2120, %v2128
      %v2130 = vlaneseq
      %v2131 = vshrl.u32 %v2130, 7
      %v2132 = vsub.s32 2, %v2131
      %v2133 = vrot.slane %v2120, %v2132
      %v2134 = vlaneseq
      %v2135 = vshrl.u32 %v2134, 7
      %v2136 = vsub.s32 3, %v2135
      %v2137 = vrot.slane %v2120, %v2136
      %v2206 = vunpack.c.l.b16 %v2056
      %v2207 = vunpack.c.h.b16 %v2056
      %v2208 = vunpack.c.l.b16 %v2057
      %v2209 = vunpack.c.h.b16 %v2057
      %v2210 = vunpack.c.l.b16 %v2058
      %v2211 = vunpack.c.h.b16 %v2058
      %v2212 = vunpack.c.l.b16 %v2059
      %v2213 = vunpack.c.h.b16 %v2059
      %v2214 = vunpack.c.l.b16 %v2060
      %v2215 = vunpack.c.h.b16 %v2060
      %v2216 = vunpack.c.l.b16 %v2061
      %v2217 = vunpack.c.h.b16 %v2061
      %v2218 = vunpack.c.l.b16 %v2062
      %v2219 = vunpack.c.h.b16 %v2062
      %v2220 = vunpack.c.l.b16 %v2063
      %v2221 = vunpack.c.h.b16 %v2063
      %v2222 = vunpack.c.l.b16 %v2064
      %v2223 = vunpack.c.h.b16 %v2064
      %v2224 = vunpack.c.l.b16 %v2065
      %v2225 = vunpack.c.h.b16 %v2065
      %v2226 = vunpack.c.l.b16 %v2066
      %v2227 = vunpack.c.h.b16 %v2066
      %v2228 = vunpack.c.l.b16 %v2067
      %v2229 = vunpack.c.h.b16 %v2067
      %v2230 = vunpack.c.l.b16 %v2068
      %v2231 = vunpack.c.h.b16 %v2068
      %v2232 = vunpack.c.l.b16 %v2069
      %v2233 = vunpack.c.h.b16 %v2069
      %v2234 = vunpack.c.l.b16 %v2070
      %v2235 = vunpack.c.h.b16 %v2070
      %v2236 = vunpack.c.l.b16 %v2071
      %v2237 = vunpack.c.h.b16 %v2071
      %v2238 = vunpack.c.l.b16 %v2072
      %v2239 = vunpack.c.h.b16 %v2072
      %v2240 = vunpack.c.l.b16 %v2073
      %v2241 = vunpack.c.h.b16 %v2073
      %v2242 = vunpack.c.l.b16 %v2074
      %v2243 = vunpack.c.h.b16 %v2074
      %v2244 = vunpack.c.l.b16 %v2075
      %v2245 = vunpack.c.h.b16 %v2075
      %v2246 = vunpack.c.l.b16 %v2076
      %v2247 = vunpack.c.h.b16 %v2076
      %v2248 = vunpack.c.l.b16 %v2077
      %v2249 = vunpack.c.h.b16 %v2077
      %v2250 = vunpack.c.l.b16 %v2078
      %v2251 = vunpack.c.h.b16 %v2078
      %v2252 = vunpack.c.l.b16 %v2079
      %v2253 = vunpack.c.h.b16 %v2079
      %v2254 = vunpack.c.l.b16 %v2080
      %v2255 = vunpack.c.h.b16 %v2080
      %v2256 = vunpack.c.l.b16 %v2081
      %v2257 = vunpack.c.h.b16 %v2081
      %v2258 = vunpack.c.l.b16 %v2082
      %v2259 = vunpack.c.h.b16 %v2082
      %v2260 = vunpack.c.l.b16 %v2083
      %v2261 = vunpack.c.h.b16 %v2083
      %v2262 = vunpack.c.l.b16 %v2084
      %v2263 = vunpack.c.h.b16 %v2084
      %v2264 = vunpack.c.l.b16 %v2085
      %v2265 = vunpack.c.h.b16 %v2085
      %v2266 = vunpack.c.l.b16 %v2086
      %v2267 = vunpack.c.h.b16 %v2086
      %v2268 = vunpack.c.l.b16 %v2087
      %v2269 = vunpack.c.h.b16 %v2087
      %v2270 = vunpack.c.l.b16 %v2088
      %v2271 = vunpack.c.h.b16 %v2088
      %v2272 = vunpack.c.l.b16 %v2089
      %v2273 = vunpack.c.h.b16 %v2089
      %v2274 = vunpack.c.l.b16 %v2090
      %v2275 = vunpack.c.h.b16 %v2090
      %v2276 = vunpack.c.l.b16 %v2091
      %v2277 = vunpack.c.h.b16 %v2091
      %v2278 = vunpack.c.l.b16 %v2092
      %v2279 = vunpack.c.h.b16 %v2092
      %v2280 = vunpack.c.l.b16 %v2093
      %v2281 = vunpack.c.h.b16 %v2093
      %v2282 = vunpack.c.l.b16 %v2094
      %v2283 = vunpack.c.h.b16 %v2094
      %v2284 = vunpack.c.l.b16 %v2095
      %v2285 = vunpack.c.h.b16 %v2095
      %v2286 = vunpack.c.l.b16 %v2096
      %v2287 = vunpack.c.h.b16 %v2096
      %v2288 = vunpack.c.l.b16 %v2097
      %v2289 = vunpack.c.h.b16 %v2097
      %v2290 = vunpack.c.l.b16 %v2098
      %v2291 = vunpack.c.h.b16 %v2098
      %v2292 = vunpack.c.l.b16 %v2099
      %v2293 = vunpack.c.h.b16 %v2099
      %v2294 = vunpack.c.l.b16 %v2100
      %v2295 = vunpack.c.h.b16 %v2100
      %v2296 = vunpack.c.l.b16 %v2101
      %v2297 = vunpack.c.h.b16 %v2101
      %v2298 = vunpack.c.l.b16 %v2102
      %v2299 = vunpack.c.h.b16 %v2102
      %v2300 = vunpack.c.l.b16 %v2103
      %v2301 = vunpack.c.h.b16 %v2103
      %v2302 = vunpack.c.l.b16 %v2104
      %v2303 = vunpack.c.h.b16 %v2104
      %v2304 = vunpack.c.l.b16 %v2105
      %v2305 = vunpack.c.h.b16 %v2105
      %v2306 = vunpack.c.l.b16 %v2106
      %v2307 = vunpack.c.h.b16 %v2106
      %v2308 = vunpack.c.l.b16 %v2107
      %v2309 = vunpack.c.h.b16 %v2107
      %v2310 = vunpack.c.l.b16 %v2108
      %v2311 = vunpack.c.h.b16 %v2108
      %v2312 = vunpack.c.l.b16 %v2109
      %v2313 = vunpack.c.h.b16 %v2109
      %v2314 = vunpack.c.l.b16 %v2110
      %v2315 = vunpack.c.h.b16 %v2110
      %v2316 = vunpack.c.l.b16 %v2111
      %v2317 = vunpack.c.h.b16 %v2111
      %v2318 = vunpack.c.l.b16 %v2112
      %v2319 = vunpack.c.h.b16 %v2112
      %v2320 = vunpack.c.l.b16 %v2113
      %v2321 = vunpack.c.h.b16 %v2113
      %v2322 = vunpack.c.l.b16 %v2114
      %v2323 = vunpack.c.h.b16 %v2114
      %v2324 = vunpack.c.l.b16 %v2115
      %v2325 = vunpack.c.h.b16 %v2115
      %v2326 = vunpack.c.l.b16 %v2116
      %v2327 = vunpack.c.h.b16 %v2116
      %v2328 = vunpack.c.l.b16 %v2117
      %v2329 = vunpack.c.h.b16 %v2117
      %v2330 = vunpack.c.l.b16 %v2118
      %v2331 = vunpack.c.h.b16 %v2118
      %v2332 = vunpack.c.l.b16 %v2119
      %v2333 = vunpack.c.h.b16 %v2119
      %v2334 = vpack.c.b16 %v2210, %v2206
      %v2335 = vpack.c.b16 %v2211, %v2207
      %v2336 = vpack.c.b16 %v2212, %v2208
      %v2337 = vpack.c.b16 %v2213, %v2209
      %v2338 = vpack.c.b16 %v2218, %v2214
      %v2339 = vpack.c.b16 %v2219, %v2215
      %v2340 = vpack.c.b16 %v2220, %v2216
      %v2341 = vpack.c.b16 %v2221, %v2217
      %v2342 = vpack.c.b16 %v2226, %v2222
      %v2343 = vpack.c.b16 %v2227, %v2223
      %v2344 = vpack.c.b16 %v2228, %v2224
      %v2345 = vpack.c.b16 %v2229, %v2225
      %v2346 = vpack.c.b16 %v2234, %v2230
      %v2347 = vpack.c.b16 %v2235, %v2231
      %v2348 = vpack.c.b16 %v2236, %v2232
      %v2349 = vpack.c.b16 %v2237, %v2233
      %v2350 = vpack.c.b16 %v2242, %v2238
      %v2351 = vpack.c.b16 %v2243, %v2239
      %v2352 = vpack.c.b16 %v2244, %v2240
      %v2353 = vpack.c.b16 %v2245, %v2241
      %v2354 = vpack.c.b16 %v2250, %v2246
      %v2355 = vpack.c.b16 %v2251, %v2247
      %v2356 = vpack.c.b16 %v2252, %v2248
      %v2357 = vpack.c.b16 %v2253, %v2249
      %v2358 = vpack.c.b16 %v2258, %v2254
      %v2359 = vpack.c.b16 %v2259, %v2255
      %v2360 = vpack.c.b16 %v2260, %v2256
      %v2361 = vpack.c.b16 %v2261, %v2257
      %v2362 = vpack.c.b16 %v2266, %v2262
      %v2363 = vpack.c.b16 %v2267, %v2263
      %v2364 = vpack.c.b16 %v2268, %v2264
      %v2365 = vpack.c.b16 %v2269, %v2265
      %v2366 = vpack.c.b16 %v2274, %v2270
      %v2367 = vpack.c.b16 %v2275, %v2271
      %v2368 = vpack.c.b16 %v2276, %v2272
      %v2369 = vpack.c.b16 %v2277, %v2273
      %v2370 = vpack.c.b16 %v2282, %v2278
      %v2371 = vpack.c.b16 %v2283, %v2279
      %v2372 = vpack.c.b16 %v2284, %v2280
      %v2373 = vpack.c.b16 %v2285, %v2281
      %v2374 = vpack.c.b16 %v2290, %v2286
      %v2375 = vpack.c.b16 %v2291, %v2287
      %v2376 = vpack.c.b16 %v2292, %v2288
      %v2377 = vpack.c.b16 %v2293, %v2289
      %v2378 = vpack.c.b16 %v2298, %v2294
      %v2379 = vpack.c.b16 %v2299, %v2295
      %v2380 = vpack.c.b16 %v2300, %v2296
      %v2381 = vpack.c.b16 %v2301, %v2297
      %v2382 = vpack.c.b16 %v2306, %v2302
      %v2383 = vpack.c.b16 %v2307, %v2303
      %v2384 = vpack.c.b16 %v2308, %v2304
      %v2385 = vpack.c.b16 %v2309, %v2305
      %v2386 = vpack.c.b16 %v2314, %v2310
      %v2387 = vpack.c.b16 %v2315, %v2311
      %v2388 = vpack.c.b16 %v2316, %v2312
      %v2389 = vpack.c.b16 %v2317, %v2313
      %v2390 = vpack.c.b16 %v2322, %v2318
      %v2391 = vpack.c.b16 %v2323, %v2319
      %v2392 = vpack.c.b16 %v2324, %v2320
      %v2393 = vpack.c.b16 %v2325, %v2321
      %v2394 = vpack.c.b16 %v2330, %v2326
      %v2395 = vpack.c.b16 %v2331, %v2327
      %v2396 = vpack.c.b16 %v2332, %v2328
      %v2397 = vpack.c.b16 %v2333, %v2329
      %2462 = vmatprep.subr.bf16.mxu0 %v2363
      %2463 = vmatpush1.bf16.msra.mxu0 %v2362
      %2464 = vmatprep.subr.bf16.mxu0 %v2359
      %2465 = vmatpush1.bf16.msra.mxu0 %v2358
      %2466 = vmatprep.subr.bf16.mxu0 %v2355
      %2467 = vmatpush1.bf16.msra.mxu0 %v2354
      %2468 = vmatprep.subr.bf16.mxu0 %v2351
      %2469 = vmatpush1.bf16.msra.mxu0 %v2350
      %2470 = vmatprep.subr.bf16.mxu0 %v2347
      %2471 = vmatpush1.bf16.msra.mxu0 %v2346
      %2472 = vmatprep.subr.bf16.mxu0 %v2343
      %2473 = vmatpush1.bf16.msra.mxu0 %v2342
      %2474 = vmatprep.subr.bf16.mxu0 %v2339
      %2475 = vmatpush1.bf16.msra.mxu0 %v2338
      %2476 = vmatprep.subr.bf16.mxu0 %v2335
      %2477 = vmatpush1.bf16.msra.mxu0 %v2334
      %2478 = vmatprep.subr.bf16.mxu0 %v2395
      %2479 = vmatpush2.bf16.msra.mxu0 %v2394
      %2480 = vmatprep.subr.bf16.mxu0 %v2391
      %2481 = vmatpush2.bf16.msra.mxu0 %v2390
      %2482 = vmatprep.subr.bf16.mxu0 %v2387
      %2483 = vmatpush2.bf16.msra.mxu0 %v2386
      %2484 = vmatprep.subr.bf16.mxu0 %v2383
      %2485 = vmatpush2.bf16.msra.mxu0 %v2382
      %2486 = vmatprep.subr.bf16.mxu0 %v2379
      %2487 = vmatpush2.bf16.msra.mxu0 %v2378
      %2488 = vmatprep.subr.bf16.mxu0 %v2375
      %2489 = vmatpush2.bf16.msra.mxu0 %v2374
      %2490 = vmatprep.subr.bf16.mxu0 %v2371
      %2491 = vmatpush2.bf16.msra.mxu0 %v2370
      %2492 = vmatprep.subr.bf16.mxu0 %v2367
      %2493 = vmatpush2.bf16.msra.mxu0 %v2366
      %2494 = vmatprep.mubr.bf16.mxu0 %v2025
      %2495 = vmatmul.mubr.bf16.gmra.mxu0 %v2024
      %v2496 = vpop.f32.mrf.mxu0
      %v2497 = vadd.f32 %v2125, %v2496
      %v2498 = vpop.f32.mrf.mxu0
      %v2499 = vadd.f32 %v2129, %v2498
      %v2500 = vpop.f32.mrf.mxu0
      %v2501 = vadd.f32 %v2125, %v2500
      %v2502 = vpop.f32.mrf.mxu0
      %v2503 = vadd.f32 %v2129, %v2502
      %2504 = vmatprep.mubr.bf16.mxu0 %v2027
      %2505 = vmatmul.mubr.bf16.gmra.mxu0 %v2026
      %v2506 = vpop.f32.mrf.mxu0
      %v2507 = vadd.f32 %v2125, %v2506
      %v2508 = vpop.f32.mrf.mxu0
      %v2509 = vadd.f32 %v2129, %v2508
      %v2510 = vpop.f32.mrf.mxu0
      %v2511 = vadd.f32 %v2125, %v2510
      %v2512 = vpop.f32.mrf.mxu0
      %v2513 = vadd.f32 %v2129, %v2512
      %2514 = vmatprep.mubr.bf16.mxu0 %v2029
      %2515 = vmatmul.mubr.bf16.gmra.mxu0 %v2028
      %v2516 = vpop.f32.mrf.mxu0
      %v2517 = vadd.f32 %v2125, %v2516
      %v2518 = vpop.f32.mrf.mxu0
      %v2519 = vadd.f32 %v2129, %v2518
      %v2520 = vpop.f32.mrf.mxu0
      %v2521 = vadd.f32 %v2125, %v2520
      %v2522 = vpop.f32.mrf.mxu0
      %v2523 = vadd.f32 %v2129, %v2522
      %2524 = vmatprep.mubr.bf16.mxu0 %v2031
      %2525 = vmatmul.mubr.bf16.gmra.mxu0 %v2030
      %v2526 = vpop.f32.mrf.mxu0
      %v2527 = vadd.f32 %v2125, %v2526
      %v2528 = vpop.f32.mrf.mxu0
      %v2529 = vadd.f32 %v2129, %v2528
      %v2530 = vpop.f32.mrf.mxu0
      %v2531 = vadd.f32 %v2125, %v2530
      %v2532 = vpop.f32.mrf.mxu0
      %v2533 = vadd.f32 %v2129, %v2532
      %2534 = vmatprep.mubr.bf16.mxu0 %v2033
      %2535 = vmatmul.mubr.bf16.gmra.mxu0 %v2032
      %v2536 = vpop.f32.mrf.mxu0
      %v2537 = vadd.f32 %v2125, %v2536
      %v2538 = vpop.f32.mrf.mxu0
      %v2539 = vadd.f32 %v2129, %v2538
      %v2540 = vpop.f32.mrf.mxu0
      %v2541 = vadd.f32 %v2125, %v2540
      %v2542 = vpop.f32.mrf.mxu0
      %v2543 = vadd.f32 %v2129, %v2542
      %2544 = vmatprep.mubr.bf16.mxu0 %v2035
      %2545 = vmatmul.mubr.bf16.gmra.mxu0 %v2034
      %v2546 = vpop.f32.mrf.mxu0
      %v2547 = vadd.f32 %v2125, %v2546
      %v2548 = vpop.f32.mrf.mxu0
      %v2549 = vadd.f32 %v2129, %v2548
      %v2550 = vpop.f32.mrf.mxu0
      %v2551 = vadd.f32 %v2125, %v2550
      %v2552 = vpop.f32.mrf.mxu0
      %v2553 = vadd.f32 %v2129, %v2552
      %2554 = vmatprep.mubr.bf16.mxu0 %v2037
      %2555 = vmatmul.mubr.bf16.gmra.mxu0 %v2036
      %v2556 = vpop.f32.mrf.mxu0
      %v2557 = vadd.f32 %v2125, %v2556
      %v2558 = vpop.f32.mrf.mxu0
      %v2559 = vadd.f32 %v2129, %v2558
      %v2560 = vpop.f32.mrf.mxu0
      %v2561 = vadd.f32 %v2125, %v2560
      %v2562 = vpop.f32.mrf.mxu0
      %v2563 = vadd.f32 %v2129, %v2562
      %2564 = vmatprep.mubr.bf16.mxu0 %v2039
      %2565 = vmatmul.mubr.bf16.gmra.mxu0 %v2038
      %v2566 = vpop.f32.mrf.mxu0
      %v2567 = vadd.f32 %v2125, %v2566
      %v2568 = vpop.f32.mrf.mxu0
      %v2569 = vadd.f32 %v2129, %v2568
      %v2570 = vpop.f32.mrf.mxu0
      %v2571 = vadd.f32 %v2125, %v2570
      %v2572 = vpop.f32.mrf.mxu0
      %v2573 = vadd.f32 %v2129, %v2572
      %2574 = vmatprep.mubr.bf16.mxu0 %v2041
      %2575 = vmatmul.mubr.bf16.gmra.mxu0 %v2040
      %v2576 = vpop.f32.mrf.mxu0
      %v2577 = vadd.f32 %v2125, %v2576
      %v2578 = vpop.f32.mrf.mxu0
      %v2579 = vadd.f32 %v2129, %v2578
      %v2580 = vpop.f32.mrf.mxu0
      %v2581 = vadd.f32 %v2125, %v2580
      %v2582 = vpop.f32.mrf.mxu0
      %v2583 = vadd.f32 %v2129, %v2582
      %2584 = vmatprep.mubr.bf16.mxu0 %v2043
      %2585 = vmatmul.mubr.bf16.gmra.mxu0 %v2042
      %v2586 = vpop.f32.mrf.mxu0
      %v2587 = vadd.f32 %v2125, %v2586
      %v2588 = vpop.f32.mrf.mxu0
      %v2589 = vadd.f32 %v2129, %v2588
      %v2590 = vpop.f32.mrf.mxu0
      %v2591 = vadd.f32 %v2125, %v2590
      %v2592 = vpop.f32.mrf.mxu0
      %v2593 = vadd.f32 %v2129, %v2592
      %2594 = vmatprep.mubr.bf16.mxu0 %v2045
      %2595 = vmatmul.mubr.bf16.gmra.mxu0 %v2044
      %v2596 = vpop.f32.mrf.mxu0
      %v2597 = vadd.f32 %v2125, %v2596
      %v2598 = vpop.f32.mrf.mxu0
      %v2599 = vadd.f32 %v2129, %v2598
      %v2600 = vpop.f32.mrf.mxu0
      %v2601 = vadd.f32 %v2125, %v2600
      %v2602 = vpop.f32.mrf.mxu0
      %v2603 = vadd.f32 %v2129, %v2602
      %2604 = vmatprep.mubr.bf16.mxu0 %v2047
      %2605 = vmatmul.mubr.bf16.gmra.mxu0 %v2046
      %v2606 = vpop.f32.mrf.mxu0
      %v2607 = vadd.f32 %v2125, %v2606
      %v2608 = vpop.f32.mrf.mxu0
      %v2609 = vadd.f32 %v2129, %v2608
      %v2610 = vpop.f32.mrf.mxu0
      %v2611 = vadd.f32 %v2125, %v2610
      %v2612 = vpop.f32.mrf.mxu0
      %v2613 = vadd.f32 %v2129, %v2612
      %2614 = vmatprep.mubr.bf16.mxu0 %v2049
      %2615 = vmatmul.mubr.bf16.gmra.mxu0 %v2048
      %v2616 = vpop.f32.mrf.mxu0
      %v2617 = vadd.f32 %v2125, %v2616
      %v2618 = vpop.f32.mrf.mxu0
      %v2619 = vadd.f32 %v2129, %v2618
      %v2620 = vpop.f32.mrf.mxu0
      %v2621 = vadd.f32 %v2125, %v2620
      %v2622 = vpop.f32.mrf.mxu0
      %v2623 = vadd.f32 %v2129, %v2622
      %2624 = vmatprep.mubr.bf16.mxu0 %v2051
      %2625 = vmatmul.mubr.bf16.gmra.mxu0 %v2050
      %v2626 = vpop.f32.mrf.mxu0
      %v2627 = vadd.f32 %v2125, %v2626
      %v2628 = vpop.f32.mrf.mxu0
      %v2629 = vadd.f32 %v2129, %v2628
      %v2630 = vpop.f32.mrf.mxu0
      %v2631 = vadd.f32 %v2125, %v2630
      %v2632 = vpop.f32.mrf.mxu0
      %v2633 = vadd.f32 %v2129, %v2632
      %2634 = vmatprep.mubr.bf16.mxu0 %v2053
      %2635 = vmatmul.mubr.bf16.gmra.mxu0 %v2052
      %v2636 = vpop.f32.mrf.mxu0
      %v2637 = vadd.f32 %v2125, %v2636
      %v2638 = vpop.f32.mrf.mxu0
      %v2639 = vadd.f32 %v2129, %v2638
      %v2640 = vpop.f32.mrf.mxu0
      %v2641 = vadd.f32 %v2125, %v2640
      %v2642 = vpop.f32.mrf.mxu0
      %v2643 = vadd.f32 %v2129, %v2642
      %2644 = vmatprep.mubr.bf16.mxu0 %v2055
      %2645 = vmatmul.mubr.bf16.gmra.mxu0 %v2054
      %v2646 = vpop.f32.mrf.mxu0
      %v2647 = vadd.f32 %v2125, %v2646
      %v2648 = vpop.f32.mrf.mxu0
      %v2649 = vadd.f32 %v2129, %v2648
      %v2650 = vpop.f32.mrf.mxu0
      %v2651 = vadd.f32 %v2125, %v2650
      %v2652 = vpop.f32.mrf.mxu0
      %v2653 = vadd.f32 %v2129, %v2652
      %2654 = vdwg.mxu0
      %2655 = vmatprep.subr.bf16.mxu0 %v2365
      %2656 = vmatpush1.bf16.msra.mxu0 %v2364
      %2657 = vmatprep.subr.bf16.mxu0 %v2361
      %2658 = vmatpush1.bf16.msra.mxu0 %v2360
      %2659 = vmatprep.subr.bf16.mxu0 %v2357
      %2660 = vmatpush1.bf16.msra.mxu0 %v2356
      %2661 = vmatprep.subr.bf16.mxu0 %v2353
      %2662 = vmatpush1.bf16.msra.mxu0 %v2352
      %2663 = vmatprep.subr.bf16.mxu0 %v2349
      %2664 = vmatpush1.bf16.msra.mxu0 %v2348
      %2665 = vmatprep.subr.bf16.mxu0 %v2345
      %2666 = vmatpush1.bf16.msra.mxu0 %v2344
      %2667 = vmatprep.subr.bf16.mxu0 %v2341
      %2668 = vmatpush1.bf16.msra.mxu0 %v2340
      %2669 = vmatprep.subr.bf16.mxu0 %v2337
      %2670 = vmatpush1.bf16.msra.mxu0 %v2336
      %2671 = vmatprep.subr.bf16.mxu0 %v2397
      %2672 = vmatpush2.bf16.msra.mxu0 %v2396
      %2673 = vmatprep.subr.bf16.mxu0 %v2393
      %2674 = vmatpush2.bf16.msra.mxu0 %v2392
      %2675 = vmatprep.subr.bf16.mxu0 %v2389
      %2676 = vmatpush2.bf16.msra.mxu0 %v2388
      %2677 = vmatprep.subr.bf16.mxu0 %v2385
      %2678 = vmatpush2.bf16.msra.mxu0 %v2384
      %2679 = vmatprep.subr.bf16.mxu0 %v2381
      %2680 = vmatpush2.bf16.msra.mxu0 %v2380
      %2681 = vmatprep.subr.bf16.mxu0 %v2377
      %2682 = vmatpush2.bf16.msra.mxu0 %v2376
      %2683 = vmatprep.subr.bf16.mxu0 %v2373
      %2684 = vmatpush2.bf16.msra.mxu0 %v2372
      %2685 = vmatprep.subr.bf16.mxu0 %v2369
      %2686 = vmatpush2.bf16.msra.mxu0 %v2368
      %2687 = vmatprep.mubr.bf16.mxu0 %v2025
      %2688 = vmatmul.mubr.bf16.gmra.mxu0 %v2024
      %v2689 = vpop.f32.mrf.mxu0
      %v2690 = vadd.f32 %v2133, %v2689
      %v2691 = vpop.f32.mrf.mxu0
      %v2692 = vadd.f32 %v2137, %v2691
      %v2693 = vpop.f32.mrf.mxu0
      %v2694 = vadd.f32 %v2133, %v2693
      %v2695 = vpop.f32.mrf.mxu0
      %v2696 = vadd.f32 %v2137, %v2695
      %2697 = vmatprep.mubr.bf16.mxu0 %v2027
      %2698 = vmatmul.mubr.bf16.gmra.mxu0 %v2026
      %v2699 = vpop.f32.mrf.mxu0
      %v2700 = vadd.f32 %v2133, %v2699
      %v2701 = vpop.f32.mrf.mxu0
      %v2702 = vadd.f32 %v2137, %v2701
      %v2703 = vpop.f32.mrf.mxu0
      %v2704 = vadd.f32 %v2133, %v2703
      %v2705 = vpop.f32.mrf.mxu0
      %v2706 = vadd.f32 %v2137, %v2705
      %2707 = vmatprep.mubr.bf16.mxu0 %v2029
      %2708 = vmatmul.mubr.bf16.gmra.mxu0 %v2028
      %v2709 = vpop.f32.mrf.mxu0
      %v2710 = vadd.f32 %v2133, %v2709
      %v2711 = vpop.f32.mrf.mxu0
      %v2712 = vadd.f32 %v2137, %v2711
      %v2713 = vpop.f32.mrf.mxu0
      %v2714 = vadd.f32 %v2133, %v2713
      %v2715 = vpop.f32.mrf.mxu0
      %v2716 = vadd.f32 %v2137, %v2715
      %2717 = vmatprep.mubr.bf16.mxu0 %v2031
      %2718 = vmatmul.mubr.bf16.gmra.mxu0 %v2030
      %v2719 = vpop.f32.mrf.mxu0
      %v2720 = vadd.f32 %v2133, %v2719
      %v2721 = vpop.f32.mrf.mxu0
      %v2722 = vadd.f32 %v2137, %v2721
      %v2723 = vpop.f32.mrf.mxu0
      %v2724 = vadd.f32 %v2133, %v2723
      %v2725 = vpop.f32.mrf.mxu0
      %v2726 = vadd.f32 %v2137, %v2725
      %2727 = vmatprep.mubr.bf16.mxu0 %v2033
      %2728 = vmatmul.mubr.bf16.gmra.mxu0 %v2032
      %v2729 = vpop.f32.mrf.mxu0
      %v2730 = vadd.f32 %v2133, %v2729
      %v2731 = vpop.f32.mrf.mxu0
      %v2732 = vadd.f32 %v2137, %v2731
      %v2733 = vpop.f32.mrf.mxu0
      %v2734 = vadd.f32 %v2133, %v2733
      %v2735 = vpop.f32.mrf.mxu0
      %v2736 = vadd.f32 %v2137, %v2735
      %2737 = vmatprep.mubr.bf16.mxu0 %v2035
      %2738 = vmatmul.mubr.bf16.gmra.mxu0 %v2034
      %v2739 = vpop.f32.mrf.mxu0
      %v2740 = vadd.f32 %v2133, %v2739
      %v2741 = vpop.f32.mrf.mxu0
      %v2742 = vadd.f32 %v2137, %v2741
      %v2743 = vpop.f32.mrf.mxu0
      %v2744 = vadd.f32 %v2133, %v2743
      %v2745 = vpop.f32.mrf.mxu0
      %v2746 = vadd.f32 %v2137, %v2745
      %2747 = vmatprep.mubr.bf16.mxu0 %v2037
      %2748 = vmatmul.mubr.bf16.gmra.mxu0 %v2036
      %v2749 = vpop.f32.mrf.mxu0
      %v2750 = vadd.f32 %v2133, %v2749
      %v2751 = vpop.f32.mrf.mxu0
      %v2752 = vadd.f32 %v2137, %v2751
      %v2753 = vpop.f32.mrf.mxu0
      %v2754 = vadd.f32 %v2133, %v2753
      %v2755 = vpop.f32.mrf.mxu0
      %v2756 = vadd.f32 %v2137, %v2755
      %2757 = vmatprep.mubr.bf16.mxu0 %v2039
      %2758 = vmatmul.mubr.bf16.gmra.mxu0 %v2038
      %v2759 = vpop.f32.mrf.mxu0
      %v2760 = vadd.f32 %v2133, %v2759
      %v2761 = vpop.f32.mrf.mxu0
      %v2762 = vadd.f32 %v2137, %v2761
      %v2763 = vpop.f32.mrf.mxu0
      %v2764 = vadd.f32 %v2133, %v2763
      %v2765 = vpop.f32.mrf.mxu0
      %v2766 = vadd.f32 %v2137, %v2765
      %2767 = vmatprep.mubr.bf16.mxu0 %v2041
      %2768 = vmatmul.mubr.bf16.gmra.mxu0 %v2040
      %v2769 = vpop.f32.mrf.mxu0
      %v2770 = vadd.f32 %v2133, %v2769
      %v2771 = vpop.f32.mrf.mxu0
      %v2772 = vadd.f32 %v2137, %v2771
      %v2773 = vpop.f32.mrf.mxu0
      %v2774 = vadd.f32 %v2133, %v2773
      %v2775 = vpop.f32.mrf.mxu0
      %v2776 = vadd.f32 %v2137, %v2775
      %2777 = vmatprep.mubr.bf16.mxu0 %v2043
      %2778 = vmatmul.mubr.bf16.gmra.mxu0 %v2042
      %v2779 = vpop.f32.mrf.mxu0
      %v2780 = vadd.f32 %v2133, %v2779
      %v2781 = vpop.f32.mrf.mxu0
      %v2782 = vadd.f32 %v2137, %v2781
      %v2783 = vpop.f32.mrf.mxu0
      %v2784 = vadd.f32 %v2133, %v2783
      %v2785 = vpop.f32.mrf.mxu0
      %v2786 = vadd.f32 %v2137, %v2785
      %2787 = vmatprep.mubr.bf16.mxu0 %v2045
      %2788 = vmatmul.mubr.bf16.gmra.mxu0 %v2044
      %v2789 = vpop.f32.mrf.mxu0
      %v2790 = vadd.f32 %v2133, %v2789
      %v2791 = vpop.f32.mrf.mxu0
      %v2792 = vadd.f32 %v2137, %v2791
      %v2793 = vpop.f32.mrf.mxu0
      %v2794 = vadd.f32 %v2133, %v2793
      %v2795 = vpop.f32.mrf.mxu0
      %v2796 = vadd.f32 %v2137, %v2795
      %2797 = vmatprep.mubr.bf16.mxu0 %v2047
      %2798 = vmatmul.mubr.bf16.gmra.mxu0 %v2046
      %v2799 = vpop.f32.mrf.mxu0
      %v2800 = vadd.f32 %v2133, %v2799
      %v2801 = vpop.f32.mrf.mxu0
      %v2802 = vadd.f32 %v2137, %v2801
      %v2803 = vpop.f32.mrf.mxu0
      %v2804 = vadd.f32 %v2133, %v2803
      %v2805 = vpop.f32.mrf.mxu0
      %v2806 = vadd.f32 %v2137, %v2805
      %2807 = vmatprep.mubr.bf16.mxu0 %v2049
      %2808 = vmatmul.mubr.bf16.gmra.mxu0 %v2048
      %v2809 = vpop.f32.mrf.mxu0
      %v2810 = vadd.f32 %v2133, %v2809
      %v2811 = vpop.f32.mrf.mxu0
      %v2812 = vadd.f32 %v2137, %v2811
      %v2813 = vpop.f32.mrf.mxu0
      %v2814 = vadd.f32 %v2133, %v2813
      %v2815 = vpop.f32.mrf.mxu0
      %v2816 = vadd.f32 %v2137, %v2815
      %2817 = vmatprep.mubr.bf16.mxu0 %v2051
      %2818 = vmatmul.mubr.bf16.gmra.mxu0 %v2050
      %v2819 = vpop.f32.mrf.mxu0
      %v2820 = vadd.f32 %v2133, %v2819
      %v2821 = vpop.f32.mrf.mxu0
      %v2822 = vadd.f32 %v2137, %v2821
      %v2823 = vpop.f32.mrf.mxu0
      %v2824 = vadd.f32 %v2133, %v2823
      %v2825 = vpop.f32.mrf.mxu0
      %v2826 = vadd.f32 %v2137, %v2825
      %2827 = vmatprep.mubr.bf16.mxu0 %v2053
      %2828 = vmatmul.mubr.bf16.gmra.mxu0 %v2052
      %v2829 = vpop.f32.mrf.mxu0
      %v2830 = vadd.f32 %v2133, %v2829
      %v2831 = vpop.f32.mrf.mxu0
      %v2832 = vadd.f32 %v2137, %v2831
      %v2833 = vpop.f32.mrf.mxu0
      %v2834 = vadd.f32 %v2133, %v2833
      %v2835 = vpop.f32.mrf.mxu0
      %v2836 = vadd.f32 %v2137, %v2835
      %2837 = vmatprep.mubr.bf16.mxu0 %v2055
      %2838 = vmatmul.mubr.bf16.gmra.mxu0 %v2054
      %v2839 = vpop.f32.mrf.mxu0
      %v2840 = vadd.f32 %v2133, %v2839
      %v2841 = vpop.f32.mrf.mxu0
      %v2842 = vadd.f32 %v2137, %v2841
      %v2843 = vpop.f32.mrf.mxu0
      %v2844 = vadd.f32 %v2133, %v2843
      %v2845 = vpop.f32.mrf.mxu0
      %v2846 = vadd.f32 %v2137, %v2845
      %2847 = vdwg.mxu0
      %v2848 = vmax.f32 %v2497, 0.0
      %v2849 = vmax.f32 %v2499, 0.0
      %v2850 = vmax.f32 %v2690, 0.0
      %v2851 = vmax.f32 %v2692, 0.0
      %v2852 = vmax.f32 %v2501, 0.0
      %v2853 = vmax.f32 %v2503, 0.0
      %v2854 = vmax.f32 %v2694, 0.0
      %v2855 = vmax.f32 %v2696, 0.0
      %v2856 = vmax.f32 %v2507, 0.0
      %v2857 = vmax.f32 %v2509, 0.0
      %v2858 = vmax.f32 %v2700, 0.0
      %v2859 = vmax.f32 %v2702, 0.0
      %v2860 = vmax.f32 %v2511, 0.0
      %v2861 = vmax.f32 %v2513, 0.0
      %v2862 = vmax.f32 %v2704, 0.0
      %v2863 = vmax.f32 %v2706, 0.0
      %v2864 = vmax.f32 %v2517, 0.0
      %v2865 = vmax.f32 %v2519, 0.0
      %v2866 = vmax.f32 %v2710, 0.0
      %v2867 = vmax.f32 %v2712, 0.0
      %v2868 = vmax.f32 %v2521, 0.0
      %v2869 = vmax.f32 %v2523, 0.0
      %v2870 = vmax.f32 %v2714, 0.0
      %v2871 = vmax.f32 %v2716, 0.0
      %v2872 = vmax.f32 %v2527, 0.0
      %v2873 = vmax.f32 %v2529, 0.0
      %v2874 = vmax.f32 %v2720, 0.0
      %v2875 = vmax.f32 %v2722, 0.0
      %v2876 = vmax.f32 %v2531, 0.0
      %v2877 = vmax.f32 %v2533, 0.0
      %v2878 = vmax.f32 %v2724, 0.0
      %v2879 = vmax.f32 %v2726, 0.0
      %v2880 = vmax.f32 %v2537, 0.0
      %v2881 = vmax.f32 %v2539, 0.0
      %v2882 = vmax.f32 %v2730, 0.0
      %v2883 = vmax.f32 %v2732, 0.0
      %v2884 = vmax.f32 %v2541, 0.0
      %v2885 = vmax.f32 %v2543, 0.0
      %v2886 = vmax.f32 %v2734, 0.0
      %v2887 = vmax.f32 %v2736, 0.0
      %v2888 = vmax.f32 %v2547, 0.0
      %v2889 = vmax.f32 %v2549, 0.0
      %v2890 = vmax.f32 %v2740, 0.0
      %v2891 = vmax.f32 %v2742, 0.0
      %v2892 = vmax.f32 %v2551, 0.0
      %v2893 = vmax.f32 %v2553, 0.0
      %v2894 = vmax.f32 %v2744, 0.0
      %v2895 = vmax.f32 %v2746, 0.0
      %v2896 = vmax.f32 %v2557, 0.0
      %v2897 = vmax.f32 %v2559, 0.0
      %v2898 = vmax.f32 %v2750, 0.0
      %v2899 = vmax.f32 %v2752, 0.0
      %v2900 = vmax.f32 %v2561, 0.0
      %v2901 = vmax.f32 %v2563, 0.0
      %v2902 = vmax.f32 %v2754, 0.0
      %v2903 = vmax.f32 %v2756, 0.0
      %v2904 = vmax.f32 %v2567, 0.0
      %v2905 = vmax.f32 %v2569, 0.0
      %v2906 = vmax.f32 %v2760, 0.0
      %v2907 = vmax.f32 %v2762, 0.0
      %v2908 = vmax.f32 %v2571, 0.0
      %v2909 = vmax.f32 %v2573, 0.0
      %v2910 = vmax.f32 %v2764, 0.0
      %v2911 = vmax.f32 %v2766, 0.0
      %v2912 = vmax.f32 %v2577, 0.0
      %v2913 = vmax.f32 %v2579, 0.0
      %v2914 = vmax.f32 %v2770, 0.0
      %v2915 = vmax.f32 %v2772, 0.0
      %v2916 = vmax.f32 %v2581, 0.0
      %v2917 = vmax.f32 %v2583, 0.0
      %v2918 = vmax.f32 %v2774, 0.0
      %v2919 = vmax.f32 %v2776, 0.0
      %v2920 = vmax.f32 %v2587, 0.0
      %v2921 = vmax.f32 %v2589, 0.0
      %v2922 = vmax.f32 %v2780, 0.0
      %v2923 = vmax.f32 %v2782, 0.0
      %v2924 = vmax.f32 %v2591, 0.0
      %v2925 = vmax.f32 %v2593, 0.0
      %v2926 = vmax.f32 %v2784, 0.0
      %v2927 = vmax.f32 %v2786, 0.0
      %v2928 = vmax.f32 %v2597, 0.0
      %v2929 = vmax.f32 %v2599, 0.0
      %v2930 = vmax.f32 %v2790, 0.0
      %v2931 = vmax.f32 %v2792, 0.0
      %v2932 = vmax.f32 %v2601, 0.0
      %v2933 = vmax.f32 %v2603, 0.0
      %v2934 = vmax.f32 %v2794, 0.0
      %v2935 = vmax.f32 %v2796, 0.0
      %v2936 = vmax.f32 %v2607, 0.0
      %v2937 = vmax.f32 %v2609, 0.0
      %v2938 = vmax.f32 %v2800, 0.0
      %v2939 = vmax.f32 %v2802, 0.0
      %v2940 = vmax.f32 %v2611, 0.0
      %v2941 = vmax.f32 %v2613, 0.0
      %v2942 = vmax.f32 %v2804, 0.0
      %v2943 = vmax.f32 %v2806, 0.0
      %v2944 = vmax.f32 %v2617, 0.0
      %v2945 = vmax.f32 %v2619, 0.0
      %v2946 = vmax.f32 %v2810, 0.0
      %v2947 = vmax.f32 %v2812, 0.0
      %v2948 = vmax.f32 %v2621, 0.0
      %v2949 = vmax.f32 %v2623, 0.0
      %v2950 = vmax.f32 %v2814, 0.0
      %v2951 = vmax.f32 %v2816, 0.0
      %v2952 = vmax.f32 %v2627, 0.0
      %v2953 = vmax.f32 %v2629, 0.0
      %v2954 = vmax.f32 %v2820, 0.0
      %v2955 = vmax.f32 %v2822, 0.0
      %v2956 = vmax.f32 %v2631, 0.0
      %v2957 = vmax.f32 %v2633, 0.0
      %v2958 = vmax.f32 %v2824, 0.0
      %v2959 = vmax.f32 %v2826, 0.0
      %v2960 = vmax.f32 %v2637, 0.0
      %v2961 = vmax.f32 %v2639, 0.0
      %v2962 = vmax.f32 %v2830, 0.0
      %v2963 = vmax.f32 %v2832, 0.0
      %v2964 = vmax.f32 %v2641, 0.0
      %v2965 = vmax.f32 %v2643, 0.0
      %v2966 = vmax.f32 %v2834, 0.0
      %v2967 = vmax.f32 %v2836, 0.0
      %v2968 = vmax.f32 %v2647, 0.0
      %v2969 = vmax.f32 %v2649, 0.0
      %v2970 = vmax.f32 %v2840, 0.0
      %v2971 = vmax.f32 %v2842, 0.0
      %v2972 = vmax.f32 %v2651, 0.0
      %v2973 = vmax.f32 %v2653, 0.0
      %v2974 = vmax.f32 %v2844, 0.0
      %v2975 = vmax.f32 %v2846, 0.0
      %v2976 = vpack.c.bf16 %v2852, %v2848
      %v2977 = vpack.c.bf16 %v2853, %v2849
      %v2978 = vpack.c.bf16 %v2854, %v2850
      %v2979 = vpack.c.bf16 %v2855, %v2851
      %v2980 = vpack.c.bf16 %v2860, %v2856
      %v2981 = vpack.c.bf16 %v2861, %v2857
      %v2982 = vpack.c.bf16 %v2862, %v2858
      %v2983 = vpack.c.bf16 %v2863, %v2859
      %v2984 = vpack.c.bf16 %v2868, %v2864
      %v2985 = vpack.c.bf16 %v2869, %v2865
      %v2986 = vpack.c.bf16 %v2870, %v2866
      %v2987 = vpack.c.bf16 %v2871, %v2867
      %v2988 = vpack.c.bf16 %v2876, %v2872
      %v2989 = vpack.c.bf16 %v2877, %v2873
      %v2990 = vpack.c.bf16 %v2878, %v2874
      %v2991 = vpack.c.bf16 %v2879, %v2875
      %v2992 = vpack.c.bf16 %v2884, %v2880
      %v2993 = vpack.c.bf16 %v2885, %v2881
      %v2994 = vpack.c.bf16 %v2886, %v2882
      %v2995 = vpack.c.bf16 %v2887, %v2883
      %v2996 = vpack.c.bf16 %v2892, %v2888
      %v2997 = vpack.c.bf16 %v2893, %v2889
      %v2998 = vpack.c.bf16 %v2894, %v2890
      %v2999 = vpack.c.bf16 %v2895, %v2891
      %v3000 = vpack.c.bf16 %v2900, %v2896
      %v3001 = vpack.c.bf16 %v2901, %v2897
      %v3002 = vpack.c.bf16 %v2902, %v2898
      %v3003 = vpack.c.bf16 %v2903, %v2899
      %v3004 = vpack.c.bf16 %v2908, %v2904
      %v3005 = vpack.c.bf16 %v2909, %v2905
      %v3006 = vpack.c.bf16 %v2910, %v2906
      %v3007 = vpack.c.bf16 %v2911, %v2907
      %v3008 = vpack.c.bf16 %v2916, %v2912
      %v3009 = vpack.c.bf16 %v2917, %v2913
      %v3010 = vpack.c.bf16 %v2918, %v2914
      %v3011 = vpack.c.bf16 %v2919, %v2915
      %v3012 = vpack.c.bf16 %v2924, %v2920
      %v3013 = vpack.c.bf16 %v2925, %v2921
      %v3014 = vpack.c.bf16 %v2926, %v2922
      %v3015 = vpack.c.bf16 %v2927, %v2923
      %v3016 = vpack.c.bf16 %v2932, %v2928
      %v3017 = vpack.c.bf16 %v2933, %v2929
      %v3018 = vpack.c.bf16 %v2934, %v2930
      %v3019 = vpack.c.bf16 %v2935, %v2931
      %v3020 = vpack.c.bf16 %v2940, %v2936
      %v3021 = vpack.c.bf16 %v2941, %v2937
      %v3022 = vpack.c.bf16 %v2942, %v2938
      %v3023 = vpack.c.bf16 %v2943, %v2939
      %v3024 = vpack.c.bf16 %v2948, %v2944
      %v3025 = vpack.c.bf16 %v2949, %v2945
      %v3026 = vpack.c.bf16 %v2950, %v2946
      %v3027 = vpack.c.bf16 %v2951, %v2947
      %v3028 = vpack.c.bf16 %v2956, %v2952
      %v3029 = vpack.c.bf16 %v2957, %v2953
      %v3030 = vpack.c.bf16 %v2958, %v2954
      %v3031 = vpack.c.bf16 %v2959, %v2955
      %v3032 = vpack.c.bf16 %v2964, %v2960
      %v3033 = vpack.c.bf16 %v2965, %v2961
      %v3034 = vpack.c.bf16 %v2966, %v2962
      %v3035 = vpack.c.bf16 %v2967, %v2963
      %v3036 = vpack.c.bf16 %v2972, %v2968
      %v3037 = vpack.c.bf16 %v2973, %v2969
      %v3038 = vpack.c.bf16 %v2974, %v2970
      %v3039 = vpack.c.bf16 %v2975, %v2971
      %v3040 = vld [vmem:[%s11] sm:$0xf]
      %v3041 = vld [vmem:[%s11 + $0x4] sm:$0xf]
      %v3042 = vld [vmem:[%s11 + $0x8] sm:$0xf]
      %v3043 = vld [vmem:[%s11 + $0xc] sm:$0xf]
      %v3044 = vld [vmem:[%s11 + $0x10] sm:$0xf]
      %v3045 = vld [vmem:[%s11 + $0x14] sm:$0xf]
      %v3046 = vld [vmem:[%s11 + $0x18] sm:$0xf]
      %v3047 = vld [vmem:[%s11 + $0x1c] sm:$0xf]
      %v3048 = vld [vmem:[%s11 + $0x20] sm:$0xf]
      %v3049 = vld [vmem:[%s11 + $0x24] sm:$0xf]
      %v3050 = vld [vmem:[%s11 + $0x28] sm:$0xf]
      %v3051 = vld [vmem:[%s11 + $0x2c] sm:$0xf]
      %v3052 = vld [vmem:[%s11 + $0x30] sm:$0xf]
      %v3053 = vld [vmem:[%s11 + $0x34] sm:$0xf]
      %v3054 = vld [vmem:[%s11 + $0x38] sm:$0xf]
      %v3055 = vld [vmem:[%s11 + $0x3c] sm:$0xf]
      %v3056 = vld [vmem:[%s11 + $0x40] sm:$0xf]
      %v3057 = vld [vmem:[%s11 + $0x44] sm:$0xf]
      %v3058 = vld [vmem:[%s11 + $0x48] sm:$0xf]
      %v3059 = vld [vmem:[%s11 + $0x4c] sm:$0xf]
      %v3060 = vld [vmem:[%s11 + $0x50] sm:$0xf]
      %v3061 = vld [vmem:[%s11 + $0x54] sm:$0xf]
      %v3062 = vld [vmem:[%s11 + $0x58] sm:$0xf]
      %v3063 = vld [vmem:[%s11 + $0x5c] sm:$0xf]
      %v3064 = vld [vmem:[%s11 + $0x60] sm:$0xf]
      %v3065 = vld [vmem:[%s11 + $0x64] sm:$0xf]
      %v3066 = vld [vmem:[%s11 + $0x68] sm:$0xf]
      %v3067 = vld [vmem:[%s11 + $0x6c] sm:$0xf]
      %v3068 = vld [vmem:[%s11 + $0x70] sm:$0xf]
      %v3069 = vld [vmem:[%s11 + $0x74] sm:$0xf]
      %v3070 = vld [vmem:[%s11 + $0x78] sm:$0xf]
      %v3071 = vld [vmem:[%s11 + $0x7c] sm:$0xf]
      %v3072 = vld [vmem:[%s11 + $0x80] sm:$0xf]
      %v3073 = vld [vmem:[%s11 + $0x84] sm:$0xf]
      %v3074 = vld [vmem:[%s11 + $0x88] sm:$0xf]
      %v3075 = vld [vmem:[%s11 + $0x8c] sm:$0xf]
      %v3076 = vld [vmem:[%s11 + $0x90] sm:$0xf]
      %v3077 = vld [vmem:[%s11 + $0x94] sm:$0xf]
      %v3078 = vld [vmem:[%s11 + $0x98] sm:$0xf]
      %v3079 = vld [vmem:[%s11 + $0x9c] sm:$0xf]
      %v3080 = vld [vmem:[%s11 + $0xa0] sm:$0xf]
      %v3081 = vld [vmem:[%s11 + $0xa4] sm:$0xf]
      %v3082 = vld [vmem:[%s11 + $0xa8] sm:$0xf]
      %v3083 = vld [vmem:[%s11 + $0xac] sm:$0xf]
      %v3084 = vld [vmem:[%s11 + $0xb0] sm:$0xf]
      %v3085 = vld [vmem:[%s11 + $0xb4] sm:$0xf]
      %v3086 = vld [vmem:[%s11 + $0xb8] sm:$0xf]
      %v3087 = vld [vmem:[%s11 + $0xbc] sm:$0xf]
      %v3088 = vld [vmem:[%s11 + $0xc0] sm:$0xf]
      %v3089 = vld [vmem:[%s11 + $0xc4] sm:$0xf]
      %v3090 = vld [vmem:[%s11 + $0xc8] sm:$0xf]
      %v3091 = vld [vmem:[%s11 + $0xcc] sm:$0xf]
      %v3092 = vld [vmem:[%s11 + $0xd0] sm:$0xf]
      %v3093 = vld [vmem:[%s11 + $0xd4] sm:$0xf]
      %v3094 = vld [vmem:[%s11 + $0xd8] sm:$0xf]
      %v3095 = vld [vmem:[%s11 + $0xdc] sm:$0xf]
      %v3096 = vld [vmem:[%s11 + $0xe0] sm:$0xf]
      %v3097 = vld [vmem:[%s11 + $0xe4] sm:$0xf]
      %v3098 = vld [vmem:[%s11 + $0xe8] sm:$0xf]
      %v3099 = vld [vmem:[%s11 + $0xec] sm:$0xf]
      %v3100 = vld [vmem:[%s11 + $0xf0] sm:$0xf]
      %v3101 = vld [vmem:[%s11 + $0xf4] sm:$0xf]
      %v3102 = vld [vmem:[%s11 + $0xf8] sm:$0xf]
      %v3103 = vld [vmem:[%s11 + $0xfc] sm:$0xf]
      %v3104 = vld [vmem:[%s12] sm:$0x1]
      %v3106 = vlaneseq
      %v3107 = vshrl.u32 %v3106, 7
      %v3108 = vsub.s32 0, %v3107
      %v3109 = vrot.slane %v3104, %v3108
      %v3175 = vunpack.c.l.b16 %v3040
      %v3176 = vunpack.c.l.b16 %v3041
      %v3177 = vunpack.c.l.b16 %v3042
      %v3178 = vunpack.c.l.b16 %v3043
      %v3179 = vunpack.c.l.b16 %v3044
      %v3180 = vunpack.c.l.b16 %v3045
      %v3181 = vunpack.c.l.b16 %v3046
      %v3182 = vunpack.c.l.b16 %v3047
      %v3183 = vunpack.c.l.b16 %v3048
      %v3184 = vunpack.c.l.b16 %v3049
      %v3185 = vunpack.c.l.b16 %v3050
      %v3186 = vunpack.c.l.b16 %v3051
      %v3187 = vunpack.c.l.b16 %v3052
      %v3188 = vunpack.c.l.b16 %v3053
      %v3189 = vunpack.c.l.b16 %v3054
      %v3190 = vunpack.c.l.b16 %v3055
      %v3191 = vunpack.c.l.b16 %v3056
      %v3192 = vunpack.c.l.b16 %v3057
      %v3193 = vunpack.c.l.b16 %v3058
      %v3194 = vunpack.c.l.b16 %v3059
      %v3195 = vunpack.c.l.b16 %v3060
      %v3196 = vunpack.c.l.b16 %v3061
      %v3197 = vunpack.c.l.b16 %v3062
      %v3198 = vunpack.c.l.b16 %v3063
      %v3199 = vunpack.c.l.b16 %v3064
      %v3200 = vunpack.c.l.b16 %v3065
      %v3201 = vunpack.c.l.b16 %v3066
      %v3202 = vunpack.c.l.b16 %v3067
      %v3203 = vunpack.c.l.b16 %v3068
      %v3204 = vunpack.c.l.b16 %v3069
      %v3205 = vunpack.c.l.b16 %v3070
      %v3206 = vunpack.c.l.b16 %v3071
      %v3207 = vunpack.c.l.b16 %v3072
      %v3208 = vunpack.c.l.b16 %v3073
      %v3209 = vunpack.c.l.b16 %v3074
      %v3210 = vunpack.c.l.b16 %v3075
      %v3211 = vunpack.c.l.b16 %v3076
      %v3212 = vunpack.c.l.b16 %v3077
      %v3213 = vunpack.c.l.b16 %v3078
      %v3214 = vunpack.c.l.b16 %v3079
      %v3215 = vunpack.c.l.b16 %v3080
      %v3216 = vunpack.c.l.b16 %v3081
      %v3217 = vunpack.c.l.b16 %v3082
      %v3218 = vunpack.c.l.b16 %v3083
      %v3219 = vunpack.c.l.b16 %v3084
      %v3220 = vunpack.c.l.b16 %v3085
      %v3221 = vunpack.c.l.b16 %v3086
      %v3222 = vunpack.c.l.b16 %v3087
      %v3223 = vunpack.c.l.b16 %v3088
      %v3224 = vunpack.c.l.b16 %v3089
      %v3225 = vunpack.c.l.b16 %v3090
      %v3226 = vunpack.c.l.b16 %v3091
      %v3227 = vunpack.c.l.b16 %v3092
      %v3228 = vunpack.c.l.b16 %v3093
      %v3229 = vunpack.c.l.b16 %v3094
      %v3230 = vunpack.c.l.b16 %v3095
      %v3231 = vunpack.c.l.b16 %v3096
      %v3232 = vunpack.c.l.b16 %v3097
      %v3233 = vunpack.c.l.b16 %v3098
      %v3234 = vunpack.c.l.b16 %v3099
      %v3235 = vunpack.c.l.b16 %v3100
      %v3236 = vunpack.c.l.b16 %v3101
      %v3237 = vunpack.c.l.b16 %v3102
      %v3238 = vunpack.c.l.b16 %v3103
      %v3239 = vpack.c.b16 %v3176, %v3175
      %v3240 = vpack.c.b16 %v3178, %v3177
      %v3241 = vpack.c.b16 %v3180, %v3179
      %v3242 = vpack.c.b16 %v3182, %v3181
      %v3243 = vpack.c.b16 %v3184, %v3183
      %v3244 = vpack.c.b16 %v3186, %v3185
      %v3245 = vpack.c.b16 %v3188, %v3187
      %v3246 = vpack.c.b16 %v3190, %v3189
      %v3247 = vpack.c.b16 %v3192, %v3191
      %v3248 = vpack.c.b16 %v3194, %v3193
      %v3249 = vpack.c.b16 %v3196, %v3195
      %v3250 = vpack.c.b16 %v3198, %v3197
      %v3251 = vpack.c.b16 %v3200, %v3199
      %v3252 = vpack.c.b16 %v3202, %v3201
      %v3253 = vpack.c.b16 %v3204, %v3203
      %v3254 = vpack.c.b16 %v3206, %v3205
      %v3255 = vpack.c.b16 %v3208, %v3207
      %v3256 = vpack.c.b16 %v3210, %v3209
      %v3257 = vpack.c.b16 %v3212, %v3211
      %v3258 = vpack.c.b16 %v3214, %v3213
      %v3259 = vpack.c.b16 %v3216, %v3215
      %v3260 = vpack.c.b16 %v3218, %v3217
      %v3261 = vpack.c.b16 %v3220, %v3219
      %v3262 = vpack.c.b16 %v3222, %v3221
      %v3263 = vpack.c.b16 %v3224, %v3223
      %v3264 = vpack.c.b16 %v3226, %v3225
      %v3265 = vpack.c.b16 %v3228, %v3227
      %v3266 = vpack.c.b16 %v3230, %v3229
      %v3267 = vpack.c.b16 %v3232, %v3231
      %v3268 = vpack.c.b16 %v3234, %v3233
      %v3269 = vpack.c.b16 %v3236, %v3235
      %v3270 = vpack.c.b16 %v3238, %v3237
      %3303 = vmatprep.subr.bf16.mxu0 0
      %3304 = vmatpush1.bf16.msra.mxu0 %v3246
      %3305 = vmatprep.subr.bf16.mxu0 0
      %3306 = vmatpush1.bf16.msra.mxu0 %v3245
      %3307 = vmatprep.subr.bf16.mxu0 0
      %3308 = vmatpush1.bf16.msra.mxu0 %v3244
      %3309 = vmatprep.subr.bf16.mxu0 0
      %3310 = vmatpush1.bf16.msra.mxu0 %v3243
      %3311 = vmatprep.subr.bf16.mxu0 0
      %3312 = vmatpush1.bf16.msra.mxu0 %v3242
      %3313 = vmatprep.subr.bf16.mxu0 0
      %3314 = vmatpush1.bf16.msra.mxu0 %v3241
      %3315 = vmatprep.subr.bf16.mxu0 0
      %3316 = vmatpush1.bf16.msra.mxu0 %v3240
      %3317 = vmatprep.subr.bf16.mxu0 0
      %3318 = vmatpush1.bf16.msra.mxu0 %v3239
      %3319 = vmatprep.subr.bf16.mxu0 0
      %3320 = vmatpush2.bf16.msra.mxu0 %v3254
      %3321 = vmatprep.subr.bf16.mxu0 0
      %3322 = vmatpush2.bf16.msra.mxu0 %v3253
      %3323 = vmatprep.subr.bf16.mxu0 0
      %3324 = vmatpush2.bf16.msra.mxu0 %v3252
      %3325 = vmatprep.subr.bf16.mxu0 0
      %3326 = vmatpush2.bf16.msra.mxu0 %v3251
      %3327 = vmatprep.subr.bf16.mxu0 0
      %3328 = vmatpush2.bf16.msra.mxu0 %v3250
      %3329 = vmatprep.subr.bf16.mxu0 0
      %3330 = vmatpush2.bf16.msra.mxu0 %v3249
      %3331 = vmatprep.subr.bf16.mxu0 0
      %3332 = vmatpush2.bf16.msra.mxu0 %v3248
      %3333 = vmatprep.subr.bf16.mxu0 0
      %3334 = vmatpush2.bf16.msra.mxu0 %v3247
      %3335 = vmatprep.mubr.bf16.mxu0 %v2977
      %3336 = vmatmul.mubr.bf16.gmra.mxu0 %v2976
      %v3337 = vpop.f32.mrf.mxu0
      %v3338 = vadd.f32 %v3109, %v3337
      %v3339 = vpop.f32.mrf.mxu0
      %v3340 = vpop.f32.mrf.mxu0
      %v3341 = vadd.f32 %v3109, %v3340
      %v3342 = vpop.f32.mrf.mxu0
      %3343 = vmatprep.mubr.bf16.mxu0 %v2981
      %3344 = vmatmul.mubr.bf16.gmra.mxu0 %v2980
      %v3345 = vpop.f32.mrf.mxu0
      %v3346 = vadd.f32 %v3109, %v3345
      %v3347 = vpop.f32.mrf.mxu0
      %v3348 = vpop.f32.mrf.mxu0
      %v3349 = vadd.f32 %v3109, %v3348
      %v3350 = vpop.f32.mrf.mxu0
      %3351 = vmatprep.mubr.bf16.mxu0 %v2985
      %3352 = vmatmul.mubr.bf16.gmra.mxu0 %v2984
      %v3353 = vpop.f32.mrf.mxu0
      %v3354 = vadd.f32 %v3109, %v3353
      %v3355 = vpop.f32.mrf.mxu0
      %v3356 = vpop.f32.mrf.mxu0
      %v3357 = vadd.f32 %v3109, %v3356
      %v3358 = vpop.f32.mrf.mxu0
      %3359 = vmatprep.mubr.bf16.mxu0 %v2989
      %3360 = vmatmul.mubr.bf16.gmra.mxu0 %v2988
      %v3361 = vpop.f32.mrf.mxu0
      %v3362 = vadd.f32 %v3109, %v3361
      %v3363 = vpop.f32.mrf.mxu0
      %v3364 = vpop.f32.mrf.mxu0
      %v3365 = vadd.f32 %v3109, %v3364
      %v3366 = vpop.f32.mrf.mxu0
      %3367 = vmatprep.mubr.bf16.mxu0 %v2993
      %3368 = vmatmul.mubr.bf16.gmra.mxu0 %v2992
      %v3369 = vpop.f32.mrf.mxu0
      %v3370 = vadd.f32 %v3109, %v3369
      %v3371 = vpop.f32.mrf.mxu0
      %v3372 = vpop.f32.mrf.mxu0
      %v3373 = vadd.f32 %v3109, %v3372
      %v3374 = vpop.f32.mrf.mxu0
      %3375 = vmatprep.mubr.bf16.mxu0 %v2997
      %3376 = vmatmul.mubr.bf16.gmra.mxu0 %v2996
      %v3377 = vpop.f32.mrf.mxu0
      %v3378 = vadd.f32 %v3109, %v3377
      %v3379 = vpop.f32.mrf.mxu0
      %v3380 = vpop.f32.mrf.mxu0
      %v3381 = vadd.f32 %v3109, %v3380
      %v3382 = vpop.f32.mrf.mxu0
      %3383 = vmatprep.mubr.bf16.mxu0 %v3001
      %3384 = vmatmul.mubr.bf16.gmra.mxu0 %v3000
      %v3385 = vpop.f32.mrf.mxu0
      %v3386 = vadd.f32 %v3109, %v3385
      %v3387 = vpop.f32.mrf.mxu0
      %v3388 = vpop.f32.mrf.mxu0
      %v3389 = vadd.f32 %v3109, %v3388
      %v3390 = vpop.f32.mrf.mxu0
      %3391 = vmatprep.mubr.bf16.mxu0 %v3005
      %3392 = vmatmul.mubr.bf16.gmra.mxu0 %v3004
      %v3393 = vpop.f32.mrf.mxu0
      %v3394 = vadd.f32 %v3109, %v3393
      %v3395 = vpop.f32.mrf.mxu0
      %v3396 = vpop.f32.mrf.mxu0
      %v3397 = vadd.f32 %v3109, %v3396
      %v3398 = vpop.f32.mrf.mxu0
      %3399 = vmatprep.mubr.bf16.mxu0 %v3009
      %3400 = vmatmul.mubr.bf16.gmra.mxu0 %v3008
      %v3401 = vpop.f32.mrf.mxu0
      %v3402 = vadd.f32 %v3109, %v3401
      %v3403 = vpop.f32.mrf.mxu0
      %v3404 = vpop.f32.mrf.mxu0
      %v3405 = vadd.f32 %v3109, %v3404
      %v3406 = vpop.f32.mrf.mxu0
      %3407 = vmatprep.mubr.bf16.mxu0 %v3013
      %3408 = vmatmul.mubr.bf16.gmra.mxu0 %v3012
      %v3409 = vpop.f32.mrf.mxu0
      %v3410 = vadd.f32 %v3109, %v3409
      %v3411 = vpop.f32.mrf.mxu0
      %v3412 = vpop.f32.mrf.mxu0
      %v3413 = vadd.f32 %v3109, %v3412
      %v3414 = vpop.f32.mrf.mxu0
      %3415 = vmatprep.mubr.bf16.mxu0 %v3017
      %3416 = vmatmul.mubr.bf16.gmra.mxu0 %v3016
      %v3417 = vpop.f32.mrf.mxu0
      %v3418 = vadd.f32 %v3109, %v3417
      %v3419 = vpop.f32.mrf.mxu0
      %v3420 = vpop.f32.mrf.mxu0
      %v3421 = vadd.f32 %v3109, %v3420
      %v3422 = vpop.f32.mrf.mxu0
      %3423 = vmatprep.mubr.bf16.mxu0 %v3021
      %3424 = vmatmul.mubr.bf16.gmra.mxu0 %v3020
      %v3425 = vpop.f32.mrf.mxu0
      %v3426 = vadd.f32 %v3109, %v3425
      %v3427 = vpop.f32.mrf.mxu0
      %v3428 = vpop.f32.mrf.mxu0
      %v3429 = vadd.f32 %v3109, %v3428
      %v3430 = vpop.f32.mrf.mxu0
      %3431 = vmatprep.mubr.bf16.mxu0 %v3025
      %3432 = vmatmul.mubr.bf16.gmra.mxu0 %v3024
      %v3433 = vpop.f32.mrf.mxu0
      %v3434 = vadd.f32 %v3109, %v3433
      %v3435 = vpop.f32.mrf.mxu0
      %v3436 = vpop.f32.mrf.mxu0
      %v3437 = vadd.f32 %v3109, %v3436
      %v3438 = vpop.f32.mrf.mxu0
      %3439 = vmatprep.mubr.bf16.mxu0 %v3029
      %3440 = vmatmul.mubr.bf16.gmra.mxu0 %v3028
      %v3441 = vpop.f32.mrf.mxu0
      %v3442 = vadd.f32 %v3109, %v3441
      %v3443 = vpop.f32.mrf.mxu0
      %v3444 = vpop.f32.mrf.mxu0
      %v3445 = vadd.f32 %v3109, %v3444
      %v3446 = vpop.f32.mrf.mxu0
      %3447 = vmatprep.mubr.bf16.mxu0 %v3033
      %3448 = vmatmul.mubr.bf16.gmra.mxu0 %v3032
      %v3449 = vpop.f32.mrf.mxu0
      %v3450 = vadd.f32 %v3109, %v3449
      %v3451 = vpop.f32.mrf.mxu0
      %v3452 = vpop.f32.mrf.mxu0
      %v3453 = vadd.f32 %v3109, %v3452
      %v3454 = vpop.f32.mrf.mxu0
      %3455 = vmatprep.mubr.bf16.mxu0 %v3037
      %3456 = vmatmul.mubr.bf16.gmra.mxu0 %v3036
      %v3457 = vpop.f32.mrf.mxu0
      %v3458 = vadd.f32 %v3109, %v3457
      %v3459 = vpop.f32.mrf.mxu0
      %v3460 = vpop.f32.mrf.mxu0
      %v3461 = vadd.f32 %v3109, %v3460
      %v3462 = vpop.f32.mrf.mxu0
      %3463 = vdwg.mxu0
      %3464 = vmatprep.subr.bf16.mxu0 0
      %3465 = vmatpush1.bf16.msra.mxu0 %v3262
      %3466 = vmatprep.subr.bf16.mxu0 0
      %3467 = vmatpush1.bf16.msra.mxu0 %v3261
      %3468 = vmatprep.subr.bf16.mxu0 0
      %3469 = vmatpush1.bf16.msra.mxu0 %v3260
      %3470 = vmatprep.subr.bf16.mxu0 0
      %3471 = vmatpush1.bf16.msra.mxu0 %v3259
      %3472 = vmatprep.subr.bf16.mxu0 0
      %3473 = vmatpush1.bf16.msra.mxu0 %v3258
      %3474 = vmatprep.subr.bf16.mxu0 0
      %3475 = vmatpush1.bf16.msra.mxu0 %v3257
      %3476 = vmatprep.subr.bf16.mxu0 0
      %3477 = vmatpush1.bf16.msra.mxu0 %v3256
      %3478 = vmatprep.subr.bf16.mxu0 0
      %3479 = vmatpush1.bf16.msra.mxu0 %v3255
      %3480 = vmatprep.subr.bf16.mxu0 0
      %3481 = vmatpush2.bf16.msra.mxu0 %v3270
      %3482 = vmatprep.subr.bf16.mxu0 0
      %3483 = vmatpush2.bf16.msra.mxu0 %v3269
      %3484 = vmatprep.subr.bf16.mxu0 0
      %3485 = vmatpush2.bf16.msra.mxu0 %v3268
      %3486 = vmatprep.subr.bf16.mxu0 0
      %3487 = vmatpush2.bf16.msra.mxu0 %v3267
      %3488 = vmatprep.subr.bf16.mxu0 0
      %3489 = vmatpush2.bf16.msra.mxu0 %v3266
      %3490 = vmatprep.subr.bf16.mxu0 0
      %3491 = vmatpush2.bf16.msra.mxu0 %v3265
      %3492 = vmatprep.subr.bf16.mxu0 0
      %3493 = vmatpush2.bf16.msra.mxu0 %v3264
      %3494 = vmatprep.subr.bf16.mxu0 0
      %3495 = vmatpush2.bf16.msra.mxu0 %v3263
      %3496 = vmatprep.mubr.bf16.mxu0 %v2979
      %3497 = vmatmul.mubr.bf16.gmra.mxu0 %v2978
      %v3498 = vpop.f32.mrf.mxu0
      %v3499 = vadd.f32 %v3338, %v3498
      %v3500 = vpop.f32.mrf.mxu0
      %v3501 = vpop.f32.mrf.mxu0
      %v3502 = vadd.f32 %v3341, %v3501
      %v3503 = vpop.f32.mrf.mxu0
      %3504 = vmatprep.mubr.bf16.mxu0 %v2983
      %3505 = vmatmul.mubr.bf16.gmra.mxu0 %v2982
      %v3506 = vpop.f32.mrf.mxu0
      %v3507 = vadd.f32 %v3346, %v3506
      %v3508 = vpop.f32.mrf.mxu0
      %v3509 = vpop.f32.mrf.mxu0
      %v3510 = vadd.f32 %v3349, %v3509
      %v3511 = vpop.f32.mrf.mxu0
      %3512 = vmatprep.mubr.bf16.mxu0 %v2987
      %3513 = vmatmul.mubr.bf16.gmra.mxu0 %v2986
      %v3514 = vpop.f32.mrf.mxu0
      %v3515 = vadd.f32 %v3354, %v3514
      %v3516 = vpop.f32.mrf.mxu0
      %v3517 = vpop.f32.mrf.mxu0
      %v3518 = vadd.f32 %v3357, %v3517
      %v3519 = vpop.f32.mrf.mxu0
      %3520 = vmatprep.mubr.bf16.mxu0 %v2991
      %3521 = vmatmul.mubr.bf16.gmra.mxu0 %v2990
      %v3522 = vpop.f32.mrf.mxu0
      %v3523 = vadd.f32 %v3362, %v3522
      %v3524 = vpop.f32.mrf.mxu0
      %v3525 = vpop.f32.mrf.mxu0
      %v3526 = vadd.f32 %v3365, %v3525
      %v3527 = vpop.f32.mrf.mxu0
      %3528 = vmatprep.mubr.bf16.mxu0 %v2995
      %3529 = vmatmul.mubr.bf16.gmra.mxu0 %v2994
      %v3530 = vpop.f32.mrf.mxu0
      %v3531 = vadd.f32 %v3370, %v3530
      %v3532 = vpop.f32.mrf.mxu0
      %v3533 = vpop.f32.mrf.mxu0
      %v3534 = vadd.f32 %v3373, %v3533
      %v3535 = vpop.f32.mrf.mxu0
      %3536 = vmatprep.mubr.bf16.mxu0 %v2999
      %3537 = vmatmul.mubr.bf16.gmra.mxu0 %v2998
      %v3538 = vpop.f32.mrf.mxu0
      %v3539 = vadd.f32 %v3378, %v3538
      %v3540 = vpop.f32.mrf.mxu0
      %v3541 = vpop.f32.mrf.mxu0
      %v3542 = vadd.f32 %v3381, %v3541
      %v3543 = vpop.f32.mrf.mxu0
      %3544 = vmatprep.mubr.bf16.mxu0 %v3003
      %3545 = vmatmul.mubr.bf16.gmra.mxu0 %v3002
      %v3546 = vpop.f32.mrf.mxu0
      %v3547 = vadd.f32 %v3386, %v3546
      %v3548 = vpop.f32.mrf.mxu0
      %v3549 = vpop.f32.mrf.mxu0
      %v3550 = vadd.f32 %v3389, %v3549
      %v3551 = vpop.f32.mrf.mxu0
      %3552 = vmatprep.mubr.bf16.mxu0 %v3007
      %3553 = vmatmul.mubr.bf16.gmra.mxu0 %v3006
      %v3554 = vpop.f32.mrf.mxu0
      %v3555 = vadd.f32 %v3394, %v3554
      %v3556 = vpop.f32.mrf.mxu0
      %v3557 = vpop.f32.mrf.mxu0
      %v3558 = vadd.f32 %v3397, %v3557
      %v3559 = vpop.f32.mrf.mxu0
      %3560 = vmatprep.mubr.bf16.mxu0 %v3011
      %3561 = vmatmul.mubr.bf16.gmra.mxu0 %v3010
      %v3562 = vpop.f32.mrf.mxu0
      %v3563 = vadd.f32 %v3402, %v3562
      %v3564 = vpop.f32.mrf.mxu0
      %v3565 = vpop.f32.mrf.mxu0
      %v3566 = vadd.f32 %v3405, %v3565
      %v3567 = vpop.f32.mrf.mxu0
      %3568 = vmatprep.mubr.bf16.mxu0 %v3015
      %3569 = vmatmul.mubr.bf16.gmra.mxu0 %v3014
      %v3570 = vpop.f32.mrf.mxu0
      %v3571 = vadd.f32 %v3410, %v3570
      %v3572 = vpop.f32.mrf.mxu0
      %v3573 = vpop.f32.mrf.mxu0
      %v3574 = vadd.f32 %v3413, %v3573
      %v3575 = vpop.f32.mrf.mxu0
      %3576 = vmatprep.mubr.bf16.mxu0 %v3019
      %3577 = vmatmul.mubr.bf16.gmra.mxu0 %v3018
      %v3578 = vpop.f32.mrf.mxu0
      %v3579 = vadd.f32 %v3418, %v3578
      %v3580 = vpop.f32.mrf.mxu0
      %v3581 = vpop.f32.mrf.mxu0
      %v3582 = vadd.f32 %v3421, %v3581
      %v3583 = vpop.f32.mrf.mxu0
      %3584 = vmatprep.mubr.bf16.mxu0 %v3023
      %3585 = vmatmul.mubr.bf16.gmra.mxu0 %v3022
      %v3586 = vpop.f32.mrf.mxu0
      %v3587 = vadd.f32 %v3426, %v3586
      %v3588 = vpop.f32.mrf.mxu0
      %v3589 = vpop.f32.mrf.mxu0
      %v3590 = vadd.f32 %v3429, %v3589
      %v3591 = vpop.f32.mrf.mxu0
      %3592 = vmatprep.mubr.bf16.mxu0 %v3027
      %3593 = vmatmul.mubr.bf16.gmra.mxu0 %v3026
      %v3594 = vpop.f32.mrf.mxu0
      %v3595 = vadd.f32 %v3434, %v3594
      %v3596 = vpop.f32.mrf.mxu0
      %v3597 = vpop.f32.mrf.mxu0
      %v3598 = vadd.f32 %v3437, %v3597
      %v3599 = vpop.f32.mrf.mxu0
      %3600 = vmatprep.mubr.bf16.mxu0 %v3031
      %3601 = vmatmul.mubr.bf16.gmra.mxu0 %v3030
      %v3602 = vpop.f32.mrf.mxu0
      %v3603 = vadd.f32 %v3442, %v3602
      %v3604 = vpop.f32.mrf.mxu0
      %v3605 = vpop.f32.mrf.mxu0
      %v3606 = vadd.f32 %v3445, %v3605
      %v3607 = vpop.f32.mrf.mxu0
      %3608 = vmatprep.mubr.bf16.mxu0 %v3035
      %3609 = vmatmul.mubr.bf16.gmra.mxu0 %v3034
      %v3610 = vpop.f32.mrf.mxu0
      %v3611 = vadd.f32 %v3450, %v3610
      %v3612 = vpop.f32.mrf.mxu0
      %v3613 = vpop.f32.mrf.mxu0
      %v3614 = vadd.f32 %v3453, %v3613
      %v3615 = vpop.f32.mrf.mxu0
      %3616 = vmatprep.mubr.bf16.mxu0 %v3039
      %3617 = vmatmul.mubr.bf16.gmra.mxu0 %v3038
      %v3618 = vpop.f32.mrf.mxu0
      %v3619 = vadd.f32 %v3458, %v3618
      %v3620 = vpop.f32.mrf.mxu0
      %v3621 = vpop.f32.mrf.mxu0
      %v3622 = vadd.f32 %v3461, %v3621
      %v3623 = vpop.f32.mrf.mxu0
      %3624 = vdwg.mxu0
      %v3625 = vmax.f32 %v3499, 0.0
      %v3626 = vmax.f32 %v3502, 0.0
      %v3627 = vmax.f32 %v3507, 0.0
      %v3628 = vmax.f32 %v3510, 0.0
      %v3629 = vmax.f32 %v3515, 0.0
      %v3630 = vmax.f32 %v3518, 0.0
      %v3631 = vmax.f32 %v3523, 0.0
      %v3632 = vmax.f32 %v3526, 0.0
      %v3633 = vmax.f32 %v3531, 0.0
      %v3634 = vmax.f32 %v3534, 0.0
      %v3635 = vmax.f32 %v3539, 0.0
      %v3636 = vmax.f32 %v3542, 0.0
      %v3637 = vmax.f32 %v3547, 0.0
      %v3638 = vmax.f32 %v3550, 0.0
      %v3639 = vmax.f32 %v3555, 0.0
      %v3640 = vmax.f32 %v3558, 0.0
      %v3641 = vmax.f32 %v3563, 0.0
      %v3642 = vmax.f32 %v3566, 0.0
      %v3643 = vmax.f32 %v3571, 0.0
      %v3644 = vmax.f32 %v3574, 0.0
      %v3645 = vmax.f32 %v3579, 0.0
      %v3646 = vmax.f32 %v3582, 0.0
      %v3647 = vmax.f32 %v3587, 0.0
      %v3648 = vmax.f32 %v3590, 0.0
      %v3649 = vmax.f32 %v3595, 0.0
      %v3650 = vmax.f32 %v3598, 0.0
      %v3651 = vmax.f32 %v3603, 0.0
      %v3652 = vmax.f32 %v3606, 0.0
      %v3653 = vmax.f32 %v3611, 0.0
      %v3654 = vmax.f32 %v3614, 0.0
      %v3655 = vmax.f32 %v3619, 0.0
      %v3656 = vmax.f32 %v3622, 0.0
      %v3657 = vld [vmem:[%s13] sm:$0x1]
      %v3659 = vlaneseq
      %v3660 = vshrl.u32 %v3659, 7
      %v3661 = vsub.s32 0, %v3660
      %v3662 = vrot.slane %v3657, %v3661
      %v3664 = vmul.f32 %v3625, %v3662
      %v3665 = vmul.f32 %v3626, %v3662
      %v3666 = vmul.f32 %v3627, %v3662
      %v3667 = vmul.f32 %v3628, %v3662
      %v3668 = vmul.f32 %v3629, %v3662
      %v3669 = vmul.f32 %v3630, %v3662
      %v3670 = vmul.f32 %v3631, %v3662
      %v3671 = vmul.f32 %v3632, %v3662
      %v3672 = vmul.f32 %v3633, %v3662
      %v3673 = vmul.f32 %v3634, %v3662
      %v3674 = vmul.f32 %v3635, %v3662
      %v3675 = vmul.f32 %v3636, %v3662
      %v3676 = vmul.f32 %v3637, %v3662
      %v3677 = vmul.f32 %v3638, %v3662
      %v3678 = vmul.f32 %v3639, %v3662
      %v3679 = vmul.f32 %v3640, %v3662
      %v3680 = vmul.f32 %v3641, %v3662
      %v3681 = vmul.f32 %v3642, %v3662
      %v3682 = vmul.f32 %v3643, %v3662
      %v3683 = vmul.f32 %v3644, %v3662
      %v3684 = vmul.f32 %v3645, %v3662
      %v3685 = vmul.f32 %v3646, %v3662
      %v3686 = vmul.f32 %v3647, %v3662
      %v3687 = vmul.f32 %v3648, %v3662
      %v3688 = vmul.f32 %v3649, %v3662
      %v3689 = vmul.f32 %v3650, %v3662
      %v3690 = vmul.f32 %v3651, %v3662
      %v3691 = vmul.f32 %v3652, %v3662
      %v3692 = vmul.f32 %v3653, %v3662
      %v3693 = vmul.f32 %v3654, %v3662
      %v3694 = vmul.f32 %v3655, %v3662
      %v3695 = vmul.f32 %v3656, %v3662
      %3696 = vadd.xlane.f32.xlu0 %v3664
      %v3697 = vpop.xlane.xlu0 %3696
      %3698 = vadd.xlane.f32.xlu0 %v3665
      %v3699 = vpop.xlane.xlu0 %3698
      %3700 = vadd.xlane.f32.xlu0 %v3666
      %v3701 = vpop.xlane.xlu0 %3700
      %3702 = vadd.xlane.f32.xlu0 %v3667
      %v3703 = vpop.xlane.xlu0 %3702
      %3704 = vadd.xlane.f32.xlu0 %v3668
      %v3705 = vpop.xlane.xlu0 %3704
      %3706 = vadd.xlane.f32.xlu0 %v3669
      %v3707 = vpop.xlane.xlu0 %3706
      %3708 = vadd.xlane.f32.xlu0 %v3670
      %v3709 = vpop.xlane.xlu0 %3708
      %3710 = vadd.xlane.f32.xlu0 %v3671
      %v3711 = vpop.xlane.xlu0 %3710
      %3712 = vadd.xlane.f32.xlu0 %v3672
      %v3713 = vpop.xlane.xlu0 %3712
      %3714 = vadd.xlane.f32.xlu0 %v3673
      %v3715 = vpop.xlane.xlu0 %3714
      %3716 = vadd.xlane.f32.xlu0 %v3674
      %v3717 = vpop.xlane.xlu0 %3716
      %3718 = vadd.xlane.f32.xlu0 %v3675
      %v3719 = vpop.xlane.xlu0 %3718
      %3720 = vadd.xlane.f32.xlu0 %v3676
      %v3721 = vpop.xlane.xlu0 %3720
      %3722 = vadd.xlane.f32.xlu0 %v3677
      %v3723 = vpop.xlane.xlu0 %3722
      %3724 = vadd.xlane.f32.xlu0 %v3678
      %v3725 = vpop.xlane.xlu0 %3724
      %3726 = vadd.xlane.f32.xlu0 %v3679
      %v3727 = vpop.xlane.xlu0 %3726
      %3728 = vadd.xlane.f32.xlu0 %v3680
      %v3729 = vpop.xlane.xlu0 %3728
      %3730 = vadd.xlane.f32.xlu0 %v3681
      %v3731 = vpop.xlane.xlu0 %3730
      %3732 = vadd.xlane.f32.xlu0 %v3682
      %v3733 = vpop.xlane.xlu0 %3732
      %3734 = vadd.xlane.f32.xlu0 %v3683
      %v3735 = vpop.xlane.xlu0 %3734
      %3736 = vadd.xlane.f32.xlu0 %v3684
      %v3737 = vpop.xlane.xlu0 %3736
      %3738 = vadd.xlane.f32.xlu0 %v3685
      %v3739 = vpop.xlane.xlu0 %3738
      %3740 = vadd.xlane.f32.xlu0 %v3686
      %v3741 = vpop.xlane.xlu0 %3740
      %3742 = vadd.xlane.f32.xlu0 %v3687
      %v3743 = vpop.xlane.xlu0 %3742
      %3744 = vadd.xlane.f32.xlu0 %v3688
      %v3745 = vpop.xlane.xlu0 %3744
      %3746 = vadd.xlane.f32.xlu0 %v3689
      %v3747 = vpop.xlane.xlu0 %3746
      %3748 = vadd.xlane.f32.xlu0 %v3690
      %v3749 = vpop.xlane.xlu0 %3748
      %3750 = vadd.xlane.f32.xlu0 %v3691
      %v3751 = vpop.xlane.xlu0 %3750
      %3752 = vadd.xlane.f32.xlu0 %v3692
      %v3753 = vpop.xlane.xlu0 %3752
      %3754 = vadd.xlane.f32.xlu0 %v3693
      %v3755 = vpop.xlane.xlu0 %3754
      %3756 = vadd.xlane.f32.xlu0 %v3694
      %v3757 = vpop.xlane.xlu0 %3756
      %3758 = vadd.xlane.f32.xlu0 %v3695
      %v3759 = vpop.xlane.xlu0 %3758
      %v3760 = vld [vmem:[#allocation2] sm:$0x1]
      %3762 = vset.pattern.permute.xlu0 0
      %3763 = vperm.xlu0 %3762, %v3760
      %v3764 = vpop.permute.xlu0 %3763
      %v3766 = vlaneseq
      %v3767 = vshrl.u32 %v3766, 7
      %v3768 = vsub.s32 0, %v3767
      %v3769 = vrot.slane %v3764, %v3768
      %v3770 = vadd.f32 %v3697, %v3769
      %v3771 = vadd.f32 %v3699, %v3769
      %v3772 = vadd.f32 %v3701, %v3769
      %v3773 = vadd.f32 %v3703, %v3769
      %v3774 = vadd.f32 %v3705, %v3769
      %v3775 = vadd.f32 %v3707, %v3769
      %v3776 = vadd.f32 %v3709, %v3769
      %v3777 = vadd.f32 %v3711, %v3769
      %v3778 = vadd.f32 %v3713, %v3769
      %v3779 = vadd.f32 %v3715, %v3769
      %v3780 = vadd.f32 %v3717, %v3769
      %v3781 = vadd.f32 %v3719, %v3769
      %v3782 = vadd.f32 %v3721, %v3769
      %v3783 = vadd.f32 %v3723, %v3769
      %v3784 = vadd.f32 %v3725, %v3769
      %v3785 = vadd.f32 %v3727, %v3769
      %v3786 = vadd.f32 %v3729, %v3769
      %v3787 = vadd.f32 %v3731, %v3769
      %v3788 = vadd.f32 %v3733, %v3769
      %v3789 = vadd.f32 %v3735, %v3769
      %v3790 = vadd.f32 %v3737, %v3769
      %v3791 = vadd.f32 %v3739, %v3769
      %v3792 = vadd.f32 %v3741, %v3769
      %v3793 = vadd.f32 %v3743, %v3769
      %v3794 = vadd.f32 %v3745, %v3769
      %v3795 = vadd.f32 %v3747, %v3769
      %v3796 = vadd.f32 %v3749, %v3769
      %v3797 = vadd.f32 %v3751, %v3769
      %v3798 = vadd.f32 %v3753, %v3769
      %v3799 = vadd.f32 %v3755, %v3769
      %v3800 = vadd.f32 %v3757, %v3769
      %v3801 = vadd.f32 %v3759, %v3769
      %v3802 = vxor.u32 %v3770, 2147483648
      %v3803 = vxor.u32 %v3771, 2147483648
      %v3804 = vxor.u32 %v3772, 2147483648
      %v3805 = vxor.u32 %v3773, 2147483648
      %v3806 = vxor.u32 %v3774, 2147483648
      %v3807 = vxor.u32 %v3775, 2147483648
      %v3808 = vxor.u32 %v3776, 2147483648
      %v3809 = vxor.u32 %v3777, 2147483648
      %v3810 = vxor.u32 %v3778, 2147483648
      %v3811 = vxor.u32 %v3779, 2147483648
      %v3812 = vxor.u32 %v3780, 2147483648
      %v3813 = vxor.u32 %v3781, 2147483648
      %v3814 = vxor.u32 %v3782, 2147483648
      %v3815 = vxor.u32 %v3783, 2147483648
      %v3816 = vxor.u32 %v3784, 2147483648
      %v3817 = vxor.u32 %v3785, 2147483648
      %v3818 = vxor.u32 %v3786, 2147483648
      %v3819 = vxor.u32 %v3787, 2147483648
      %v3820 = vxor.u32 %v3788, 2147483648
      %v3821 = vxor.u32 %v3789, 2147483648
      %v3822 = vxor.u32 %v3790, 2147483648
      %v3823 = vxor.u32 %v3791, 2147483648
      %v3824 = vxor.u32 %v3792, 2147483648
      %v3825 = vxor.u32 %v3793, 2147483648
      %v3826 = vxor.u32 %v3794, 2147483648
      %v3827 = vxor.u32 %v3795, 2147483648
      %v3828 = vxor.u32 %v3796, 2147483648
      %v3829 = vxor.u32 %v3797, 2147483648
      %v3830 = vxor.u32 %v3798, 2147483648
      %v3831 = vxor.u32 %v3799, 2147483648
      %v3832 = vxor.u32 %v3800, 2147483648
      %v3833 = vxor.u32 %v3801, 2147483648
      %v3834 = vmul.f32 %v3802, 1.442695
      %v3835 = vpow.pop %v3834
      %v3836 = vmul.f32 %v3803, 1.442695
      %v3837 = vpow.pop %v3836
      %v3838 = vmul.f32 %v3804, 1.442695
      %v3839 = vpow.pop %v3838
      %v3840 = vmul.f32 %v3805, 1.442695
      %v3841 = vpow.pop %v3840
      %v3842 = vmul.f32 %v3806, 1.442695
      %v3843 = vpow.pop %v3842
      %v3844 = vmul.f32 %v3807, 1.442695
      %v3845 = vpow.pop %v3844
      %v3846 = vmul.f32 %v3808, 1.442695
      %v3847 = vpow.pop %v3846
      %v3848 = vmul.f32 %v3809, 1.442695
      %v3849 = vpow.pop %v3848
      %v3850 = vmul.f32 %v3810, 1.442695
      %v3851 = vpow.pop %v3850
      %v3852 = vmul.f32 %v3811, 1.442695
      %v3853 = vpow.pop %v3852
      %v3854 = vmul.f32 %v3812, 1.442695
      %v3855 = vpow.pop %v3854
      %v3856 = vmul.f32 %v3813, 1.442695
      %v3857 = vpow.pop %v3856
      %v3858 = vmul.f32 %v3814, 1.442695
      %v3859 = vpow.pop %v3858
      %v3860 = vmul.f32 %v3815, 1.442695
      %v3861 = vpow.pop %v3860
      %v3862 = vmul.f32 %v3816, 1.442695
      %v3863 = vpow.pop %v3862
      %v3864 = vmul.f32 %v3817, 1.442695
      %v3865 = vpow.pop %v3864
      %v3866 = vmul.f32 %v3818, 1.442695
      %v3867 = vpow.pop %v3866
      %v3868 = vmul.f32 %v3819, 1.442695
      %v3869 = vpow.pop %v3868
      %v3870 = vmul.f32 %v3820, 1.442695
      %v3871 = vpow.pop %v3870
      %v3872 = vmul.f32 %v3821, 1.442695
      %v3873 = vpow.pop %v3872
      %v3874 = vmul.f32 %v3822, 1.442695
      %v3875 = vpow.pop %v3874
      %v3876 = vmul.f32 %v3823, 1.442695
      %v3877 = vpow.pop %v3876
      %v3878 = vmul.f32 %v3824, 1.442695
      %v3879 = vpow.pop %v3878
      %v3880 = vmul.f32 %v3825, 1.442695
      %v3881 = vpow.pop %v3880
      %v3882 = vmul.f32 %v3826, 1.442695
      %v3883 = vpow.pop %v3882
      %v3884 = vmul.f32 %v3827, 1.442695
      %v3885 = vpow.pop %v3884
      %v3886 = vmul.f32 %v3828, 1.442695
      %v3887 = vpow.pop %v3886
      %v3888 = vmul.f32 %v3829, 1.442695
      %v3889 = vpow.pop %v3888
      %v3890 = vmul.f32 %v3830, 1.442695
      %v3891 = vpow.pop %v3890
      %v3892 = vmul.f32 %v3831, 1.442695
      %v3893 = vpow.pop %v3892
      %v3894 = vmul.f32 %v3832, 1.442695
      %v3895 = vpow.pop %v3894
      %v3896 = vmul.f32 %v3833, 1.442695
      %v3897 = vpow.pop %v3896
      %v3898 = vadd.f32 %v3835, 1.0
      %v3899 = vadd.f32 %v3837, 1.0
      %v3900 = vadd.f32 %v3839, 1.0
      %v3901 = vadd.f32 %v3841, 1.0
      %v3902 = vadd.f32 %v3843, 1.0
      %v3903 = vadd.f32 %v3845, 1.0
      %v3904 = vadd.f32 %v3847, 1.0
      %v3905 = vadd.f32 %v3849, 1.0
      %v3906 = vadd.f32 %v3851, 1.0
      %v3907 = vadd.f32 %v3853, 1.0
      %v3908 = vadd.f32 %v3855, 1.0
      %v3909 = vadd.f32 %v3857, 1.0
      %v3910 = vadd.f32 %v3859, 1.0
      %v3911 = vadd.f32 %v3861, 1.0
      %v3912 = vadd.f32 %v3863, 1.0
      %v3913 = vadd.f32 %v3865, 1.0
      %v3914 = vadd.f32 %v3867, 1.0
      %v3915 = vadd.f32 %v3869, 1.0
      %v3916 = vadd.f32 %v3871, 1.0
      %v3917 = vadd.f32 %v3873, 1.0
      %v3918 = vadd.f32 %v3875, 1.0
      %v3919 = vadd.f32 %v3877, 1.0
      %v3920 = vadd.f32 %v3879, 1.0
      %v3921 = vadd.f32 %v3881, 1.0
      %v3922 = vadd.f32 %v3883, 1.0
      %v3923 = vadd.f32 %v3885, 1.0
      %v3924 = vadd.f32 %v3887, 1.0
      %v3925 = vadd.f32 %v3889, 1.0
      %v3926 = vadd.f32 %v3891, 1.0
      %v3927 = vadd.f32 %v3893, 1.0
      %v3928 = vadd.f32 %v3895, 1.0
      %v3929 = vadd.f32 %v3897, 1.0
      %v3930 = vrcp.pop %v3898
      %v3931 = vmul.f32 1.0, %v3930
      %v3932 = vrcp.pop %v3899
      %v3933 = vmul.f32 1.0, %v3932
      %v3934 = vrcp.pop %v3900
      %v3935 = vmul.f32 1.0, %v3934
      %v3936 = vrcp.pop %v3901
      %v3937 = vmul.f32 1.0, %v3936
      %v3938 = vrcp.pop %v3902
      %v3939 = vmul.f32 1.0, %v3938
      %v3940 = vrcp.pop %v3903
      %v3941 = vmul.f32 1.0, %v3940
      %v3942 = vrcp.pop %v3904
      %v3943 = vmul.f32 1.0, %v3942
      %v3944 = vrcp.pop %v3905
      %v3945 = vmul.f32 1.0, %v3944
      %v3946 = vrcp.pop %v3906
      %v3947 = vmul.f32 1.0, %v3946
      %v3948 = vrcp.pop %v3907
      %v3949 = vmul.f32 1.0, %v3948
      %v3950 = vrcp.pop %v3908
      %v3951 = vmul.f32 1.0, %v3950
      %v3952 = vrcp.pop %v3909
      %v3953 = vmul.f32 1.0, %v3952
      %v3954 = vrcp.pop %v3910
      %v3955 = vmul.f32 1.0, %v3954
      %v3956 = vrcp.pop %v3911
      %v3957 = vmul.f32 1.0, %v3956
      %v3958 = vrcp.pop %v3912
      %v3959 = vmul.f32 1.0, %v3958
      %v3960 = vrcp.pop %v3913
      %v3961 = vmul.f32 1.0, %v3960
      %v3962 = vrcp.pop %v3914
      %v3963 = vmul.f32 1.0, %v3962
      %v3964 = vrcp.pop %v3915
      %v3965 = vmul.f32 1.0, %v3964
      %v3966 = vrcp.pop %v3916
      %v3967 = vmul.f32 1.0, %v3966
      %v3968 = vrcp.pop %v3917
      %v3969 = vmul.f32 1.0, %v3968
      %v3970 = vrcp.pop %v3918
      %v3971 = vmul.f32 1.0, %v3970
      %v3972 = vrcp.pop %v3919
      %v3973 = vmul.f32 1.0, %v3972
      %v3974 = vrcp.pop %v3920
      %v3975 = vmul.f32 1.0, %v3974
      %v3976 = vrcp.pop %v3921
      %v3977 = vmul.f32 1.0, %v3976
      %v3978 = vrcp.pop %v3922
      %v3979 = vmul.f32 1.0, %v3978
      %v3980 = vrcp.pop %v3923
      %v3981 = vmul.f32 1.0, %v3980
      %v3982 = vrcp.pop %v3924
      %v3983 = vmul.f32 1.0, %v3982
      %v3984 = vrcp.pop %v3925
      %v3985 = vmul.f32 1.0, %v3984
      %v3986 = vrcp.pop %v3926
      %v3987 = vmul.f32 1.0, %v3986
      %v3988 = vrcp.pop %v3927
      %v3989 = vmul.f32 1.0, %v3988
      %v3990 = vrcp.pop %v3928
      %v3991 = vmul.f32 1.0, %v3990
      %v3992 = vrcp.pop %v3929
      %v3993 = vmul.f32 1.0, %v3992
      %v4026 = vlaneseq
      %v4027 = vshrl.u32 %v4026, 7
      %v4028 = vsub.s32 0, %v4027
      %v4029 = vrot.slane %v3931, %v4028
      %v4030 = vlaneseq
      %v4031 = vshrl.u32 %v4030, 7
      %v4032 = vsub.s32 1, %v4031
      %v4033 = vrot.slane %v3931, %v4032
      %v4034 = vlaneseq
      %v4035 = vshrl.u32 %v4034, 7
      %v4036 = vsub.s32 2, %v4035
      %v4037 = vrot.slane %v3931, %v4036
      %v4038 = vlaneseq
      %v4039 = vshrl.u32 %v4038, 7
      %v4040 = vsub.s32 3, %v4039
      %v4041 = vrot.slane %v3931, %v4040
      %v4042 = vlaneseq
      %v4043 = vshrl.u32 %v4042, 7
      %v4044 = vsub.s32 4, %v4043
      %v4045 = vrot.slane %v3931, %v4044
      %v4046 = vlaneseq
      %v4047 = vshrl.u32 %v4046, 7
      %v4048 = vsub.s32 5, %v4047
      %v4049 = vrot.slane %v3931, %v4048
      %v4050 = vlaneseq
      %v4051 = vshrl.u32 %v4050, 7
      %v4052 = vsub.s32 6, %v4051
      %v4053 = vrot.slane %v3931, %v4052
      %v4054 = vlaneseq
      %v4055 = vshrl.u32 %v4054, 7
      %v4056 = vsub.s32 7, %v4055
      %v4057 = vrot.slane %v3931, %v4056
      %v4058 = vlaneseq
      %v4059 = vshrl.u32 %v4058, 7
      %v4060 = vsub.s32 0, %v4059
      %v4061 = vrot.slane %v3933, %v4060
      %v4062 = vlaneseq
      %v4063 = vshrl.u32 %v4062, 7
      %v4064 = vsub.s32 1, %v4063
      %v4065 = vrot.slane %v3933, %v4064
      %v4066 = vlaneseq
      %v4067 = vshrl.u32 %v4066, 7
      %v4068 = vsub.s32 2, %v4067
      %v4069 = vrot.slane %v3933, %v4068
      %v4070 = vlaneseq
      %v4071 = vshrl.u32 %v4070, 7
      %v4072 = vsub.s32 3, %v4071
      %v4073 = vrot.slane %v3933, %v4072
      %v4074 = vlaneseq
      %v4075 = vshrl.u32 %v4074, 7
      %v4076 = vsub.s32 4, %v4075
      %v4077 = vrot.slane %v3933, %v4076
      %v4078 = vlaneseq
      %v4079 = vshrl.u32 %v4078, 7
      %v4080 = vsub.s32 5, %v4079
      %v4081 = vrot.slane %v3933, %v4080
      %v4082 = vlaneseq
      %v4083 = vshrl.u32 %v4082, 7
      %v4084 = vsub.s32 6, %v4083
      %v4085 = vrot.slane %v3933, %v4084
      %v4086 = vlaneseq
      %v4087 = vshrl.u32 %v4086, 7
      %v4088 = vsub.s32 7, %v4087
      %v4089 = vrot.slane %v3933, %v4088
      %v4090 = vlaneseq
      %v4091 = vshrl.u32 %v4090, 7
      %v4092 = vsub.s32 0, %v4091
      %v4093 = vrot.slane %v3935, %v4092
      %v4094 = vlaneseq
      %v4095 = vshrl.u32 %v4094, 7
      %v4096 = vsub.s32 1, %v4095
      %v4097 = vrot.slane %v3935, %v4096
      %v4098 = vlaneseq
      %v4099 = vshrl.u32 %v4098, 7
      %v4100 = vsub.s32 2, %v4099
      %v4101 = vrot.slane %v3935, %v4100
      %v4102 = vlaneseq
      %v4103 = vshrl.u32 %v4102, 7
      %v4104 = vsub.s32 3, %v4103
      %v4105 = vrot.slane %v3935, %v4104
      %v4106 = vlaneseq
      %v4107 = vshrl.u32 %v4106, 7
      %v4108 = vsub.s32 4, %v4107
      %v4109 = vrot.slane %v3935, %v4108
      %v4110 = vlaneseq
      %v4111 = vshrl.u32 %v4110, 7
      %v4112 = vsub.s32 5, %v4111
      %v4113 = vrot.slane %v3935, %v4112
      %v4114 = vlaneseq
      %v4115 = vshrl.u32 %v4114, 7
      %v4116 = vsub.s32 6, %v4115
      %v4117 = vrot.slane %v3935, %v4116
      %v4118 = vlaneseq
      %v4119 = vshrl.u32 %v4118, 7
      %v4120 = vsub.s32 7, %v4119
      %v4121 = vrot.slane %v3935, %v4120
      %v4122 = vlaneseq
      %v4123 = vshrl.u32 %v4122, 7
      %v4124 = vsub.s32 0, %v4123
      %v4125 = vrot.slane %v3937, %v4124
      %v4126 = vlaneseq
      %v4127 = vshrl.u32 %v4126, 7
      %v4128 = vsub.s32 1, %v4127
      %v4129 = vrot.slane %v3937, %v4128
      %v4130 = vlaneseq
      %v4131 = vshrl.u32 %v4130, 7
      %v4132 = vsub.s32 2, %v4131
      %v4133 = vrot.slane %v3937, %v4132
      %v4134 = vlaneseq
      %v4135 = vshrl.u32 %v4134, 7
      %v4136 = vsub.s32 3, %v4135
      %v4137 = vrot.slane %v3937, %v4136
      %v4138 = vlaneseq
      %v4139 = vshrl.u32 %v4138, 7
      %v4140 = vsub.s32 4, %v4139
      %v4141 = vrot.slane %v3937, %v4140
      %v4142 = vlaneseq
      %v4143 = vshrl.u32 %v4142, 7
      %v4144 = vsub.s32 5, %v4143
      %v4145 = vrot.slane %v3937, %v4144
      %v4146 = vlaneseq
      %v4147 = vshrl.u32 %v4146, 7
      %v4148 = vsub.s32 6, %v4147
      %v4149 = vrot.slane %v3937, %v4148
      %v4150 = vlaneseq
      %v4151 = vshrl.u32 %v4150, 7
      %v4152 = vsub.s32 7, %v4151
      %v4153 = vrot.slane %v3937, %v4152
      %v4154 = vlaneseq
      %v4155 = vshrl.u32 %v4154, 7
      %v4156 = vsub.s32 0, %v4155
      %v4157 = vrot.slane %v3939, %v4156
      %v4158 = vlaneseq
      %v4159 = vshrl.u32 %v4158, 7
      %v4160 = vsub.s32 1, %v4159
      %v4161 = vrot.slane %v3939, %v4160
      %v4162 = vlaneseq
      %v4163 = vshrl.u32 %v4162, 7
      %v4164 = vsub.s32 2, %v4163
      %v4165 = vrot.slane %v3939, %v4164
      %v4166 = vlaneseq
      %v4167 = vshrl.u32 %v4166, 7
      %v4168 = vsub.s32 3, %v4167
      %v4169 = vrot.slane %v3939, %v4168
      %v4170 = vlaneseq
      %v4171 = vshrl.u32 %v4170, 7
      %v4172 = vsub.s32 4, %v4171
      %v4173 = vrot.slane %v3939, %v4172
      %v4174 = vlaneseq
      %v4175 = vshrl.u32 %v4174, 7
      %v4176 = vsub.s32 5, %v4175
      %v4177 = vrot.slane %v3939, %v4176
      %v4178 = vlaneseq
      %v4179 = vshrl.u32 %v4178, 7
      %v4180 = vsub.s32 6, %v4179
      %v4181 = vrot.slane %v3939, %v4180
      %v4182 = vlaneseq
      %v4183 = vshrl.u32 %v4182, 7
      %v4184 = vsub.s32 7, %v4183
      %v4185 = vrot.slane %v3939, %v4184
      %v4186 = vlaneseq
      %v4187 = vshrl.u32 %v4186, 7
      %v4188 = vsub.s32 0, %v4187
      %v4189 = vrot.slane %v3941, %v4188
      %v4190 = vlaneseq
      %v4191 = vshrl.u32 %v4190, 7
      %v4192 = vsub.s32 1, %v4191
      %v4193 = vrot.slane %v3941, %v4192
      %v4194 = vlaneseq
      %v4195 = vshrl.u32 %v4194, 7
      %v4196 = vsub.s32 2, %v4195
      %v4197 = vrot.slane %v3941, %v4196
      %v4198 = vlaneseq
      %v4199 = vshrl.u32 %v4198, 7
      %v4200 = vsub.s32 3, %v4199
      %v4201 = vrot.slane %v3941, %v4200
      %v4202 = vlaneseq
      %v4203 = vshrl.u32 %v4202, 7
      %v4204 = vsub.s32 4, %v4203
      %v4205 = vrot.slane %v3941, %v4204
      %v4206 = vlaneseq
      %v4207 = vshrl.u32 %v4206, 7
      %v4208 = vsub.s32 5, %v4207
      %v4209 = vrot.slane %v3941, %v4208
      %v4210 = vlaneseq
      %v4211 = vshrl.u32 %v4210, 7
      %v4212 = vsub.s32 6, %v4211
      %v4213 = vrot.slane %v3941, %v4212
      %v4214 = vlaneseq
      %v4215 = vshrl.u32 %v4214, 7
      %v4216 = vsub.s32 7, %v4215
      %v4217 = vrot.slane %v3941, %v4216
      %v4218 = vlaneseq
      %v4219 = vshrl.u32 %v4218, 7
      %v4220 = vsub.s32 0, %v4219
      %v4221 = vrot.slane %v3943, %v4220
      %v4222 = vlaneseq
      %v4223 = vshrl.u32 %v4222, 7
      %v4224 = vsub.s32 1, %v4223
      %v4225 = vrot.slane %v3943, %v4224
      %v4226 = vlaneseq
      %v4227 = vshrl.u32 %v4226, 7
      %v4228 = vsub.s32 2, %v4227
      %v4229 = vrot.slane %v3943, %v4228
      %v4230 = vlaneseq
      %v4231 = vshrl.u32 %v4230, 7
      %v4232 = vsub.s32 3, %v4231
      %v4233 = vrot.slane %v3943, %v4232
      %v4234 = vlaneseq
      %v4235 = vshrl.u32 %v4234, 7
      %v4236 = vsub.s32 4, %v4235
      %v4237 = vrot.slane %v3943, %v4236
      %v4238 = vlaneseq
      %v4239 = vshrl.u32 %v4238, 7
      %v4240 = vsub.s32 5, %v4239
      %v4241 = vrot.slane %v3943, %v4240
      %v4242 = vlaneseq
      %v4243 = vshrl.u32 %v4242, 7
      %v4244 = vsub.s32 6, %v4243
      %v4245 = vrot.slane %v3943, %v4244
      %v4246 = vlaneseq
      %v4247 = vshrl.u32 %v4246, 7
      %v4248 = vsub.s32 7, %v4247
      %v4249 = vrot.slane %v3943, %v4248
      %v4250 = vlaneseq
      %v4251 = vshrl.u32 %v4250, 7
      %v4252 = vsub.s32 0, %v4251
      %v4253 = vrot.slane %v3945, %v4252
      %v4254 = vlaneseq
      %v4255 = vshrl.u32 %v4254, 7
      %v4256 = vsub.s32 1, %v4255
      %v4257 = vrot.slane %v3945, %v4256
      %v4258 = vlaneseq
      %v4259 = vshrl.u32 %v4258, 7
      %v4260 = vsub.s32 2, %v4259
      %v4261 = vrot.slane %v3945, %v4260
      %v4262 = vlaneseq
      %v4263 = vshrl.u32 %v4262, 7
      %v4264 = vsub.s32 3, %v4263
      %v4265 = vrot.slane %v3945, %v4264
      %v4266 = vlaneseq
      %v4267 = vshrl.u32 %v4266, 7
      %v4268 = vsub.s32 4, %v4267
      %v4269 = vrot.slane %v3945, %v4268
      %v4270 = vlaneseq
      %v4271 = vshrl.u32 %v4270, 7
      %v4272 = vsub.s32 5, %v4271
      %v4273 = vrot.slane %v3945, %v4272
      %v4274 = vlaneseq
      %v4275 = vshrl.u32 %v4274, 7
      %v4276 = vsub.s32 6, %v4275
      %v4277 = vrot.slane %v3945, %v4276
      %v4278 = vlaneseq
      %v4279 = vshrl.u32 %v4278, 7
      %v4280 = vsub.s32 7, %v4279
      %v4281 = vrot.slane %v3945, %v4280
      %v4282 = vlaneseq
      %v4283 = vshrl.u32 %v4282, 7
      %v4284 = vsub.s32 0, %v4283
      %v4285 = vrot.slane %v3947, %v4284
      %v4286 = vlaneseq
      %v4287 = vshrl.u32 %v4286, 7
      %v4288 = vsub.s32 1, %v4287
      %v4289 = vrot.slane %v3947, %v4288
      %v4290 = vlaneseq
      %v4291 = vshrl.u32 %v4290, 7
      %v4292 = vsub.s32 2, %v4291
      %v4293 = vrot.slane %v3947, %v4292
      %v4294 = vlaneseq
      %v4295 = vshrl.u32 %v4294, 7
      %v4296 = vsub.s32 3, %v4295
      %v4297 = vrot.slane %v3947, %v4296
      %v4298 = vlaneseq
      %v4299 = vshrl.u32 %v4298, 7
      %v4300 = vsub.s32 4, %v4299
      %v4301 = vrot.slane %v3947, %v4300
      %v4302 = vlaneseq
      %v4303 = vshrl.u32 %v4302, 7
      %v4304 = vsub.s32 5, %v4303
      %v4305 = vrot.slane %v3947, %v4304
      %v4306 = vlaneseq
      %v4307 = vshrl.u32 %v4306, 7
      %v4308 = vsub.s32 6, %v4307
      %v4309 = vrot.slane %v3947, %v4308
      %v4310 = vlaneseq
      %v4311 = vshrl.u32 %v4310, 7
      %v4312 = vsub.s32 7, %v4311
      %v4313 = vrot.slane %v3947, %v4312
      %v4314 = vlaneseq
      %v4315 = vshrl.u32 %v4314, 7
      %v4316 = vsub.s32 0, %v4315
      %v4317 = vrot.slane %v3949, %v4316
      %v4318 = vlaneseq
      %v4319 = vshrl.u32 %v4318, 7
      %v4320 = vsub.s32 1, %v4319
      %v4321 = vrot.slane %v3949, %v4320
      %v4322 = vlaneseq
      %v4323 = vshrl.u32 %v4322, 7
      %v4324 = vsub.s32 2, %v4323
      %v4325 = vrot.slane %v3949, %v4324
      %v4326 = vlaneseq
      %v4327 = vshrl.u32 %v4326, 7
      %v4328 = vsub.s32 3, %v4327
      %v4329 = vrot.slane %v3949, %v4328
      %v4330 = vlaneseq
      %v4331 = vshrl.u32 %v4330, 7
      %v4332 = vsub.s32 4, %v4331
      %v4333 = vrot.slane %v3949, %v4332
      %v4334 = vlaneseq
      %v4335 = vshrl.u32 %v4334, 7
      %v4336 = vsub.s32 5, %v4335
      %v4337 = vrot.slane %v3949, %v4336
      %v4338 = vlaneseq
      %v4339 = vshrl.u32 %v4338, 7
      %v4340 = vsub.s32 6, %v4339
      %v4341 = vrot.slane %v3949, %v4340
      %v4342 = vlaneseq
      %v4343 = vshrl.u32 %v4342, 7
      %v4344 = vsub.s32 7, %v4343
      %v4345 = vrot.slane %v3949, %v4344
      %v4346 = vlaneseq
      %v4347 = vshrl.u32 %v4346, 7
      %v4348 = vsub.s32 0, %v4347
      %v4349 = vrot.slane %v3951, %v4348
      %v4350 = vlaneseq
      %v4351 = vshrl.u32 %v4350, 7
      %v4352 = vsub.s32 1, %v4351
      %v4353 = vrot.slane %v3951, %v4352
      %v4354 = vlaneseq
      %v4355 = vshrl.u32 %v4354, 7
      %v4356 = vsub.s32 2, %v4355
      %v4357 = vrot.slane %v3951, %v4356
      %v4358 = vlaneseq
      %v4359 = vshrl.u32 %v4358, 7
      %v4360 = vsub.s32 3, %v4359
      %v4361 = vrot.slane %v3951, %v4360
      %v4362 = vlaneseq
      %v4363 = vshrl.u32 %v4362, 7
      %v4364 = vsub.s32 4, %v4363
      %v4365 = vrot.slane %v3951, %v4364
      %v4366 = vlaneseq
      %v4367 = vshrl.u32 %v4366, 7
      %v4368 = vsub.s32 5, %v4367
      %v4369 = vrot.slane %v3951, %v4368
      %v4370 = vlaneseq
      %v4371 = vshrl.u32 %v4370, 7
      %v4372 = vsub.s32 6, %v4371
      %v4373 = vrot.slane %v3951, %v4372
      %v4374 = vlaneseq
      %v4375 = vshrl.u32 %v4374, 7
      %v4376 = vsub.s32 7, %v4375
      %v4377 = vrot.slane %v3951, %v4376
      %v4378 = vlaneseq
      %v4379 = vshrl.u32 %v4378, 7
      %v4380 = vsub.s32 0, %v4379
      %v4381 = vrot.slane %v3953, %v4380
      %v4382 = vlaneseq
      %v4383 = vshrl.u32 %v4382, 7
      %v4384 = vsub.s32 1, %v4383
      %v4385 = vrot.slane %v3953, %v4384
      %v4386 = vlaneseq
      %v4387 = vshrl.u32 %v4386, 7
      %v4388 = vsub.s32 2, %v4387
      %v4389 = vrot.slane %v3953, %v4388
      %v4390 = vlaneseq
      %v4391 = vshrl.u32 %v4390, 7
      %v4392 = vsub.s32 3, %v4391
      %v4393 = vrot.slane %v3953, %v4392
      %v4394 = vlaneseq
      %v4395 = vshrl.u32 %v4394, 7
      %v4396 = vsub.s32 4, %v4395
      %v4397 = vrot.slane %v3953, %v4396
      %v4398 = vlaneseq
      %v4399 = vshrl.u32 %v4398, 7
      %v4400 = vsub.s32 5, %v4399
      %v4401 = vrot.slane %v3953, %v4400
      %v4402 = vlaneseq
      %v4403 = vshrl.u32 %v4402, 7
      %v4404 = vsub.s32 6, %v4403
      %v4405 = vrot.slane %v3953, %v4404
      %v4406 = vlaneseq
      %v4407 = vshrl.u32 %v4406, 7
      %v4408 = vsub.s32 7, %v4407
      %v4409 = vrot.slane %v3953, %v4408
      %v4410 = vlaneseq
      %v4411 = vshrl.u32 %v4410, 7
      %v4412 = vsub.s32 0, %v4411
      %v4413 = vrot.slane %v3955, %v4412
      %v4414 = vlaneseq
      %v4415 = vshrl.u32 %v4414, 7
      %v4416 = vsub.s32 1, %v4415
      %v4417 = vrot.slane %v3955, %v4416
      %v4418 = vlaneseq
      %v4419 = vshrl.u32 %v4418, 7
      %v4420 = vsub.s32 2, %v4419
      %v4421 = vrot.slane %v3955, %v4420
      %v4422 = vlaneseq
      %v4423 = vshrl.u32 %v4422, 7
      %v4424 = vsub.s32 3, %v4423
      %v4425 = vrot.slane %v3955, %v4424
      %v4426 = vlaneseq
      %v4427 = vshrl.u32 %v4426, 7
      %v4428 = vsub.s32 4, %v4427
      %v4429 = vrot.slane %v3955, %v4428
      %v4430 = vlaneseq
      %v4431 = vshrl.u32 %v4430, 7
      %v4432 = vsub.s32 5, %v4431
      %v4433 = vrot.slane %v3955, %v4432
      %v4434 = vlaneseq
      %v4435 = vshrl.u32 %v4434, 7
      %v4436 = vsub.s32 6, %v4435
      %v4437 = vrot.slane %v3955, %v4436
      %v4438 = vlaneseq
      %v4439 = vshrl.u32 %v4438, 7
      %v4440 = vsub.s32 7, %v4439
      %v4441 = vrot.slane %v3955, %v4440
      %v4442 = vlaneseq
      %v4443 = vshrl.u32 %v4442, 7
      %v4444 = vsub.s32 0, %v4443
      %v4445 = vrot.slane %v3957, %v4444
      %v4446 = vlaneseq
      %v4447 = vshrl.u32 %v4446, 7
      %v4448 = vsub.s32 1, %v4447
      %v4449 = vrot.slane %v3957, %v4448
      %v4450 = vlaneseq
      %v4451 = vshrl.u32 %v4450, 7
      %v4452 = vsub.s32 2, %v4451
      %v4453 = vrot.slane %v3957, %v4452
      %v4454 = vlaneseq
      %v4455 = vshrl.u32 %v4454, 7
      %v4456 = vsub.s32 3, %v4455
      %v4457 = vrot.slane %v3957, %v4456
      %v4458 = vlaneseq
      %v4459 = vshrl.u32 %v4458, 7
      %v4460 = vsub.s32 4, %v4459
      %v4461 = vrot.slane %v3957, %v4460
      %v4462 = vlaneseq
      %v4463 = vshrl.u32 %v4462, 7
      %v4464 = vsub.s32 5, %v4463
      %v4465 = vrot.slane %v3957, %v4464
      %v4466 = vlaneseq
      %v4467 = vshrl.u32 %v4466, 7
      %v4468 = vsub.s32 6, %v4467
      %v4469 = vrot.slane %v3957, %v4468
      %v4470 = vlaneseq
      %v4471 = vshrl.u32 %v4470, 7
      %v4472 = vsub.s32 7, %v4471
      %v4473 = vrot.slane %v3957, %v4472
      %v4474 = vlaneseq
      %v4475 = vshrl.u32 %v4474, 7
      %v4476 = vsub.s32 0, %v4475
      %v4477 = vrot.slane %v3959, %v4476
      %v4478 = vlaneseq
      %v4479 = vshrl.u32 %v4478, 7
      %v4480 = vsub.s32 1, %v4479
      %v4481 = vrot.slane %v3959, %v4480
      %v4482 = vlaneseq
      %v4483 = vshrl.u32 %v4482, 7
      %v4484 = vsub.s32 2, %v4483
      %v4485 = vrot.slane %v3959, %v4484
      %v4486 = vlaneseq
      %v4487 = vshrl.u32 %v4486, 7
      %v4488 = vsub.s32 3, %v4487
      %v4489 = vrot.slane %v3959, %v4488
      %v4490 = vlaneseq
      %v4491 = vshrl.u32 %v4490, 7
      %v4492 = vsub.s32 4, %v4491
      %v4493 = vrot.slane %v3959, %v4492
      %v4494 = vlaneseq
      %v4495 = vshrl.u32 %v4494, 7
      %v4496 = vsub.s32 5, %v4495
      %v4497 = vrot.slane %v3959, %v4496
      %v4498 = vlaneseq
      %v4499 = vshrl.u32 %v4498, 7
      %v4500 = vsub.s32 6, %v4499
      %v4501 = vrot.slane %v3959, %v4500
      %v4502 = vlaneseq
      %v4503 = vshrl.u32 %v4502, 7
      %v4504 = vsub.s32 7, %v4503
      %v4505 = vrot.slane %v3959, %v4504
      %v4506 = vlaneseq
      %v4507 = vshrl.u32 %v4506, 7
      %v4508 = vsub.s32 0, %v4507
      %v4509 = vrot.slane %v3961, %v4508
      %v4510 = vlaneseq
      %v4511 = vshrl.u32 %v4510, 7
      %v4512 = vsub.s32 1, %v4511
      %v4513 = vrot.slane %v3961, %v4512
      %v4514 = vlaneseq
      %v4515 = vshrl.u32 %v4514, 7
      %v4516 = vsub.s32 2, %v4515
      %v4517 = vrot.slane %v3961, %v4516
      %v4518 = vlaneseq
      %v4519 = vshrl.u32 %v4518, 7
      %v4520 = vsub.s32 3, %v4519
      %v4521 = vrot.slane %v3961, %v4520
      %v4522 = vlaneseq
      %v4523 = vshrl.u32 %v4522, 7
      %v4524 = vsub.s32 4, %v4523
      %v4525 = vrot.slane %v3961, %v4524
      %v4526 = vlaneseq
      %v4527 = vshrl.u32 %v4526, 7
      %v4528 = vsub.s32 5, %v4527
      %v4529 = vrot.slane %v3961, %v4528
      %v4530 = vlaneseq
      %v4531 = vshrl.u32 %v4530, 7
      %v4532 = vsub.s32 6, %v4531
      %v4533 = vrot.slane %v3961, %v4532
      %v4534 = vlaneseq
      %v4535 = vshrl.u32 %v4534, 7
      %v4536 = vsub.s32 7, %v4535
      %v4537 = vrot.slane %v3961, %v4536
      %v4538 = vlaneseq
      %v4539 = vshrl.u32 %v4538, 7
      %v4540 = vsub.s32 0, %v4539
      %v4541 = vrot.slane %v3963, %v4540
      %v4542 = vlaneseq
      %v4543 = vshrl.u32 %v4542, 7
      %v4544 = vsub.s32 1, %v4543
      %v4545 = vrot.slane %v3963, %v4544
      %v4546 = vlaneseq
      %v4547 = vshrl.u32 %v4546, 7
      %v4548 = vsub.s32 2, %v4547
      %v4549 = vrot.slane %v3963, %v4548
      %v4550 = vlaneseq
      %v4551 = vshrl.u32 %v4550, 7
      %v4552 = vsub.s32 3, %v4551
      %v4553 = vrot.slane %v3963, %v4552
      %v4554 = vlaneseq
      %v4555 = vshrl.u32 %v4554, 7
      %v4556 = vsub.s32 4, %v4555
      %v4557 = vrot.slane %v3963, %v4556
      %v4558 = vlaneseq
      %v4559 = vshrl.u32 %v4558, 7
      %v4560 = vsub.s32 5, %v4559
      %v4561 = vrot.slane %v3963, %v4560
      %v4562 = vlaneseq
      %v4563 = vshrl.u32 %v4562, 7
      %v4564 = vsub.s32 6, %v4563
      %v4565 = vrot.slane %v3963, %v4564
      %v4566 = vlaneseq
      %v4567 = vshrl.u32 %v4566, 7
      %v4568 = vsub.s32 7, %v4567
      %v4569 = vrot.slane %v3963, %v4568
      %v4570 = vlaneseq
      %v4571 = vshrl.u32 %v4570, 7
      %v4572 = vsub.s32 0, %v4571
      %v4573 = vrot.slane %v3965, %v4572
      %v4574 = vlaneseq
      %v4575 = vshrl.u32 %v4574, 7
      %v4576 = vsub.s32 1, %v4575
      %v4577 = vrot.slane %v3965, %v4576
      %v4578 = vlaneseq
      %v4579 = vshrl.u32 %v4578, 7
      %v4580 = vsub.s32 2, %v4579
      %v4581 = vrot.slane %v3965, %v4580
      %v4582 = vlaneseq
      %v4583 = vshrl.u32 %v4582, 7
      %v4584 = vsub.s32 3, %v4583
      %v4585 = vrot.slane %v3965, %v4584
      %v4586 = vlaneseq
      %v4587 = vshrl.u32 %v4586, 7
      %v4588 = vsub.s32 4, %v4587
      %v4589 = vrot.slane %v3965, %v4588
      %v4590 = vlaneseq
      %v4591 = vshrl.u32 %v4590, 7
      %v4592 = vsub.s32 5, %v4591
      %v4593 = vrot.slane %v3965, %v4592
      %v4594 = vlaneseq
      %v4595 = vshrl.u32 %v4594, 7
      %v4596 = vsub.s32 6, %v4595
      %v4597 = vrot.slane %v3965, %v4596
      %v4598 = vlaneseq
      %v4599 = vshrl.u32 %v4598, 7
      %v4600 = vsub.s32 7, %v4599
      %v4601 = vrot.slane %v3965, %v4600
      %v4602 = vlaneseq
      %v4603 = vshrl.u32 %v4602, 7
      %v4604 = vsub.s32 0, %v4603
      %v4605 = vrot.slane %v3967, %v4604
      %v4606 = vlaneseq
      %v4607 = vshrl.u32 %v4606, 7
      %v4608 = vsub.s32 1, %v4607
      %v4609 = vrot.slane %v3967, %v4608
      %v4610 = vlaneseq
      %v4611 = vshrl.u32 %v4610, 7
      %v4612 = vsub.s32 2, %v4611
      %v4613 = vrot.slane %v3967, %v4612
      %v4614 = vlaneseq
      %v4615 = vshrl.u32 %v4614, 7
      %v4616 = vsub.s32 3, %v4615
      %v4617 = vrot.slane %v3967, %v4616
      %v4618 = vlaneseq
      %v4619 = vshrl.u32 %v4618, 7
      %v4620 = vsub.s32 4, %v4619
      %v4621 = vrot.slane %v3967, %v4620
      %v4622 = vlaneseq
      %v4623 = vshrl.u32 %v4622, 7
      %v4624 = vsub.s32 5, %v4623
      %v4625 = vrot.slane %v3967, %v4624
      %v4626 = vlaneseq
      %v4627 = vshrl.u32 %v4626, 7
      %v4628 = vsub.s32 6, %v4627
      %v4629 = vrot.slane %v3967, %v4628
      %v4630 = vlaneseq
      %v4631 = vshrl.u32 %v4630, 7
      %v4632 = vsub.s32 7, %v4631
      %v4633 = vrot.slane %v3967, %v4632
      %v4634 = vlaneseq
      %v4635 = vshrl.u32 %v4634, 7
      %v4636 = vsub.s32 0, %v4635
      %v4637 = vrot.slane %v3969, %v4636
      %v4638 = vlaneseq
      %v4639 = vshrl.u32 %v4638, 7
      %v4640 = vsub.s32 1, %v4639
      %v4641 = vrot.slane %v3969, %v4640
      %v4642 = vlaneseq
      %v4643 = vshrl.u32 %v4642, 7
      %v4644 = vsub.s32 2, %v4643
      %v4645 = vrot.slane %v3969, %v4644
      %v4646 = vlaneseq
      %v4647 = vshrl.u32 %v4646, 7
      %v4648 = vsub.s32 3, %v4647
      %v4649 = vrot.slane %v3969, %v4648
      %v4650 = vlaneseq
      %v4651 = vshrl.u32 %v4650, 7
      %v4652 = vsub.s32 4, %v4651
      %v4653 = vrot.slane %v3969, %v4652
      %v4654 = vlaneseq
      %v4655 = vshrl.u32 %v4654, 7
      %v4656 = vsub.s32 5, %v4655
      %v4657 = vrot.slane %v3969, %v4656
      %v4658 = vlaneseq
      %v4659 = vshrl.u32 %v4658, 7
      %v4660 = vsub.s32 6, %v4659
      %v4661 = vrot.slane %v3969, %v4660
      %v4662 = vlaneseq
      %v4663 = vshrl.u32 %v4662, 7
      %v4664 = vsub.s32 7, %v4663
      %v4665 = vrot.slane %v3969, %v4664
      %v4666 = vlaneseq
      %v4667 = vshrl.u32 %v4666, 7
      %v4668 = vsub.s32 0, %v4667
      %v4669 = vrot.slane %v3971, %v4668
      %v4670 = vlaneseq
      %v4671 = vshrl.u32 %v4670, 7
      %v4672 = vsub.s32 1, %v4671
      %v4673 = vrot.slane %v3971, %v4672
      %v4674 = vlaneseq
      %v4675 = vshrl.u32 %v4674, 7
      %v4676 = vsub.s32 2, %v4675
      %v4677 = vrot.slane %v3971, %v4676
      %v4678 = vlaneseq
      %v4679 = vshrl.u32 %v4678, 7
      %v4680 = vsub.s32 3, %v4679
      %v4681 = vrot.slane %v3971, %v4680
      %v4682 = vlaneseq
      %v4683 = vshrl.u32 %v4682, 7
      %v4684 = vsub.s32 4, %v4683
      %v4685 = vrot.slane %v3971, %v4684
      %v4686 = vlaneseq
      %v4687 = vshrl.u32 %v4686, 7
      %v4688 = vsub.s32 5, %v4687
      %v4689 = vrot.slane %v3971, %v4688
      %v4690 = vlaneseq
      %v4691 = vshrl.u32 %v4690, 7
      %v4692 = vsub.s32 6, %v4691
      %v4693 = vrot.slane %v3971, %v4692
      %v4694 = vlaneseq
      %v4695 = vshrl.u32 %v4694, 7
      %v4696 = vsub.s32 7, %v4695
      %v4697 = vrot.slane %v3971, %v4696
      %v4698 = vlaneseq
      %v4699 = vshrl.u32 %v4698, 7
      %v4700 = vsub.s32 0, %v4699
      %v4701 = vrot.slane %v3973, %v4700
      %v4702 = vlaneseq
      %v4703 = vshrl.u32 %v4702, 7
      %v4704 = vsub.s32 1, %v4703
      %v4705 = vrot.slane %v3973, %v4704
      %v4706 = vlaneseq
      %v4707 = vshrl.u32 %v4706, 7
      %v4708 = vsub.s32 2, %v4707
      %v4709 = vrot.slane %v3973, %v4708
      %v4710 = vlaneseq
      %v4711 = vshrl.u32 %v4710, 7
      %v4712 = vsub.s32 3, %v4711
      %v4713 = vrot.slane %v3973, %v4712
      %v4714 = vlaneseq
      %v4715 = vshrl.u32 %v4714, 7
      %v4716 = vsub.s32 4, %v4715
      %v4717 = vrot.slane %v3973, %v4716
      %v4718 = vlaneseq
      %v4719 = vshrl.u32 %v4718, 7
      %v4720 = vsub.s32 5, %v4719
      %v4721 = vrot.slane %v3973, %v4720
      %v4722 = vlaneseq
      %v4723 = vshrl.u32 %v4722, 7
      %v4724 = vsub.s32 6, %v4723
      %v4725 = vrot.slane %v3973, %v4724
      %v4726 = vlaneseq
      %v4727 = vshrl.u32 %v4726, 7
      %v4728 = vsub.s32 7, %v4727
      %v4729 = vrot.slane %v3973, %v4728
      %v4730 = vlaneseq
      %v4731 = vshrl.u32 %v4730, 7
      %v4732 = vsub.s32 0, %v4731
      %v4733 = vrot.slane %v3975, %v4732
      %v4734 = vlaneseq
      %v4735 = vshrl.u32 %v4734, 7
      %v4736 = vsub.s32 1, %v4735
      %v4737 = vrot.slane %v3975, %v4736
      %v4738 = vlaneseq
      %v4739 = vshrl.u32 %v4738, 7
      %v4740 = vsub.s32 2, %v4739
      %v4741 = vrot.slane %v3975, %v4740
      %v4742 = vlaneseq
      %v4743 = vshrl.u32 %v4742, 7
      %v4744 = vsub.s32 3, %v4743
      %v4745 = vrot.slane %v3975, %v4744
      %v4746 = vlaneseq
      %v4747 = vshrl.u32 %v4746, 7
      %v4748 = vsub.s32 4, %v4747
      %v4749 = vrot.slane %v3975, %v4748
      %v4750 = vlaneseq
      %v4751 = vshrl.u32 %v4750, 7
      %v4752 = vsub.s32 5, %v4751
      %v4753 = vrot.slane %v3975, %v4752
      %v4754 = vlaneseq
      %v4755 = vshrl.u32 %v4754, 7
      %v4756 = vsub.s32 6, %v4755
      %v4757 = vrot.slane %v3975, %v4756
      %v4758 = vlaneseq
      %v4759 = vshrl.u32 %v4758, 7
      %v4760 = vsub.s32 7, %v4759
      %v4761 = vrot.slane %v3975, %v4760
      %v4762 = vlaneseq
      %v4763 = vshrl.u32 %v4762, 7
      %v4764 = vsub.s32 0, %v4763
      %v4765 = vrot.slane %v3977, %v4764
      %v4766 = vlaneseq
      %v4767 = vshrl.u32 %v4766, 7
      %v4768 = vsub.s32 1, %v4767
      %v4769 = vrot.slane %v3977, %v4768
      %v4770 = vlaneseq
      %v4771 = vshrl.u32 %v4770, 7
      %v4772 = vsub.s32 2, %v4771
      %v4773 = vrot.slane %v3977, %v4772
      %v4774 = vlaneseq
      %v4775 = vshrl.u32 %v4774, 7
      %v4776 = vsub.s32 3, %v4775
      %v4777 = vrot.slane %v3977, %v4776
      %v4778 = vlaneseq
      %v4779 = vshrl.u32 %v4778, 7
      %v4780 = vsub.s32 4, %v4779
      %v4781 = vrot.slane %v3977, %v4780
      %v4782 = vlaneseq
      %v4783 = vshrl.u32 %v4782, 7
      %v4784 = vsub.s32 5, %v4783
      %v4785 = vrot.slane %v3977, %v4784
      %v4786 = vlaneseq
      %v4787 = vshrl.u32 %v4786, 7
      %v4788 = vsub.s32 6, %v4787
      %v4789 = vrot.slane %v3977, %v4788
      %v4790 = vlaneseq
      %v4791 = vshrl.u32 %v4790, 7
      %v4792 = vsub.s32 7, %v4791
      %v4793 = vrot.slane %v3977, %v4792
      %v4794 = vlaneseq
      %v4795 = vshrl.u32 %v4794, 7
      %v4796 = vsub.s32 0, %v4795
      %v4797 = vrot.slane %v3979, %v4796
      %v4798 = vlaneseq
      %v4799 = vshrl.u32 %v4798, 7
      %v4800 = vsub.s32 1, %v4799
      %v4801 = vrot.slane %v3979, %v4800
      %v4802 = vlaneseq
      %v4803 = vshrl.u32 %v4802, 7
      %v4804 = vsub.s32 2, %v4803
      %v4805 = vrot.slane %v3979, %v4804
      %v4806 = vlaneseq
      %v4807 = vshrl.u32 %v4806, 7
      %v4808 = vsub.s32 3, %v4807
      %v4809 = vrot.slane %v3979, %v4808
      %v4810 = vlaneseq
      %v4811 = vshrl.u32 %v4810, 7
      %v4812 = vsub.s32 4, %v4811
      %v4813 = vrot.slane %v3979, %v4812
      %v4814 = vlaneseq
      %v4815 = vshrl.u32 %v4814, 7
      %v4816 = vsub.s32 5, %v4815
      %v4817 = vrot.slane %v3979, %v4816
      %v4818 = vlaneseq
      %v4819 = vshrl.u32 %v4818, 7
      %v4820 = vsub.s32 6, %v4819
      %v4821 = vrot.slane %v3979, %v4820
      %v4822 = vlaneseq
      %v4823 = vshrl.u32 %v4822, 7
      %v4824 = vsub.s32 7, %v4823
      %v4825 = vrot.slane %v3979, %v4824
      %v4826 = vlaneseq
      %v4827 = vshrl.u32 %v4826, 7
      %v4828 = vsub.s32 0, %v4827
      %v4829 = vrot.slane %v3981, %v4828
      %v4830 = vlaneseq
      %v4831 = vshrl.u32 %v4830, 7
      %v4832 = vsub.s32 1, %v4831
      %v4833 = vrot.slane %v3981, %v4832
      %v4834 = vlaneseq
      %v4835 = vshrl.u32 %v4834, 7
      %v4836 = vsub.s32 2, %v4835
      %v4837 = vrot.slane %v3981, %v4836
      %v4838 = vlaneseq
      %v4839 = vshrl.u32 %v4838, 7
      %v4840 = vsub.s32 3, %v4839
      %v4841 = vrot.slane %v3981, %v4840
      %v4842 = vlaneseq
      %v4843 = vshrl.u32 %v4842, 7
      %v4844 = vsub.s32 4, %v4843
      %v4845 = vrot.slane %v3981, %v4844
      %v4846 = vlaneseq
      %v4847 = vshrl.u32 %v4846, 7
      %v4848 = vsub.s32 5, %v4847
      %v4849 = vrot.slane %v3981, %v4848
      %v4850 = vlaneseq
      %v4851 = vshrl.u32 %v4850, 7
      %v4852 = vsub.s32 6, %v4851
      %v4853 = vrot.slane %v3981, %v4852
      %v4854 = vlaneseq
      %v4855 = vshrl.u32 %v4854, 7
      %v4856 = vsub.s32 7, %v4855
      %v4857 = vrot.slane %v3981, %v4856
      %v4858 = vlaneseq
      %v4859 = vshrl.u32 %v4858, 7
      %v4860 = vsub.s32 0, %v4859
      %v4861 = vrot.slane %v3983, %v4860
      %v4862 = vlaneseq
      %v4863 = vshrl.u32 %v4862, 7
      %v4864 = vsub.s32 1, %v4863
      %v4865 = vrot.slane %v3983, %v4864
      %v4866 = vlaneseq
      %v4867 = vshrl.u32 %v4866, 7
      %v4868 = vsub.s32 2, %v4867
      %v4869 = vrot.slane %v3983, %v4868
      %v4870 = vlaneseq
      %v4871 = vshrl.u32 %v4870, 7
      %v4872 = vsub.s32 3, %v4871
      %v4873 = vrot.slane %v3983, %v4872
      %v4874 = vlaneseq
      %v4875 = vshrl.u32 %v4874, 7
      %v4876 = vsub.s32 4, %v4875
      %v4877 = vrot.slane %v3983, %v4876
      %v4878 = vlaneseq
      %v4879 = vshrl.u32 %v4878, 7
      %v4880 = vsub.s32 5, %v4879
      %v4881 = vrot.slane %v3983, %v4880
      %v4882 = vlaneseq
      %v4883 = vshrl.u32 %v4882, 7
      %v4884 = vsub.s32 6, %v4883
      %v4885 = vrot.slane %v3983, %v4884
      %v4886 = vlaneseq
      %v4887 = vshrl.u32 %v4886, 7
      %v4888 = vsub.s32 7, %v4887
      %v4889 = vrot.slane %v3983, %v4888
      %v4890 = vlaneseq
      %v4891 = vshrl.u32 %v4890, 7
      %v4892 = vsub.s32 0, %v4891
      %v4893 = vrot.slane %v3985, %v4892
      %v4894 = vlaneseq
      %v4895 = vshrl.u32 %v4894, 7
      %v4896 = vsub.s32 1, %v4895
      %v4897 = vrot.slane %v3985, %v4896
      %v4898 = vlaneseq
      %v4899 = vshrl.u32 %v4898, 7
      %v4900 = vsub.s32 2, %v4899
      %v4901 = vrot.slane %v3985, %v4900
      %v4902 = vlaneseq
      %v4903 = vshrl.u32 %v4902, 7
      %v4904 = vsub.s32 3, %v4903
      %v4905 = vrot.slane %v3985, %v4904
      %v4906 = vlaneseq
      %v4907 = vshrl.u32 %v4906, 7
      %v4908 = vsub.s32 4, %v4907
      %v4909 = vrot.slane %v3985, %v4908
      %v4910 = vlaneseq
      %v4911 = vshrl.u32 %v4910, 7
      %v4912 = vsub.s32 5, %v4911
      %v4913 = vrot.slane %v3985, %v4912
      %v4914 = vlaneseq
      %v4915 = vshrl.u32 %v4914, 7
      %v4916 = vsub.s32 6, %v4915
      %v4917 = vrot.slane %v3985, %v4916
      %v4918 = vlaneseq
      %v4919 = vshrl.u32 %v4918, 7
      %v4920 = vsub.s32 7, %v4919
      %v4921 = vrot.slane %v3985, %v4920
      %v4922 = vlaneseq
      %v4923 = vshrl.u32 %v4922, 7
      %v4924 = vsub.s32 0, %v4923
      %v4925 = vrot.slane %v3987, %v4924
      %v4926 = vlaneseq
      %v4927 = vshrl.u32 %v4926, 7
      %v4928 = vsub.s32 1, %v4927
      %v4929 = vrot.slane %v3987, %v4928
      %v4930 = vlaneseq
      %v4931 = vshrl.u32 %v4930, 7
      %v4932 = vsub.s32 2, %v4931
      %v4933 = vrot.slane %v3987, %v4932
      %v4934 = vlaneseq
      %v4935 = vshrl.u32 %v4934, 7
      %v4936 = vsub.s32 3, %v4935
      %v4937 = vrot.slane %v3987, %v4936
      %v4938 = vlaneseq
      %v4939 = vshrl.u32 %v4938, 7
      %v4940 = vsub.s32 4, %v4939
      %v4941 = vrot.slane %v3987, %v4940
      %v4942 = vlaneseq
      %v4943 = vshrl.u32 %v4942, 7
      %v4944 = vsub.s32 5, %v4943
      %v4945 = vrot.slane %v3987, %v4944
      %v4946 = vlaneseq
      %v4947 = vshrl.u32 %v4946, 7
      %v4948 = vsub.s32 6, %v4947
      %v4949 = vrot.slane %v3987, %v4948
      %v4950 = vlaneseq
      %v4951 = vshrl.u32 %v4950, 7
      %v4952 = vsub.s32 7, %v4951
      %v4953 = vrot.slane %v3987, %v4952
      %v4954 = vlaneseq
      %v4955 = vshrl.u32 %v4954, 7
      %v4956 = vsub.s32 0, %v4955
      %v4957 = vrot.slane %v3989, %v4956
      %v4958 = vlaneseq
      %v4959 = vshrl.u32 %v4958, 7
      %v4960 = vsub.s32 1, %v4959
      %v4961 = vrot.slane %v3989, %v4960
      %v4962 = vlaneseq
      %v4963 = vshrl.u32 %v4962, 7
      %v4964 = vsub.s32 2, %v4963
      %v4965 = vrot.slane %v3989, %v4964
      %v4966 = vlaneseq
      %v4967 = vshrl.u32 %v4966, 7
      %v4968 = vsub.s32 3, %v4967
      %v4969 = vrot.slane %v3989, %v4968
      %v4970 = vlaneseq
      %v4971 = vshrl.u32 %v4970, 7
      %v4972 = vsub.s32 4, %v4971
      %v4973 = vrot.slane %v3989, %v4972
      %v4974 = vlaneseq
      %v4975 = vshrl.u32 %v4974, 7
      %v4976 = vsub.s32 5, %v4975
      %v4977 = vrot.slane %v3989, %v4976
      %v4978 = vlaneseq
      %v4979 = vshrl.u32 %v4978, 7
      %v4980 = vsub.s32 6, %v4979
      %v4981 = vrot.slane %v3989, %v4980
      %v4982 = vlaneseq
      %v4983 = vshrl.u32 %v4982, 7
      %v4984 = vsub.s32 7, %v4983
      %v4985 = vrot.slane %v3989, %v4984
      %v4986 = vlaneseq
      %v4987 = vshrl.u32 %v4986, 7
      %v4988 = vsub.s32 0, %v4987
      %v4989 = vrot.slane %v3991, %v4988
      %v4990 = vlaneseq
      %v4991 = vshrl.u32 %v4990, 7
      %v4992 = vsub.s32 1, %v4991
      %v4993 = vrot.slane %v3991, %v4992
      %v4994 = vlaneseq
      %v4995 = vshrl.u32 %v4994, 7
      %v4996 = vsub.s32 2, %v4995
      %v4997 = vrot.slane %v3991, %v4996
      %v4998 = vlaneseq
      %v4999 = vshrl.u32 %v4998, 7
      %v5000 = vsub.s32 3, %v4999
      %v5001 = vrot.slane %v3991, %v5000
      %v5002 = vlaneseq
      %v5003 = vshrl.u32 %v5002, 7
      %v5004 = vsub.s32 4, %v5003
      %v5005 = vrot.slane %v3991, %v5004
      %v5006 = vlaneseq
      %v5007 = vshrl.u32 %v5006, 7
      %v5008 = vsub.s32 5, %v5007
      %v5009 = vrot.slane %v3991, %v5008
      %v5010 = vlaneseq
      %v5011 = vshrl.u32 %v5010, 7
      %v5012 = vsub.s32 6, %v5011
      %v5013 = vrot.slane %v3991, %v5012
      %v5014 = vlaneseq
      %v5015 = vshrl.u32 %v5014, 7
      %v5016 = vsub.s32 7, %v5015
      %v5017 = vrot.slane %v3991, %v5016
      %v5018 = vlaneseq
      %v5019 = vshrl.u32 %v5018, 7
      %v5020 = vsub.s32 0, %v5019
      %v5021 = vrot.slane %v3993, %v5020
      %v5022 = vlaneseq
      %v5023 = vshrl.u32 %v5022, 7
      %v5024 = vsub.s32 1, %v5023
      %v5025 = vrot.slane %v3993, %v5024
      %v5026 = vlaneseq
      %v5027 = vshrl.u32 %v5026, 7
      %v5028 = vsub.s32 2, %v5027
      %v5029 = vrot.slane %v3993, %v5028
      %v5030 = vlaneseq
      %v5031 = vshrl.u32 %v5030, 7
      %v5032 = vsub.s32 3, %v5031
      %v5033 = vrot.slane %v3993, %v5032
      %v5034 = vlaneseq
      %v5035 = vshrl.u32 %v5034, 7
      %v5036 = vsub.s32 4, %v5035
      %v5037 = vrot.slane %v3993, %v5036
      %v5038 = vlaneseq
      %v5039 = vshrl.u32 %v5038, 7
      %v5040 = vsub.s32 5, %v5039
      %v5041 = vrot.slane %v3993, %v5040
      %v5042 = vlaneseq
      %v5043 = vshrl.u32 %v5042, 7
      %v5044 = vsub.s32 6, %v5043
      %v5045 = vrot.slane %v3993, %v5044
      %v5046 = vlaneseq
      %v5047 = vshrl.u32 %v5046, 7
      %v5048 = vsub.s32 7, %v5047
      %v5049 = vrot.slane %v3993, %v5048
      %v5050 = vcombine.low %v4029, %v4033
      %v5051 = vcombine.low %v4037, %v4041
      %v5052 = vcombine.low %v4045, %v4049
      %v5053 = vcombine.low %v4053, %v4057
      %v5055 = vunpack.c.l.s4 1966171168
      %v5056 = vunpack.c.0.s8 %v5055
      %v5057 = vlaneseq
      %v5058 = vshrl.u32 %v5057, 7
      %v5059 = vsub.s32 %v5056, %v5058
      %v5060 = vrot.slane %v5050, %v5059
      %v5062 = vunpack.c.l.s4 1966171168
      %v5063 = vunpack.c.0.s8 %v5062
      %v5064 = vlaneseq
      %v5065 = vshrl.u32 %v5064, 7
      %v5066 = vsub.s32 %v5063, %v5065
      %v5067 = vrot.slane %v5051, %v5066
      %v5069 = vunpack.c.l.s4 1966171168
      %v5070 = vunpack.c.0.s8 %v5069
      %v5071 = vlaneseq
      %v5072 = vshrl.u32 %v5071, 7
      %v5073 = vsub.s32 %v5070, %v5072
      %v5074 = vrot.slane %v5052, %v5073
      %v5076 = vunpack.c.l.s4 1966171168
      %v5077 = vunpack.c.0.s8 %v5076
      %v5078 = vlaneseq
      %v5079 = vshrl.u32 %v5078, 7
      %v5080 = vsub.s32 %v5077, %v5079
      %v5081 = vrot.slane %v5053, %v5080
      %v5082 = vcombine.low %v5060, %v5067
      %v5083 = vcombine.low %v5074, %v5081
      %v5085 = vunpack.c.l.s4 1966171168
      %v5086 = vunpack.c.0.s8 %v5085
      %v5087 = vlaneseq
      %v5088 = vshrl.u32 %v5087, 7
      %v5089 = vsub.s32 %v5086, %v5088
      %v5090 = vrot.slane %v5082, %v5089
      %v5092 = vunpack.c.l.s4 1966171168
      %v5093 = vunpack.c.0.s8 %v5092
      %v5094 = vlaneseq
      %v5095 = vshrl.u32 %v5094, 7
      %v5096 = vsub.s32 %v5093, %v5095
      %v5097 = vrot.slane %v5083, %v5096
      %v5098 = vcombine.low %v5090, %v5097
      %v5099 = vcombine.low %v4061, %v4065
      %v5100 = vcombine.low %v4069, %v4073
      %v5101 = vcombine.low %v4077, %v4081
      %v5102 = vcombine.low %v4085, %v4089
      %v5104 = vunpack.c.l.s4 1966171168
      %v5105 = vunpack.c.0.s8 %v5104
      %v5106 = vlaneseq
      %v5107 = vshrl.u32 %v5106, 7
      %v5108 = vsub.s32 %v5105, %v5107
      %v5109 = vrot.slane %v5099, %v5108
      %v5111 = vunpack.c.l.s4 1966171168
      %v5112 = vunpack.c.0.s8 %v5111
      %v5113 = vlaneseq
      %v5114 = vshrl.u32 %v5113, 7
      %v5115 = vsub.s32 %v5112, %v5114
      %v5116 = vrot.slane %v5100, %v5115
      %v5118 = vunpack.c.l.s4 1966171168
      %v5119 = vunpack.c.0.s8 %v5118
      %v5120 = vlaneseq
      %v5121 = vshrl.u32 %v5120, 7
      %v5122 = vsub.s32 %v5119, %v5121
      %v5123 = vrot.slane %v5101, %v5122
      %v5125 = vunpack.c.l.s4 1966171168
      %v5126 = vunpack.c.0.s8 %v5125
      %v5127 = vlaneseq
      %v5128 = vshrl.u32 %v5127, 7
      %v5129 = vsub.s32 %v5126, %v5128
      %v5130 = vrot.slane %v5102, %v5129
      %v5131 = vcombine.low %v5109, %v5116
      %v5132 = vcombine.low %v5123, %v5130
      %v5134 = vunpack.c.l.s4 1966171168
      %v5135 = vunpack.c.0.s8 %v5134
      %v5136 = vlaneseq
      %v5137 = vshrl.u32 %v5136, 7
      %v5138 = vsub.s32 %v5135, %v5137
      %v5139 = vrot.slane %v5131, %v5138
      %v5141 = vunpack.c.l.s4 1966171168
      %v5142 = vunpack.c.0.s8 %v5141
      %v5143 = vlaneseq
      %v5144 = vshrl.u32 %v5143, 7
      %v5145 = vsub.s32 %v5142, %v5144
      %v5146 = vrot.slane %v5132, %v5145
      %v5147 = vcombine.low %v5139, %v5146
      %v5148 = vcombine.low %v4093, %v4097
      %v5149 = vcombine.low %v4101, %v4105
      %v5150 = vcombine.low %v4109, %v4113
      %v5151 = vcombine.low %v4117, %v4121
      %v5153 = vunpack.c.l.s4 1966171168
      %v5154 = vunpack.c.0.s8 %v5153
      %v5155 = vlaneseq
      %v5156 = vshrl.u32 %v5155, 7
      %v5157 = vsub.s32 %v5154, %v5156
      %v5158 = vrot.slane %v5148, %v5157
      %v5160 = vunpack.c.l.s4 1966171168
      %v5161 = vunpack.c.0.s8 %v5160
      %v5162 = vlaneseq
      %v5163 = vshrl.u32 %v5162, 7
      %v5164 = vsub.s32 %v5161, %v5163
      %v5165 = vrot.slane %v5149, %v5164
      %v5167 = vunpack.c.l.s4 1966171168
      %v5168 = vunpack.c.0.s8 %v5167
      %v5169 = vlaneseq
      %v5170 = vshrl.u32 %v5169, 7
      %v5171 = vsub.s32 %v5168, %v5170
      %v5172 = vrot.slane %v5150, %v5171
      %v5174 = vunpack.c.l.s4 1966171168
      %v5175 = vunpack.c.0.s8 %v5174
      %v5176 = vlaneseq
      %v5177 = vshrl.u32 %v5176, 7
      %v5178 = vsub.s32 %v5175, %v5177
      %v5179 = vrot.slane %v5151, %v5178
      %v5180 = vcombine.low %v5158, %v5165
      %v5181 = vcombine.low %v5172, %v5179
      %v5183 = vunpack.c.l.s4 1966171168
      %v5184 = vunpack.c.0.s8 %v5183
      %v5185 = vlaneseq
      %v5186 = vshrl.u32 %v5185, 7
      %v5187 = vsub.s32 %v5184, %v5186
      %v5188 = vrot.slane %v5180, %v5187
      %v5190 = vunpack.c.l.s4 1966171168
      %v5191 = vunpack.c.0.s8 %v5190
      %v5192 = vlaneseq
      %v5193 = vshrl.u32 %v5192, 7
      %v5194 = vsub.s32 %v5191, %v5193
      %v5195 = vrot.slane %v5181, %v5194
      %v5196 = vcombine.low %v5188, %v5195
      %v5197 = vcombine.low %v4125, %v4129
      %v5198 = vcombine.low %v4133, %v4137
      %v5199 = vcombine.low %v4141, %v4145
      %v5200 = vcombine.low %v4149, %v4153
      %v5202 = vunpack.c.l.s4 1966171168
      %v5203 = vunpack.c.0.s8 %v5202
      %v5204 = vlaneseq
      %v5205 = vshrl.u32 %v5204, 7
      %v5206 = vsub.s32 %v5203, %v5205
      %v5207 = vrot.slane %v5197, %v5206
      %v5209 = vunpack.c.l.s4 1966171168
      %v5210 = vunpack.c.0.s8 %v5209
      %v5211 = vlaneseq
      %v5212 = vshrl.u32 %v5211, 7
      %v5213 = vsub.s32 %v5210, %v5212
      %v5214 = vrot.slane %v5198, %v5213
      %v5216 = vunpack.c.l.s4 1966171168
      %v5217 = vunpack.c.0.s8 %v5216
      %v5218 = vlaneseq
      %v5219 = vshrl.u32 %v5218, 7
      %v5220 = vsub.s32 %v5217, %v5219
      %v5221 = vrot.slane %v5199, %v5220
      %v5223 = vunpack.c.l.s4 1966171168
      %v5224 = vunpack.c.0.s8 %v5223
      %v5225 = vlaneseq
      %v5226 = vshrl.u32 %v5225, 7
      %v5227 = vsub.s32 %v5224, %v5226
      %v5228 = vrot.slane %v5200, %v5227
      %v5229 = vcombine.low %v5207, %v5214
      %v5230 = vcombine.low %v5221, %v5228
      %v5232 = vunpack.c.l.s4 1966171168
      %v5233 = vunpack.c.0.s8 %v5232
      %v5234 = vlaneseq
      %v5235 = vshrl.u32 %v5234, 7
      %v5236 = vsub.s32 %v5233, %v5235
      %v5237 = vrot.slane %v5229, %v5236
      %v5239 = vunpack.c.l.s4 1966171168
      %v5240 = vunpack.c.0.s8 %v5239
      %v5241 = vlaneseq
      %v5242 = vshrl.u32 %v5241, 7
      %v5243 = vsub.s32 %v5240, %v5242
      %v5244 = vrot.slane %v5230, %v5243
      %v5245 = vcombine.low %v5237, %v5244
      %v5246 = vcombine.low %v4157, %v4161
      %v5247 = vcombine.low %v4165, %v4169
      %v5248 = vcombine.low %v4173, %v4177
      %v5249 = vcombine.low %v4181, %v4185
      %v5251 = vunpack.c.l.s4 1966171168
      %v5252 = vunpack.c.0.s8 %v5251
      %v5253 = vlaneseq
      %v5254 = vshrl.u32 %v5253, 7
      %v5255 = vsub.s32 %v5252, %v5254
      %v5256 = vrot.slane %v5246, %v5255
      %v5258 = vunpack.c.l.s4 1966171168
      %v5259 = vunpack.c.0.s8 %v5258
      %v5260 = vlaneseq
      %v5261 = vshrl.u32 %v5260, 7
      %v5262 = vsub.s32 %v5259, %v5261
      %v5263 = vrot.slane %v5247, %v5262
      %v5265 = vunpack.c.l.s4 1966171168
      %v5266 = vunpack.c.0.s8 %v5265
      %v5267 = vlaneseq
      %v5268 = vshrl.u32 %v5267, 7
      %v5269 = vsub.s32 %v5266, %v5268
      %v5270 = vrot.slane %v5248, %v5269
      %v5272 = vunpack.c.l.s4 1966171168
      %v5273 = vunpack.c.0.s8 %v5272
      %v5274 = vlaneseq
      %v5275 = vshrl.u32 %v5274, 7
      %v5276 = vsub.s32 %v5273, %v5275
      %v5277 = vrot.slane %v5249, %v5276
      %v5278 = vcombine.low %v5256, %v5263
      %v5279 = vcombine.low %v5270, %v5277
      %v5281 = vunpack.c.l.s4 1966171168
      %v5282 = vunpack.c.0.s8 %v5281
      %v5283 = vlaneseq
      %v5284 = vshrl.u32 %v5283, 7
      %v5285 = vsub.s32 %v5282, %v5284
      %v5286 = vrot.slane %v5278, %v5285
      %v5288 = vunpack.c.l.s4 1966171168
      %v5289 = vunpack.c.0.s8 %v5288
      %v5290 = vlaneseq
      %v5291 = vshrl.u32 %v5290, 7
      %v5292 = vsub.s32 %v5289, %v5291
      %v5293 = vrot.slane %v5279, %v5292
      %v5294 = vcombine.low %v5286, %v5293
      %v5295 = vcombine.low %v4189, %v4193
      %v5296 = vcombine.low %v4197, %v4201
      %v5297 = vcombine.low %v4205, %v4209
      %v5298 = vcombine.low %v4213, %v4217
      %v5300 = vunpack.c.l.s4 1966171168
      %v5301 = vunpack.c.0.s8 %v5300
      %v5302 = vlaneseq
      %v5303 = vshrl.u32 %v5302, 7
      %v5304 = vsub.s32 %v5301, %v5303
      %v5305 = vrot.slane %v5295, %v5304
      %v5307 = vunpack.c.l.s4 1966171168
      %v5308 = vunpack.c.0.s8 %v5307
      %v5309 = vlaneseq
      %v5310 = vshrl.u32 %v5309, 7
      %v5311 = vsub.s32 %v5308, %v5310
      %v5312 = vrot.slane %v5296, %v5311
      %v5314 = vunpack.c.l.s4 1966171168
      %v5315 = vunpack.c.0.s8 %v5314
      %v5316 = vlaneseq
      %v5317 = vshrl.u32 %v5316, 7
      %v5318 = vsub.s32 %v5315, %v5317
      %v5319 = vrot.slane %v5297, %v5318
      %v5321 = vunpack.c.l.s4 1966171168
      %v5322 = vunpack.c.0.s8 %v5321
      %v5323 = vlaneseq
      %v5324 = vshrl.u32 %v5323, 7
      %v5325 = vsub.s32 %v5322, %v5324
      %v5326 = vrot.slane %v5298, %v5325
      %v5327 = vcombine.low %v5305, %v5312
      %v5328 = vcombine.low %v5319, %v5326
      %v5330 = vunpack.c.l.s4 1966171168
      %v5331 = vunpack.c.0.s8 %v5330
      %v5332 = vlaneseq
      %v5333 = vshrl.u32 %v5332, 7
      %v5334 = vsub.s32 %v5331, %v5333
      %v5335 = vrot.slane %v5327, %v5334
      %v5337 = vunpack.c.l.s4 1966171168
      %v5338 = vunpack.c.0.s8 %v5337
      %v5339 = vlaneseq
      %v5340 = vshrl.u32 %v5339, 7
      %v5341 = vsub.s32 %v5338, %v5340
      %v5342 = vrot.slane %v5328, %v5341
      %v5343 = vcombine.low %v5335, %v5342
      %v5344 = vcombine.low %v4221, %v4225
      %v5345 = vcombine.low %v4229, %v4233
      %v5346 = vcombine.low %v4237, %v4241
      %v5347 = vcombine.low %v4245, %v4249
      %v5349 = vunpack.c.l.s4 1966171168
      %v5350 = vunpack.c.0.s8 %v5349
      %v5351 = vlaneseq
      %v5352 = vshrl.u32 %v5351, 7
      %v5353 = vsub.s32 %v5350, %v5352
      %v5354 = vrot.slane %v5344, %v5353
      %v5356 = vunpack.c.l.s4 1966171168
      %v5357 = vunpack.c.0.s8 %v5356
      %v5358 = vlaneseq
      %v5359 = vshrl.u32 %v5358, 7
      %v5360 = vsub.s32 %v5357, %v5359
      %v5361 = vrot.slane %v5345, %v5360
      %v5363 = vunpack.c.l.s4 1966171168
      %v5364 = vunpack.c.0.s8 %v5363
      %v5365 = vlaneseq
      %v5366 = vshrl.u32 %v5365, 7
      %v5367 = vsub.s32 %v5364, %v5366
      %v5368 = vrot.slane %v5346, %v5367
      %v5370 = vunpack.c.l.s4 1966171168
      %v5371 = vunpack.c.0.s8 %v5370
      %v5372 = vlaneseq
      %v5373 = vshrl.u32 %v5372, 7
      %v5374 = vsub.s32 %v5371, %v5373
      %v5375 = vrot.slane %v5347, %v5374
      %v5376 = vcombine.low %v5354, %v5361
      %v5377 = vcombine.low %v5368, %v5375
      %v5379 = vunpack.c.l.s4 1966171168
      %v5380 = vunpack.c.0.s8 %v5379
      %v5381 = vlaneseq
      %v5382 = vshrl.u32 %v5381, 7
      %v5383 = vsub.s32 %v5380, %v5382
      %v5384 = vrot.slane %v5376, %v5383
      %v5386 = vunpack.c.l.s4 1966171168
      %v5387 = vunpack.c.0.s8 %v5386
      %v5388 = vlaneseq
      %v5389 = vshrl.u32 %v5388, 7
      %v5390 = vsub.s32 %v5387, %v5389
      %v5391 = vrot.slane %v5377, %v5390
      %v5392 = vcombine.low %v5384, %v5391
      %v5393 = vcombine.low %v4253, %v4257
      %v5394 = vcombine.low %v4261, %v4265
      %v5395 = vcombine.low %v4269, %v4273
      %v5396 = vcombine.low %v4277, %v4281
      %v5398 = vunpack.c.l.s4 1966171168
      %v5399 = vunpack.c.0.s8 %v5398
      %v5400 = vlaneseq
      %v5401 = vshrl.u32 %v5400, 7
      %v5402 = vsub.s32 %v5399, %v5401
      %v5403 = vrot.slane %v5393, %v5402
      %v5405 = vunpack.c.l.s4 1966171168
      %v5406 = vunpack.c.0.s8 %v5405
      %v5407 = vlaneseq
      %v5408 = vshrl.u32 %v5407, 7
      %v5409 = vsub.s32 %v5406, %v5408
      %v5410 = vrot.slane %v5394, %v5409
      %v5412 = vunpack.c.l.s4 1966171168
      %v5413 = vunpack.c.0.s8 %v5412
      %v5414 = vlaneseq
      %v5415 = vshrl.u32 %v5414, 7
      %v5416 = vsub.s32 %v5413, %v5415
      %v5417 = vrot.slane %v5395, %v5416
      %v5419 = vunpack.c.l.s4 1966171168
      %v5420 = vunpack.c.0.s8 %v5419
      %v5421 = vlaneseq
      %v5422 = vshrl.u32 %v5421, 7
      %v5423 = vsub.s32 %v5420, %v5422
      %v5424 = vrot.slane %v5396, %v5423
      %v5425 = vcombine.low %v5403, %v5410
      %v5426 = vcombine.low %v5417, %v5424
      %v5428 = vunpack.c.l.s4 1966171168
      %v5429 = vunpack.c.0.s8 %v5428
      %v5430 = vlaneseq
      %v5431 = vshrl.u32 %v5430, 7
      %v5432 = vsub.s32 %v5429, %v5431
      %v5433 = vrot.slane %v5425, %v5432
      %v5435 = vunpack.c.l.s4 1966171168
      %v5436 = vunpack.c.0.s8 %v5435
      %v5437 = vlaneseq
      %v5438 = vshrl.u32 %v5437, 7
      %v5439 = vsub.s32 %v5436, %v5438
      %v5440 = vrot.slane %v5426, %v5439
      %v5441 = vcombine.low %v5433, %v5440
      %v5442 = vcombine.low %v4285, %v4289
      %v5443 = vcombine.low %v4293, %v4297
      %v5444 = vcombine.low %v4301, %v4305
      %v5445 = vcombine.low %v4309, %v4313
      %v5447 = vunpack.c.l.s4 1966171168
      %v5448 = vunpack.c.0.s8 %v5447
      %v5449 = vlaneseq
      %v5450 = vshrl.u32 %v5449, 7
      %v5451 = vsub.s32 %v5448, %v5450
      %v5452 = vrot.slane %v5442, %v5451
      %v5454 = vunpack.c.l.s4 1966171168
      %v5455 = vunpack.c.0.s8 %v5454
      %v5456 = vlaneseq
      %v5457 = vshrl.u32 %v5456, 7
      %v5458 = vsub.s32 %v5455, %v5457
      %v5459 = vrot.slane %v5443, %v5458
      %v5461 = vunpack.c.l.s4 1966171168
      %v5462 = vunpack.c.0.s8 %v5461
      %v5463 = vlaneseq
      %v5464 = vshrl.u32 %v5463, 7
      %v5465 = vsub.s32 %v5462, %v5464
      %v5466 = vrot.slane %v5444, %v5465
      %v5468 = vunpack.c.l.s4 1966171168
      %v5469 = vunpack.c.0.s8 %v5468
      %v5470 = vlaneseq
      %v5471 = vshrl.u32 %v5470, 7
      %v5472 = vsub.s32 %v5469, %v5471
      %v5473 = vrot.slane %v5445, %v5472
      %v5474 = vcombine.low %v5452, %v5459
      %v5475 = vcombine.low %v5466, %v5473
      %v5477 = vunpack.c.l.s4 1966171168
      %v5478 = vunpack.c.0.s8 %v5477
      %v5479 = vlaneseq
      %v5480 = vshrl.u32 %v5479, 7
      %v5481 = vsub.s32 %v5478, %v5480
      %v5482 = vrot.slane %v5474, %v5481
      %v5484 = vunpack.c.l.s4 1966171168
      %v5485 = vunpack.c.0.s8 %v5484
      %v5486 = vlaneseq
      %v5487 = vshrl.u32 %v5486, 7
      %v5488 = vsub.s32 %v5485, %v5487
      %v5489 = vrot.slane %v5475, %v5488
      %v5490 = vcombine.low %v5482, %v5489
      %v5491 = vcombine.low %v4317, %v4321
      %v5492 = vcombine.low %v4325, %v4329
      %v5493 = vcombine.low %v4333, %v4337
      %v5494 = vcombine.low %v4341, %v4345
      %v5496 = vunpack.c.l.s4 1966171168
      %v5497 = vunpack.c.0.s8 %v5496
      %v5498 = vlaneseq
      %v5499 = vshrl.u32 %v5498, 7
      %v5500 = vsub.s32 %v5497, %v5499
      %v5501 = vrot.slane %v5491, %v5500
      %v5503 = vunpack.c.l.s4 1966171168
      %v5504 = vunpack.c.0.s8 %v5503
      %v5505 = vlaneseq
      %v5506 = vshrl.u32 %v5505, 7
      %v5507 = vsub.s32 %v5504, %v5506
      %v5508 = vrot.slane %v5492, %v5507
      %v5510 = vunpack.c.l.s4 1966171168
      %v5511 = vunpack.c.0.s8 %v5510
      %v5512 = vlaneseq
      %v5513 = vshrl.u32 %v5512, 7
      %v5514 = vsub.s32 %v5511, %v5513
      %v5515 = vrot.slane %v5493, %v5514
      %v5517 = vunpack.c.l.s4 1966171168
      %v5518 = vunpack.c.0.s8 %v5517
      %v5519 = vlaneseq
      %v5520 = vshrl.u32 %v5519, 7
      %v5521 = vsub.s32 %v5518, %v5520
      %v5522 = vrot.slane %v5494, %v5521
      %v5523 = vcombine.low %v5501, %v5508
      %v5524 = vcombine.low %v5515, %v5522
      %v5526 = vunpack.c.l.s4 1966171168
      %v5527 = vunpack.c.0.s8 %v5526
      %v5528 = vlaneseq
      %v5529 = vshrl.u32 %v5528, 7
      %v5530 = vsub.s32 %v5527, %v5529
      %v5531 = vrot.slane %v5523, %v5530
      %v5533 = vunpack.c.l.s4 1966171168
      %v5534 = vunpack.c.0.s8 %v5533
      %v5535 = vlaneseq
      %v5536 = vshrl.u32 %v5535, 7
      %v5537 = vsub.s32 %v5534, %v5536
      %v5538 = vrot.slane %v5524, %v5537
      %v5539 = vcombine.low %v5531, %v5538
      %v5540 = vcombine.low %v4349, %v4353
      %v5541 = vcombine.low %v4357, %v4361
      %v5542 = vcombine.low %v4365, %v4369
      %v5543 = vcombine.low %v4373, %v4377
      %v5545 = vunpack.c.l.s4 1966171168
      %v5546 = vunpack.c.0.s8 %v5545
      %v5547 = vlaneseq
      %v5548 = vshrl.u32 %v5547, 7
      %v5549 = vsub.s32 %v5546, %v5548
      %v5550 = vrot.slane %v5540, %v5549
      %v5552 = vunpack.c.l.s4 1966171168
      %v5553 = vunpack.c.0.s8 %v5552
      %v5554 = vlaneseq
      %v5555 = vshrl.u32 %v5554, 7
      %v5556 = vsub.s32 %v5553, %v5555
      %v5557 = vrot.slane %v5541, %v5556
      %v5559 = vunpack.c.l.s4 1966171168
      %v5560 = vunpack.c.0.s8 %v5559
      %v5561 = vlaneseq
      %v5562 = vshrl.u32 %v5561, 7
      %v5563 = vsub.s32 %v5560, %v5562
      %v5564 = vrot.slane %v5542, %v5563
      %v5566 = vunpack.c.l.s4 1966171168
      %v5567 = vunpack.c.0.s8 %v5566
      %v5568 = vlaneseq
      %v5569 = vshrl.u32 %v5568, 7
      %v5570 = vsub.s32 %v5567, %v5569
      %v5571 = vrot.slane %v5543, %v5570
      %v5572 = vcombine.low %v5550, %v5557
      %v5573 = vcombine.low %v5564, %v5571
      %v5575 = vunpack.c.l.s4 1966171168
      %v5576 = vunpack.c.0.s8 %v5575
      %v5577 = vlaneseq
      %v5578 = vshrl.u32 %v5577, 7
      %v5579 = vsub.s32 %v5576, %v5578
      %v5580 = vrot.slane %v5572, %v5579
      %v5582 = vunpack.c.l.s4 1966171168
      %v5583 = vunpack.c.0.s8 %v5582
      %v5584 = vlaneseq
      %v5585 = vshrl.u32 %v5584, 7
      %v5586 = vsub.s32 %v5583, %v5585
      %v5587 = vrot.slane %v5573, %v5586
      %v5588 = vcombine.low %v5580, %v5587
      %v5589 = vcombine.low %v4381, %v4385
      %v5590 = vcombine.low %v4389, %v4393
      %v5591 = vcombine.low %v4397, %v4401
      %v5592 = vcombine.low %v4405, %v4409
      %v5594 = vunpack.c.l.s4 1966171168
      %v5595 = vunpack.c.0.s8 %v5594
      %v5596 = vlaneseq
      %v5597 = vshrl.u32 %v5596, 7
      %v5598 = vsub.s32 %v5595, %v5597
      %v5599 = vrot.slane %v5589, %v5598
      %v5601 = vunpack.c.l.s4 1966171168
      %v5602 = vunpack.c.0.s8 %v5601
      %v5603 = vlaneseq
      %v5604 = vshrl.u32 %v5603, 7
      %v5605 = vsub.s32 %v5602, %v5604
      %v5606 = vrot.slane %v5590, %v5605
      %v5608 = vunpack.c.l.s4 1966171168
      %v5609 = vunpack.c.0.s8 %v5608
      %v5610 = vlaneseq
      %v5611 = vshrl.u32 %v5610, 7
      %v5612 = vsub.s32 %v5609, %v5611
      %v5613 = vrot.slane %v5591, %v5612
      %v5615 = vunpack.c.l.s4 1966171168
      %v5616 = vunpack.c.0.s8 %v5615
      %v5617 = vlaneseq
      %v5618 = vshrl.u32 %v5617, 7
      %v5619 = vsub.s32 %v5616, %v5618
      %v5620 = vrot.slane %v5592, %v5619
      %v5621 = vcombine.low %v5599, %v5606
      %v5622 = vcombine.low %v5613, %v5620
      %v5624 = vunpack.c.l.s4 1966171168
      %v5625 = vunpack.c.0.s8 %v5624
      %v5626 = vlaneseq
      %v5627 = vshrl.u32 %v5626, 7
      %v5628 = vsub.s32 %v5625, %v5627
      %v5629 = vrot.slane %v5621, %v5628
      %v5631 = vunpack.c.l.s4 1966171168
      %v5632 = vunpack.c.0.s8 %v5631
      %v5633 = vlaneseq
      %v5634 = vshrl.u32 %v5633, 7
      %v5635 = vsub.s32 %v5632, %v5634
      %v5636 = vrot.slane %v5622, %v5635
      %v5637 = vcombine.low %v5629, %v5636
      %v5638 = vcombine.low %v4413, %v4417
      %v5639 = vcombine.low %v4421, %v4425
      %v5640 = vcombine.low %v4429, %v4433
      %v5641 = vcombine.low %v4437, %v4441
      %v5643 = vunpack.c.l.s4 1966171168
      %v5644 = vunpack.c.0.s8 %v5643
      %v5645 = vlaneseq
      %v5646 = vshrl.u32 %v5645, 7
      %v5647 = vsub.s32 %v5644, %v5646
      %v5648 = vrot.slane %v5638, %v5647
      %v5650 = vunpack.c.l.s4 1966171168
      %v5651 = vunpack.c.0.s8 %v5650
      %v5652 = vlaneseq
      %v5653 = vshrl.u32 %v5652, 7
      %v5654 = vsub.s32 %v5651, %v5653
      %v5655 = vrot.slane %v5639, %v5654
      %v5657 = vunpack.c.l.s4 1966171168
      %v5658 = vunpack.c.0.s8 %v5657
      %v5659 = vlaneseq
      %v5660 = vshrl.u32 %v5659, 7
      %v5661 = vsub.s32 %v5658, %v5660
      %v5662 = vrot.slane %v5640, %v5661
      %v5664 = vunpack.c.l.s4 1966171168
      %v5665 = vunpack.c.0.s8 %v5664
      %v5666 = vlaneseq
      %v5667 = vshrl.u32 %v5666, 7
      %v5668 = vsub.s32 %v5665, %v5667
      %v5669 = vrot.slane %v5641, %v5668
      %v5670 = vcombine.low %v5648, %v5655
      %v5671 = vcombine.low %v5662, %v5669
      %v5673 = vunpack.c.l.s4 1966171168
      %v5674 = vunpack.c.0.s8 %v5673
      %v5675 = vlaneseq
      %v5676 = vshrl.u32 %v5675, 7
      %v5677 = vsub.s32 %v5674, %v5676
      %v5678 = vrot.slane %v5670, %v5677
      %v5680 = vunpack.c.l.s4 1966171168
      %v5681 = vunpack.c.0.s8 %v5680
      %v5682 = vlaneseq
      %v5683 = vshrl.u32 %v5682, 7
      %v5684 = vsub.s32 %v5681, %v5683
      %v5685 = vrot.slane %v5671, %v5684
      %v5686 = vcombine.low %v5678, %v5685
      %v5687 = vcombine.low %v4445, %v4449
      %v5688 = vcombine.low %v4453, %v4457
      %v5689 = vcombine.low %v4461, %v4465
      %v5690 = vcombine.low %v4469, %v4473
      %v5692 = vunpack.c.l.s4 1966171168
      %v5693 = vunpack.c.0.s8 %v5692
      %v5694 = vlaneseq
      %v5695 = vshrl.u32 %v5694, 7
      %v5696 = vsub.s32 %v5693, %v5695
      %v5697 = vrot.slane %v5687, %v5696
      %v5699 = vunpack.c.l.s4 1966171168
      %v5700 = vunpack.c.0.s8 %v5699
      %v5701 = vlaneseq
      %v5702 = vshrl.u32 %v5701, 7
      %v5703 = vsub.s32 %v5700, %v5702
      %v5704 = vrot.slane %v5688, %v5703
      %v5706 = vunpack.c.l.s4 1966171168
      %v5707 = vunpack.c.0.s8 %v5706
      %v5708 = vlaneseq
      %v5709 = vshrl.u32 %v5708, 7
      %v5710 = vsub.s32 %v5707, %v5709
      %v5711 = vrot.slane %v5689, %v5710
      %v5713 = vunpack.c.l.s4 1966171168
      %v5714 = vunpack.c.0.s8 %v5713
      %v5715 = vlaneseq
      %v5716 = vshrl.u32 %v5715, 7
      %v5717 = vsub.s32 %v5714, %v5716
      %v5718 = vrot.slane %v5690, %v5717
      %v5719 = vcombine.low %v5697, %v5704
      %v5720 = vcombine.low %v5711, %v5718
      %v5722 = vunpack.c.l.s4 1966171168
      %v5723 = vunpack.c.0.s8 %v5722
      %v5724 = vlaneseq
      %v5725 = vshrl.u32 %v5724, 7
      %v5726 = vsub.s32 %v5723, %v5725
      %v5727 = vrot.slane %v5719, %v5726
      %v5729 = vunpack.c.l.s4 1966171168
      %v5730 = vunpack.c.0.s8 %v5729
      %v5731 = vlaneseq
      %v5732 = vshrl.u32 %v5731, 7
      %v5733 = vsub.s32 %v5730, %v5732
      %v5734 = vrot.slane %v5720, %v5733
      %v5735 = vcombine.low %v5727, %v5734
      %v5736 = vcombine.low %v4477, %v4481
      %v5737 = vcombine.low %v4485, %v4489
      %v5738 = vcombine.low %v4493, %v4497
      %v5739 = vcombine.low %v4501, %v4505
      %v5741 = vunpack.c.l.s4 1966171168
      %v5742 = vunpack.c.0.s8 %v5741
      %v5743 = vlaneseq
      %v5744 = vshrl.u32 %v5743, 7
      %v5745 = vsub.s32 %v5742, %v5744
      %v5746 = vrot.slane %v5736, %v5745
      %v5748 = vunpack.c.l.s4 1966171168
      %v5749 = vunpack.c.0.s8 %v5748
      %v5750 = vlaneseq
      %v5751 = vshrl.u32 %v5750, 7
      %v5752 = vsub.s32 %v5749, %v5751
      %v5753 = vrot.slane %v5737, %v5752
      %v5755 = vunpack.c.l.s4 1966171168
      %v5756 = vunpack.c.0.s8 %v5755
      %v5757 = vlaneseq
      %v5758 = vshrl.u32 %v5757, 7
      %v5759 = vsub.s32 %v5756, %v5758
      %v5760 = vrot.slane %v5738, %v5759
      %v5762 = vunpack.c.l.s4 1966171168
      %v5763 = vunpack.c.0.s8 %v5762
      %v5764 = vlaneseq
      %v5765 = vshrl.u32 %v5764, 7
      %v5766 = vsub.s32 %v5763, %v5765
      %v5767 = vrot.slane %v5739, %v5766
      %v5768 = vcombine.low %v5746, %v5753
      %v5769 = vcombine.low %v5760, %v5767
      %v5771 = vunpack.c.l.s4 1966171168
      %v5772 = vunpack.c.0.s8 %v5771
      %v5773 = vlaneseq
      %v5774 = vshrl.u32 %v5773, 7
      %v5775 = vsub.s32 %v5772, %v5774
      %v5776 = vrot.slane %v5768, %v5775
      %v5778 = vunpack.c.l.s4 1966171168
      %v5779 = vunpack.c.0.s8 %v5778
      %v5780 = vlaneseq
      %v5781 = vshrl.u32 %v5780, 7
      %v5782 = vsub.s32 %v5779, %v5781
      %v5783 = vrot.slane %v5769, %v5782
      %v5784 = vcombine.low %v5776, %v5783
      %v5785 = vcombine.low %v4509, %v4513
      %v5786 = vcombine.low %v4517, %v4521
      %v5787 = vcombine.low %v4525, %v4529
      %v5788 = vcombine.low %v4533, %v4537
      %v5790 = vunpack.c.l.s4 1966171168
      %v5791 = vunpack.c.0.s8 %v5790
      %v5792 = vlaneseq
      %v5793 = vshrl.u32 %v5792, 7
      %v5794 = vsub.s32 %v5791, %v5793
      %v5795 = vrot.slane %v5785, %v5794
      %v5797 = vunpack.c.l.s4 1966171168
      %v5798 = vunpack.c.0.s8 %v5797
      %v5799 = vlaneseq
      %v5800 = vshrl.u32 %v5799, 7
      %v5801 = vsub.s32 %v5798, %v5800
      %v5802 = vrot.slane %v5786, %v5801
      %v5804 = vunpack.c.l.s4 1966171168
      %v5805 = vunpack.c.0.s8 %v5804
      %v5806 = vlaneseq
      %v5807 = vshrl.u32 %v5806, 7
      %v5808 = vsub.s32 %v5805, %v5807
      %v5809 = vrot.slane %v5787, %v5808
      %v5811 = vunpack.c.l.s4 1966171168
      %v5812 = vunpack.c.0.s8 %v5811
      %v5813 = vlaneseq
      %v5814 = vshrl.u32 %v5813, 7
      %v5815 = vsub.s32 %v5812, %v5814
      %v5816 = vrot.slane %v5788, %v5815
      %v5817 = vcombine.low %v5795, %v5802
      %v5818 = vcombine.low %v5809, %v5816
      %v5820 = vunpack.c.l.s4 1966171168
      %v5821 = vunpack.c.0.s8 %v5820
      %v5822 = vlaneseq
      %v5823 = vshrl.u32 %v5822, 7
      %v5824 = vsub.s32 %v5821, %v5823
      %v5825 = vrot.slane %v5817, %v5824
      %v5827 = vunpack.c.l.s4 1966171168
      %v5828 = vunpack.c.0.s8 %v5827
      %v5829 = vlaneseq
      %v5830 = vshrl.u32 %v5829, 7
      %v5831 = vsub.s32 %v5828, %v5830
      %v5832 = vrot.slane %v5818, %v5831
      %v5833 = vcombine.low %v5825, %v5832
      %v5834 = vcombine.low %v4541, %v4545
      %v5835 = vcombine.low %v4549, %v4553
      %v5836 = vcombine.low %v4557, %v4561
      %v5837 = vcombine.low %v4565, %v4569
      %v5839 = vunpack.c.l.s4 1966171168
      %v5840 = vunpack.c.0.s8 %v5839
      %v5841 = vlaneseq
      %v5842 = vshrl.u32 %v5841, 7
      %v5843 = vsub.s32 %v5840, %v5842
      %v5844 = vrot.slane %v5834, %v5843
      %v5846 = vunpack.c.l.s4 1966171168
      %v5847 = vunpack.c.0.s8 %v5846
      %v5848 = vlaneseq
      %v5849 = vshrl.u32 %v5848, 7
      %v5850 = vsub.s32 %v5847, %v5849
      %v5851 = vrot.slane %v5835, %v5850
      %v5853 = vunpack.c.l.s4 1966171168
      %v5854 = vunpack.c.0.s8 %v5853
      %v5855 = vlaneseq
      %v5856 = vshrl.u32 %v5855, 7
      %v5857 = vsub.s32 %v5854, %v5856
      %v5858 = vrot.slane %v5836, %v5857
      %v5860 = vunpack.c.l.s4 1966171168
      %v5861 = vunpack.c.0.s8 %v5860
      %v5862 = vlaneseq
      %v5863 = vshrl.u32 %v5862, 7
      %v5864 = vsub.s32 %v5861, %v5863
      %v5865 = vrot.slane %v5837, %v5864
      %v5866 = vcombine.low %v5844, %v5851
      %v5867 = vcombine.low %v5858, %v5865
      %v5869 = vunpack.c.l.s4 1966171168
      %v5870 = vunpack.c.0.s8 %v5869
      %v5871 = vlaneseq
      %v5872 = vshrl.u32 %v5871, 7
      %v5873 = vsub.s32 %v5870, %v5872
      %v5874 = vrot.slane %v5866, %v5873
      %v5876 = vunpack.c.l.s4 1966171168
      %v5877 = vunpack.c.0.s8 %v5876
      %v5878 = vlaneseq
      %v5879 = vshrl.u32 %v5878, 7
      %v5880 = vsub.s32 %v5877, %v5879
      %v5881 = vrot.slane %v5867, %v5880
      %v5882 = vcombine.low %v5874, %v5881
      %v5883 = vcombine.low %v4573, %v4577
      %v5884 = vcombine.low %v4581, %v4585
      %v5885 = vcombine.low %v4589, %v4593
      %v5886 = vcombine.low %v4597, %v4601
      %v5888 = vunpack.c.l.s4 1966171168
      %v5889 = vunpack.c.0.s8 %v5888
      %v5890 = vlaneseq
      %v5891 = vshrl.u32 %v5890, 7
      %v5892 = vsub.s32 %v5889, %v5891
      %v5893 = vrot.slane %v5883, %v5892
      %v5895 = vunpack.c.l.s4 1966171168
      %v5896 = vunpack.c.0.s8 %v5895
      %v5897 = vlaneseq
      %v5898 = vshrl.u32 %v5897, 7
      %v5899 = vsub.s32 %v5896, %v5898
      %v5900 = vrot.slane %v5884, %v5899
      %v5902 = vunpack.c.l.s4 1966171168
      %v5903 = vunpack.c.0.s8 %v5902
      %v5904 = vlaneseq
      %v5905 = vshrl.u32 %v5904, 7
      %v5906 = vsub.s32 %v5903, %v5905
      %v5907 = vrot.slane %v5885, %v5906
      %v5909 = vunpack.c.l.s4 1966171168
      %v5910 = vunpack.c.0.s8 %v5909
      %v5911 = vlaneseq
      %v5912 = vshrl.u32 %v5911, 7
      %v5913 = vsub.s32 %v5910, %v5912
      %v5914 = vrot.slane %v5886, %v5913
      %v5915 = vcombine.low %v5893, %v5900
      %v5916 = vcombine.low %v5907, %v5914
      %v5918 = vunpack.c.l.s4 1966171168
      %v5919 = vunpack.c.0.s8 %v5918
      %v5920 = vlaneseq
      %v5921 = vshrl.u32 %v5920, 7
      %v5922 = vsub.s32 %v5919, %v5921
      %v5923 = vrot.slane %v5915, %v5922
      %v5925 = vunpack.c.l.s4 1966171168
      %v5926 = vunpack.c.0.s8 %v5925
      %v5927 = vlaneseq
      %v5928 = vshrl.u32 %v5927, 7
      %v5929 = vsub.s32 %v5926, %v5928
      %v5930 = vrot.slane %v5916, %v5929
      %v5931 = vcombine.low %v5923, %v5930
      %v5932 = vcombine.low %v4605, %v4609
      %v5933 = vcombine.low %v4613, %v4617
      %v5934 = vcombine.low %v4621, %v4625
      %v5935 = vcombine.low %v4629, %v4633
      %v5937 = vunpack.c.l.s4 1966171168
      %v5938 = vunpack.c.0.s8 %v5937
      %v5939 = vlaneseq
      %v5940 = vshrl.u32 %v5939, 7
      %v5941 = vsub.s32 %v5938, %v5940
      %v5942 = vrot.slane %v5932, %v5941
      %v5944 = vunpack.c.l.s4 1966171168
      %v5945 = vunpack.c.0.s8 %v5944
      %v5946 = vlaneseq
      %v5947 = vshrl.u32 %v5946, 7
      %v5948 = vsub.s32 %v5945, %v5947
      %v5949 = vrot.slane %v5933, %v5948
      %v5951 = vunpack.c.l.s4 1966171168
      %v5952 = vunpack.c.0.s8 %v5951
      %v5953 = vlaneseq
      %v5954 = vshrl.u32 %v5953, 7
      %v5955 = vsub.s32 %v5952, %v5954
      %v5956 = vrot.slane %v5934, %v5955
      %v5958 = vunpack.c.l.s4 1966171168
      %v5959 = vunpack.c.0.s8 %v5958
      %v5960 = vlaneseq
      %v5961 = vshrl.u32 %v5960, 7
      %v5962 = vsub.s32 %v5959, %v5961
      %v5963 = vrot.slane %v5935, %v5962
      %v5964 = vcombine.low %v5942, %v5949
      %v5965 = vcombine.low %v5956, %v5963
      %v5967 = vunpack.c.l.s4 1966171168
      %v5968 = vunpack.c.0.s8 %v5967
      %v5969 = vlaneseq
      %v5970 = vshrl.u32 %v5969, 7
      %v5971 = vsub.s32 %v5968, %v5970
      %v5972 = vrot.slane %v5964, %v5971
      %v5974 = vunpack.c.l.s4 1966171168
      %v5975 = vunpack.c.0.s8 %v5974
      %v5976 = vlaneseq
      %v5977 = vshrl.u32 %v5976, 7
      %v5978 = vsub.s32 %v5975, %v5977
      %v5979 = vrot.slane %v5965, %v5978
      %v5980 = vcombine.low %v5972, %v5979
      %v5981 = vcombine.low %v4637, %v4641
      %v5982 = vcombine.low %v4645, %v4649
      %v5983 = vcombine.low %v4653, %v4657
      %v5984 = vcombine.low %v4661, %v4665
      %v5986 = vunpack.c.l.s4 1966171168
      %v5987 = vunpack.c.0.s8 %v5986
      %v5988 = vlaneseq
      %v5989 = vshrl.u32 %v5988, 7
      %v5990 = vsub.s32 %v5987, %v5989
      %v5991 = vrot.slane %v5981, %v5990
      %v5993 = vunpack.c.l.s4 1966171168
      %v5994 = vunpack.c.0.s8 %v5993
      %v5995 = vlaneseq
      %v5996 = vshrl.u32 %v5995, 7
      %v5997 = vsub.s32 %v5994, %v5996
      %v5998 = vrot.slane %v5982, %v5997
      %v6000 = vunpack.c.l.s4 1966171168
      %v6001 = vunpack.c.0.s8 %v6000
      %v6002 = vlaneseq
      %v6003 = vshrl.u32 %v6002, 7
      %v6004 = vsub.s32 %v6001, %v6003
      %v6005 = vrot.slane %v5983, %v6004
      %v6007 = vunpack.c.l.s4 1966171168
      %v6008 = vunpack.c.0.s8 %v6007
      %v6009 = vlaneseq
      %v6010 = vshrl.u32 %v6009, 7
      %v6011 = vsub.s32 %v6008, %v6010
      %v6012 = vrot.slane %v5984, %v6011
      %v6013 = vcombine.low %v5991, %v5998
      %v6014 = vcombine.low %v6005, %v6012
      %v6016 = vunpack.c.l.s4 1966171168
      %v6017 = vunpack.c.0.s8 %v6016
      %v6018 = vlaneseq
      %v6019 = vshrl.u32 %v6018, 7
      %v6020 = vsub.s32 %v6017, %v6019
      %v6021 = vrot.slane %v6013, %v6020
      %v6023 = vunpack.c.l.s4 1966171168
      %v6024 = vunpack.c.0.s8 %v6023
      %v6025 = vlaneseq
      %v6026 = vshrl.u32 %v6025, 7
      %v6027 = vsub.s32 %v6024, %v6026
      %v6028 = vrot.slane %v6014, %v6027
      %v6029 = vcombine.low %v6021, %v6028
      %v6030 = vcombine.low %v4669, %v4673
      %v6031 = vcombine.low %v4677, %v4681
      %v6032 = vcombine.low %v4685, %v4689
      %v6033 = vcombine.low %v4693, %v4697
      %v6035 = vunpack.c.l.s4 1966171168
      %v6036 = vunpack.c.0.s8 %v6035
      %v6037 = vlaneseq
      %v6038 = vshrl.u32 %v6037, 7
      %v6039 = vsub.s32 %v6036, %v6038
      %v6040 = vrot.slane %v6030, %v6039
      %v6042 = vunpack.c.l.s4 1966171168
      %v6043 = vunpack.c.0.s8 %v6042
      %v6044 = vlaneseq
      %v6045 = vshrl.u32 %v6044, 7
      %v6046 = vsub.s32 %v6043, %v6045
      %v6047 = vrot.slane %v6031, %v6046
      %v6049 = vunpack.c.l.s4 1966171168
      %v6050 = vunpack.c.0.s8 %v6049
      %v6051 = vlaneseq
      %v6052 = vshrl.u32 %v6051, 7
      %v6053 = vsub.s32 %v6050, %v6052
      %v6054 = vrot.slane %v6032, %v6053
      %v6056 = vunpack.c.l.s4 1966171168
      %v6057 = vunpack.c.0.s8 %v6056
      %v6058 = vlaneseq
      %v6059 = vshrl.u32 %v6058, 7
      %v6060 = vsub.s32 %v6057, %v6059
      %v6061 = vrot.slane %v6033, %v6060
      %v6062 = vcombine.low %v6040, %v6047
      %v6063 = vcombine.low %v6054, %v6061
      %v6065 = vunpack.c.l.s4 1966171168
      %v6066 = vunpack.c.0.s8 %v6065
      %v6067 = vlaneseq
      %v6068 = vshrl.u32 %v6067, 7
      %v6069 = vsub.s32 %v6066, %v6068
      %v6070 = vrot.slane %v6062, %v6069
      %v6072 = vunpack.c.l.s4 1966171168
      %v6073 = vunpack.c.0.s8 %v6072
      %v6074 = vlaneseq
      %v6075 = vshrl.u32 %v6074, 7
      %v6076 = vsub.s32 %v6073, %v6075
      %v6077 = vrot.slane %v6063, %v6076
      %v6078 = vcombine.low %v6070, %v6077
      %v6079 = vcombine.low %v4701, %v4705
      %v6080 = vcombine.low %v4709, %v4713
      %v6081 = vcombine.low %v4717, %v4721
      %v6082 = vcombine.low %v4725, %v4729
      %v6084 = vunpack.c.l.s4 1966171168
      %v6085 = vunpack.c.0.s8 %v6084
      %v6086 = vlaneseq
      %v6087 = vshrl.u32 %v6086, 7
      %v6088 = vsub.s32 %v6085, %v6087
      %v6089 = vrot.slane %v6079, %v6088
      %v6091 = vunpack.c.l.s4 1966171168
      %v6092 = vunpack.c.0.s8 %v6091
      %v6093 = vlaneseq
      %v6094 = vshrl.u32 %v6093, 7
      %v6095 = vsub.s32 %v6092, %v6094
      %v6096 = vrot.slane %v6080, %v6095
      %v6098 = vunpack.c.l.s4 1966171168
      %v6099 = vunpack.c.0.s8 %v6098
      %v6100 = vlaneseq
      %v6101 = vshrl.u32 %v6100, 7
      %v6102 = vsub.s32 %v6099, %v6101
      %v6103 = vrot.slane %v6081, %v6102
      %v6105 = vunpack.c.l.s4 1966171168
      %v6106 = vunpack.c.0.s8 %v6105
      %v6107 = vlaneseq
      %v6108 = vshrl.u32 %v6107, 7
      %v6109 = vsub.s32 %v6106, %v6108
      %v6110 = vrot.slane %v6082, %v6109
      %v6111 = vcombine.low %v6089, %v6096
      %v6112 = vcombine.low %v6103, %v6110
      %v6114 = vunpack.c.l.s4 1966171168
      %v6115 = vunpack.c.0.s8 %v6114
      %v6116 = vlaneseq
      %v6117 = vshrl.u32 %v6116, 7
      %v6118 = vsub.s32 %v6115, %v6117
      %v6119 = vrot.slane %v6111, %v6118
      %v6121 = vunpack.c.l.s4 1966171168
      %v6122 = vunpack.c.0.s8 %v6121
      %v6123 = vlaneseq
      %v6124 = vshrl.u32 %v6123, 7
      %v6125 = vsub.s32 %v6122, %v6124
      %v6126 = vrot.slane %v6112, %v6125
      %v6127 = vcombine.low %v6119, %v6126
      %v6128 = vcombine.low %v4733, %v4737
      %v6129 = vcombine.low %v4741, %v4745
      %v6130 = vcombine.low %v4749, %v4753
      %v6131 = vcombine.low %v4757, %v4761
      %v6133 = vunpack.c.l.s4 1966171168
      %v6134 = vunpack.c.0.s8 %v6133
      %v6135 = vlaneseq
      %v6136 = vshrl.u32 %v6135, 7
      %v6137 = vsub.s32 %v6134, %v6136
      %v6138 = vrot.slane %v6128, %v6137
      %v6140 = vunpack.c.l.s4 1966171168
      %v6141 = vunpack.c.0.s8 %v6140
      %v6142 = vlaneseq
      %v6143 = vshrl.u32 %v6142, 7
      %v6144 = vsub.s32 %v6141, %v6143
      %v6145 = vrot.slane %v6129, %v6144
      %v6147 = vunpack.c.l.s4 1966171168
      %v6148 = vunpack.c.0.s8 %v6147
      %v6149 = vlaneseq
      %v6150 = vshrl.u32 %v6149, 7
      %v6151 = vsub.s32 %v6148, %v6150
      %v6152 = vrot.slane %v6130, %v6151
      %v6154 = vunpack.c.l.s4 1966171168
      %v6155 = vunpack.c.0.s8 %v6154
      %v6156 = vlaneseq
      %v6157 = vshrl.u32 %v6156, 7
      %v6158 = vsub.s32 %v6155, %v6157
      %v6159 = vrot.slane %v6131, %v6158
      %v6160 = vcombine.low %v6138, %v6145
      %v6161 = vcombine.low %v6152, %v6159
      %v6163 = vunpack.c.l.s4 1966171168
      %v6164 = vunpack.c.0.s8 %v6163
      %v6165 = vlaneseq
      %v6166 = vshrl.u32 %v6165, 7
      %v6167 = vsub.s32 %v6164, %v6166
      %v6168 = vrot.slane %v6160, %v6167
      %v6170 = vunpack.c.l.s4 1966171168
      %v6171 = vunpack.c.0.s8 %v6170
      %v6172 = vlaneseq
      %v6173 = vshrl.u32 %v6172, 7
      %v6174 = vsub.s32 %v6171, %v6173
      %v6175 = vrot.slane %v6161, %v6174
      %v6176 = vcombine.low %v6168, %v6175
      %v6177 = vcombine.low %v4765, %v4769
      %v6178 = vcombine.low %v4773, %v4777
      %v6179 = vcombine.low %v4781, %v4785
      %v6180 = vcombine.low %v4789, %v4793
      %v6182 = vunpack.c.l.s4 1966171168
      %v6183 = vunpack.c.0.s8 %v6182
      %v6184 = vlaneseq
      %v6185 = vshrl.u32 %v6184, 7
      %v6186 = vsub.s32 %v6183, %v6185
      %v6187 = vrot.slane %v6177, %v6186
      %v6189 = vunpack.c.l.s4 1966171168
      %v6190 = vunpack.c.0.s8 %v6189
      %v6191 = vlaneseq
      %v6192 = vshrl.u32 %v6191, 7
      %v6193 = vsub.s32 %v6190, %v6192
      %v6194 = vrot.slane %v6178, %v6193
      %v6196 = vunpack.c.l.s4 1966171168
      %v6197 = vunpack.c.0.s8 %v6196
      %v6198 = vlaneseq
      %v6199 = vshrl.u32 %v6198, 7
      %v6200 = vsub.s32 %v6197, %v6199
      %v6201 = vrot.slane %v6179, %v6200
      %v6203 = vunpack.c.l.s4 1966171168
      %v6204 = vunpack.c.0.s8 %v6203
      %v6205 = vlaneseq
      %v6206 = vshrl.u32 %v6205, 7
      %v6207 = vsub.s32 %v6204, %v6206
      %v6208 = vrot.slane %v6180, %v6207
      %v6209 = vcombine.low %v6187, %v6194
      %v6210 = vcombine.low %v6201, %v6208
      %v6212 = vunpack.c.l.s4 1966171168
      %v6213 = vunpack.c.0.s8 %v6212
      %v6214 = vlaneseq
      %v6215 = vshrl.u32 %v6214, 7
      %v6216 = vsub.s32 %v6213, %v6215
      %v6217 = vrot.slane %v6209, %v6216
      %v6219 = vunpack.c.l.s4 1966171168
      %v6220 = vunpack.c.0.s8 %v6219
      %v6221 = vlaneseq
      %v6222 = vshrl.u32 %v6221, 7
      %v6223 = vsub.s32 %v6220, %v6222
      %v6224 = vrot.slane %v6210, %v6223
      %v6225 = vcombine.low %v6217, %v6224
      %v6226 = vcombine.low %v4797, %v4801
      %v6227 = vcombine.low %v4805, %v4809
      %v6228 = vcombine.low %v4813, %v4817
      %v6229 = vcombine.low %v4821, %v4825
      %v6231 = vunpack.c.l.s4 1966171168
      %v6232 = vunpack.c.0.s8 %v6231
      %v6233 = vlaneseq
      %v6234 = vshrl.u32 %v6233, 7
      %v6235 = vsub.s32 %v6232, %v6234
      %v6236 = vrot.slane %v6226, %v6235
      %v6238 = vunpack.c.l.s4 1966171168
      %v6239 = vunpack.c.0.s8 %v6238
      %v6240 = vlaneseq
      %v6241 = vshrl.u32 %v6240, 7
      %v6242 = vsub.s32 %v6239, %v6241
      %v6243 = vrot.slane %v6227, %v6242
      %v6245 = vunpack.c.l.s4 1966171168
      %v6246 = vunpack.c.0.s8 %v6245
      %v6247 = vlaneseq
      %v6248 = vshrl.u32 %v6247, 7
      %v6249 = vsub.s32 %v6246, %v6248
      %v6250 = vrot.slane %v6228, %v6249
      %v6252 = vunpack.c.l.s4 1966171168
      %v6253 = vunpack.c.0.s8 %v6252
      %v6254 = vlaneseq
      %v6255 = vshrl.u32 %v6254, 7
      %v6256 = vsub.s32 %v6253, %v6255
      %v6257 = vrot.slane %v6229, %v6256
      %v6258 = vcombine.low %v6236, %v6243
      %v6259 = vcombine.low %v6250, %v6257
      %v6261 = vunpack.c.l.s4 1966171168
      %v6262 = vunpack.c.0.s8 %v6261
      %v6263 = vlaneseq
      %v6264 = vshrl.u32 %v6263, 7
      %v6265 = vsub.s32 %v6262, %v6264
      %v6266 = vrot.slane %v6258, %v6265
      %v6268 = vunpack.c.l.s4 1966171168
      %v6269 = vunpack.c.0.s8 %v6268
      %v6270 = vlaneseq
      %v6271 = vshrl.u32 %v6270, 7
      %v6272 = vsub.s32 %v6269, %v6271
      %v6273 = vrot.slane %v6259, %v6272
      %v6274 = vcombine.low %v6266, %v6273
      %v6275 = vcombine.low %v4829, %v4833
      %v6276 = vcombine.low %v4837, %v4841
      %v6277 = vcombine.low %v4845, %v4849
      %v6278 = vcombine.low %v4853, %v4857
      %v6280 = vunpack.c.l.s4 1966171168
      %v6281 = vunpack.c.0.s8 %v6280
      %v6282 = vlaneseq
      %v6283 = vshrl.u32 %v6282, 7
      %v6284 = vsub.s32 %v6281, %v6283
      %v6285 = vrot.slane %v6275, %v6284
      %v6287 = vunpack.c.l.s4 1966171168
      %v6288 = vunpack.c.0.s8 %v6287
      %v6289 = vlaneseq
      %v6290 = vshrl.u32 %v6289, 7
      %v6291 = vsub.s32 %v6288, %v6290
      %v6292 = vrot.slane %v6276, %v6291
      %v6294 = vunpack.c.l.s4 1966171168
      %v6295 = vunpack.c.0.s8 %v6294
      %v6296 = vlaneseq
      %v6297 = vshrl.u32 %v6296, 7
      %v6298 = vsub.s32 %v6295, %v6297
      %v6299 = vrot.slane %v6277, %v6298
      %v6301 = vunpack.c.l.s4 1966171168
      %v6302 = vunpack.c.0.s8 %v6301
      %v6303 = vlaneseq
      %v6304 = vshrl.u32 %v6303, 7
      %v6305 = vsub.s32 %v6302, %v6304
      %v6306 = vrot.slane %v6278, %v6305
      %v6307 = vcombine.low %v6285, %v6292
      %v6308 = vcombine.low %v6299, %v6306
      %v6310 = vunpack.c.l.s4 1966171168
      %v6311 = vunpack.c.0.s8 %v6310
      %v6312 = vlaneseq
      %v6313 = vshrl.u32 %v6312, 7
      %v6314 = vsub.s32 %v6311, %v6313
      %v6315 = vrot.slane %v6307, %v6314
      %v6317 = vunpack.c.l.s4 1966171168
      %v6318 = vunpack.c.0.s8 %v6317
      %v6319 = vlaneseq
      %v6320 = vshrl.u32 %v6319, 7
      %v6321 = vsub.s32 %v6318, %v6320
      %v6322 = vrot.slane %v6308, %v6321
      %v6323 = vcombine.low %v6315, %v6322
      %v6324 = vcombine.low %v4861, %v4865
      %v6325 = vcombine.low %v4869, %v4873
      %v6326 = vcombine.low %v4877, %v4881
      %v6327 = vcombine.low %v4885, %v4889
      %v6329 = vunpack.c.l.s4 1966171168
      %v6330 = vunpack.c.0.s8 %v6329
      %v6331 = vlaneseq
      %v6332 = vshrl.u32 %v6331, 7
      %v6333 = vsub.s32 %v6330, %v6332
      %v6334 = vrot.slane %v6324, %v6333
      %v6336 = vunpack.c.l.s4 1966171168
      %v6337 = vunpack.c.0.s8 %v6336
      %v6338 = vlaneseq
      %v6339 = vshrl.u32 %v6338, 7
      %v6340 = vsub.s32 %v6337, %v6339
      %v6341 = vrot.slane %v6325, %v6340
      %v6343 = vunpack.c.l.s4 1966171168
      %v6344 = vunpack.c.0.s8 %v6343
      %v6345 = vlaneseq
      %v6346 = vshrl.u32 %v6345, 7
      %v6347 = vsub.s32 %v6344, %v6346
      %v6348 = vrot.slane %v6326, %v6347
      %v6350 = vunpack.c.l.s4 1966171168
      %v6351 = vunpack.c.0.s8 %v6350
      %v6352 = vlaneseq
      %v6353 = vshrl.u32 %v6352, 7
      %v6354 = vsub.s32 %v6351, %v6353
      %v6355 = vrot.slane %v6327, %v6354
      %v6356 = vcombine.low %v6334, %v6341
      %v6357 = vcombine.low %v6348, %v6355
      %v6359 = vunpack.c.l.s4 1966171168
      %v6360 = vunpack.c.0.s8 %v6359
      %v6361 = vlaneseq
      %v6362 = vshrl.u32 %v6361, 7
      %v6363 = vsub.s32 %v6360, %v6362
      %v6364 = vrot.slane %v6356, %v6363
      %v6366 = vunpack.c.l.s4 1966171168
      %v6367 = vunpack.c.0.s8 %v6366
      %v6368 = vlaneseq
      %v6369 = vshrl.u32 %v6368, 7
      %v6370 = vsub.s32 %v6367, %v6369
      %v6371 = vrot.slane %v6357, %v6370
      %v6372 = vcombine.low %v6364, %v6371
      %v6373 = vcombine.low %v4893, %v4897
      %v6374 = vcombine.low %v4901, %v4905
      %v6375 = vcombine.low %v4909, %v4913
      %v6376 = vcombine.low %v4917, %v4921
      %v6378 = vunpack.c.l.s4 1966171168
      %v6379 = vunpack.c.0.s8 %v6378
      %v6380 = vlaneseq
      %v6381 = vshrl.u32 %v6380, 7
      %v6382 = vsub.s32 %v6379, %v6381
      %v6383 = vrot.slane %v6373, %v6382
      %v6385 = vunpack.c.l.s4 1966171168
      %v6386 = vunpack.c.0.s8 %v6385
      %v6387 = vlaneseq
      %v6388 = vshrl.u32 %v6387, 7
      %v6389 = vsub.s32 %v6386, %v6388
      %v6390 = vrot.slane %v6374, %v6389
      %v6392 = vunpack.c.l.s4 1966171168
      %v6393 = vunpack.c.0.s8 %v6392
      %v6394 = vlaneseq
      %v6395 = vshrl.u32 %v6394, 7
      %v6396 = vsub.s32 %v6393, %v6395
      %v6397 = vrot.slane %v6375, %v6396
      %v6399 = vunpack.c.l.s4 1966171168
      %v6400 = vunpack.c.0.s8 %v6399
      %v6401 = vlaneseq
      %v6402 = vshrl.u32 %v6401, 7
      %v6403 = vsub.s32 %v6400, %v6402
      %v6404 = vrot.slane %v6376, %v6403
      %v6405 = vcombine.low %v6383, %v6390
      %v6406 = vcombine.low %v6397, %v6404
      %v6408 = vunpack.c.l.s4 1966171168
      %v6409 = vunpack.c.0.s8 %v6408
      %v6410 = vlaneseq
      %v6411 = vshrl.u32 %v6410, 7
      %v6412 = vsub.s32 %v6409, %v6411
      %v6413 = vrot.slane %v6405, %v6412
      %v6415 = vunpack.c.l.s4 1966171168
      %v6416 = vunpack.c.0.s8 %v6415
      %v6417 = vlaneseq
      %v6418 = vshrl.u32 %v6417, 7
      %v6419 = vsub.s32 %v6416, %v6418
      %v6420 = vrot.slane %v6406, %v6419
      %v6421 = vcombine.low %v6413, %v6420
      %v6422 = vcombine.low %v4925, %v4929
      %v6423 = vcombine.low %v4933, %v4937
      %v6424 = vcombine.low %v4941, %v4945
      %v6425 = vcombine.low %v4949, %v4953
      %v6427 = vunpack.c.l.s4 1966171168
      %v6428 = vunpack.c.0.s8 %v6427
      %v6429 = vlaneseq
      %v6430 = vshrl.u32 %v6429, 7
      %v6431 = vsub.s32 %v6428, %v6430
      %v6432 = vrot.slane %v6422, %v6431
      %v6434 = vunpack.c.l.s4 1966171168
      %v6435 = vunpack.c.0.s8 %v6434
      %v6436 = vlaneseq
      %v6437 = vshrl.u32 %v6436, 7
      %v6438 = vsub.s32 %v6435, %v6437
      %v6439 = vrot.slane %v6423, %v6438
      %v6441 = vunpack.c.l.s4 1966171168
      %v6442 = vunpack.c.0.s8 %v6441
      %v6443 = vlaneseq
      %v6444 = vshrl.u32 %v6443, 7
      %v6445 = vsub.s32 %v6442, %v6444
      %v6446 = vrot.slane %v6424, %v6445
      %v6448 = vunpack.c.l.s4 1966171168
      %v6449 = vunpack.c.0.s8 %v6448
      %v6450 = vlaneseq
      %v6451 = vshrl.u32 %v6450, 7
      %v6452 = vsub.s32 %v6449, %v6451
      %v6453 = vrot.slane %v6425, %v6452
      %v6454 = vcombine.low %v6432, %v6439
      %v6455 = vcombine.low %v6446, %v6453
      %v6457 = vunpack.c.l.s4 1966171168
      %v6458 = vunpack.c.0.s8 %v6457
      %v6459 = vlaneseq
      %v6460 = vshrl.u32 %v6459, 7
      %v6461 = vsub.s32 %v6458, %v6460
      %v6462 = vrot.slane %v6454, %v6461
      %v6464 = vunpack.c.l.s4 1966171168
      %v6465 = vunpack.c.0.s8 %v6464
      %v6466 = vlaneseq
      %v6467 = vshrl.u32 %v6466, 7
      %v6468 = vsub.s32 %v6465, %v6467
      %v6469 = vrot.slane %v6455, %v6468
      %v6470 = vcombine.low %v6462, %v6469
      %v6471 = vcombine.low %v4957, %v4961
      %v6472 = vcombine.low %v4965, %v4969
      %v6473 = vcombine.low %v4973, %v4977
      %v6474 = vcombine.low %v4981, %v4985
      %v6476 = vunpack.c.l.s4 1966171168
      %v6477 = vunpack.c.0.s8 %v6476
      %v6478 = vlaneseq
      %v6479 = vshrl.u32 %v6478, 7
      %v6480 = vsub.s32 %v6477, %v6479
      %v6481 = vrot.slane %v6471, %v6480
      %v6483 = vunpack.c.l.s4 1966171168
      %v6484 = vunpack.c.0.s8 %v6483
      %v6485 = vlaneseq
      %v6486 = vshrl.u32 %v6485, 7
      %v6487 = vsub.s32 %v6484, %v6486
      %v6488 = vrot.slane %v6472, %v6487
      %v6490 = vunpack.c.l.s4 1966171168
      %v6491 = vunpack.c.0.s8 %v6490
      %v6492 = vlaneseq
      %v6493 = vshrl.u32 %v6492, 7
      %v6494 = vsub.s32 %v6491, %v6493
      %v6495 = vrot.slane %v6473, %v6494
      %v6497 = vunpack.c.l.s4 1966171168
      %v6498 = vunpack.c.0.s8 %v6497
      %v6499 = vlaneseq
      %v6500 = vshrl.u32 %v6499, 7
      %v6501 = vsub.s32 %v6498, %v6500
      %v6502 = vrot.slane %v6474, %v6501
      %v6503 = vcombine.low %v6481, %v6488
      %v6504 = vcombine.low %v6495, %v6502
      %v6506 = vunpack.c.l.s4 1966171168
      %v6507 = vunpack.c.0.s8 %v6506
      %v6508 = vlaneseq
      %v6509 = vshrl.u32 %v6508, 7
      %v6510 = vsub.s32 %v6507, %v6509
      %v6511 = vrot.slane %v6503, %v6510
      %v6513 = vunpack.c.l.s4 1966171168
      %v6514 = vunpack.c.0.s8 %v6513
      %v6515 = vlaneseq
      %v6516 = vshrl.u32 %v6515, 7
      %v6517 = vsub.s32 %v6514, %v6516
      %v6518 = vrot.slane %v6504, %v6517
      %v6519 = vcombine.low %v6511, %v6518
      %v6520 = vcombine.low %v4989, %v4993
      %v6521 = vcombine.low %v4997, %v5001
      %v6522 = vcombine.low %v5005, %v5009
      %v6523 = vcombine.low %v5013, %v5017
      %v6525 = vunpack.c.l.s4 1966171168
      %v6526 = vunpack.c.0.s8 %v6525
      %v6527 = vlaneseq
      %v6528 = vshrl.u32 %v6527, 7
      %v6529 = vsub.s32 %v6526, %v6528
      %v6530 = vrot.slane %v6520, %v6529
      %v6532 = vunpack.c.l.s4 1966171168
      %v6533 = vunpack.c.0.s8 %v6532
      %v6534 = vlaneseq
      %v6535 = vshrl.u32 %v6534, 7
      %v6536 = vsub.s32 %v6533, %v6535
      %v6537 = vrot.slane %v6521, %v6536
      %v6539 = vunpack.c.l.s4 1966171168
      %v6540 = vunpack.c.0.s8 %v6539
      %v6541 = vlaneseq
      %v6542 = vshrl.u32 %v6541, 7
      %v6543 = vsub.s32 %v6540, %v6542
      %v6544 = vrot.slane %v6522, %v6543
      %v6546 = vunpack.c.l.s4 1966171168
      %v6547 = vunpack.c.0.s8 %v6546
      %v6548 = vlaneseq
      %v6549 = vshrl.u32 %v6548, 7
      %v6550 = vsub.s32 %v6547, %v6549
      %v6551 = vrot.slane %v6523, %v6550
      %v6552 = vcombine.low %v6530, %v6537
      %v6553 = vcombine.low %v6544, %v6551
      %v6555 = vunpack.c.l.s4 1966171168
      %v6556 = vunpack.c.0.s8 %v6555
      %v6557 = vlaneseq
      %v6558 = vshrl.u32 %v6557, 7
      %v6559 = vsub.s32 %v6556, %v6558
      %v6560 = vrot.slane %v6552, %v6559
      %v6562 = vunpack.c.l.s4 1966171168
      %v6563 = vunpack.c.0.s8 %v6562
      %v6564 = vlaneseq
      %v6565 = vshrl.u32 %v6564, 7
      %v6566 = vsub.s32 %v6563, %v6565
      %v6567 = vrot.slane %v6553, %v6566
      %v6568 = vcombine.low %v6560, %v6567
      %v6569 = vcombine.low %v5021, %v5025
      %v6570 = vcombine.low %v5029, %v5033
      %v6571 = vcombine.low %v5037, %v5041
      %v6572 = vcombine.low %v5045, %v5049
      %v6574 = vunpack.c.l.s4 1966171168
      %v6575 = vunpack.c.0.s8 %v6574
      %v6576 = vlaneseq
      %v6577 = vshrl.u32 %v6576, 7
      %v6578 = vsub.s32 %v6575, %v6577
      %v6579 = vrot.slane %v6569, %v6578
      %v6581 = vunpack.c.l.s4 1966171168
      %v6582 = vunpack.c.0.s8 %v6581
      %v6583 = vlaneseq
      %v6584 = vshrl.u32 %v6583, 7
      %v6585 = vsub.s32 %v6582, %v6584
      %v6586 = vrot.slane %v6570, %v6585
      %v6588 = vunpack.c.l.s4 1966171168
      %v6589 = vunpack.c.0.s8 %v6588
      %v6590 = vlaneseq
      %v6591 = vshrl.u32 %v6590, 7
      %v6592 = vsub.s32 %v6589, %v6591
      %v6593 = vrot.slane %v6571, %v6592
      %v6595 = vunpack.c.l.s4 1966171168
      %v6596 = vunpack.c.0.s8 %v6595
      %v6597 = vlaneseq
      %v6598 = vshrl.u32 %v6597, 7
      %v6599 = vsub.s32 %v6596, %v6598
      %v6600 = vrot.slane %v6572, %v6599
      %v6601 = vcombine.low %v6579, %v6586
      %v6602 = vcombine.low %v6593, %v6600
      %v6604 = vunpack.c.l.s4 1966171168
      %v6605 = vunpack.c.0.s8 %v6604
      %v6606 = vlaneseq
      %v6607 = vshrl.u32 %v6606, 7
      %v6608 = vsub.s32 %v6605, %v6607
      %v6609 = vrot.slane %v6601, %v6608
      %v6611 = vunpack.c.l.s4 1966171168
      %v6612 = vunpack.c.0.s8 %v6611
      %v6613 = vlaneseq
      %v6614 = vshrl.u32 %v6613, 7
      %v6615 = vsub.s32 %v6612, %v6614
      %v6616 = vrot.slane %v6602, %v6615
      %v6617 = vcombine.low %v6609, %v6616
      %6618 = vset.pattern.permute.xlu0 0
      %6619 = vperm.xlu0 %6618, %v5098
      %v6620 = vpop.permute.xlu0 %6619
      %6621 = vset.pattern.permute.xlu0 0
      %6622 = vperm.xlu0 %6621, %v5147
      %v6623 = vpop.permute.xlu0 %6622
      %6624 = vset.pattern.permute.xlu0 0
      %6625 = vperm.xlu0 %6624, %v5196
      %v6626 = vpop.permute.xlu0 %6625
      %6627 = vset.pattern.permute.xlu0 0
      %6628 = vperm.xlu0 %6627, %v5245
      %v6629 = vpop.permute.xlu0 %6628
      %6630 = vset.pattern.permute.xlu0 0
      %6631 = vperm.xlu0 %6630, %v5294
      %v6632 = vpop.permute.xlu0 %6631
      %6633 = vset.pattern.permute.xlu0 0
      %6634 = vperm.xlu0 %6633, %v5343
      %v6635 = vpop.permute.xlu0 %6634
      %6636 = vset.pattern.permute.xlu0 0
      %6637 = vperm.xlu0 %6636, %v5392
      %v6638 = vpop.permute.xlu0 %6637
      %6639 = vset.pattern.permute.xlu0 0
      %6640 = vperm.xlu0 %6639, %v5441
      %v6641 = vpop.permute.xlu0 %6640
      %6642 = vset.pattern.permute.xlu0 0
      %6643 = vperm.xlu0 %6642, %v5490
      %v6644 = vpop.permute.xlu0 %6643
      %6645 = vset.pattern.permute.xlu0 0
      %6646 = vperm.xlu0 %6645, %v5539
      %v6647 = vpop.permute.xlu0 %6646
      %6648 = vset.pattern.permute.xlu0 0
      %6649 = vperm.xlu0 %6648, %v5588
      %v6650 = vpop.permute.xlu0 %6649
      %6651 = vset.pattern.permute.xlu0 0
      %6652 = vperm.xlu0 %6651, %v5637
      %v6653 = vpop.permute.xlu0 %6652
      %6654 = vset.pattern.permute.xlu0 0
      %6655 = vperm.xlu0 %6654, %v5686
      %v6656 = vpop.permute.xlu0 %6655
      %6657 = vset.pattern.permute.xlu0 0
      %6658 = vperm.xlu0 %6657, %v5735
      %v6659 = vpop.permute.xlu0 %6658
      %6660 = vset.pattern.permute.xlu0 0
      %6661 = vperm.xlu0 %6660, %v5784
      %v6662 = vpop.permute.xlu0 %6661
      %6663 = vset.pattern.permute.xlu0 0
      %6664 = vperm.xlu0 %6663, %v5833
      %v6665 = vpop.permute.xlu0 %6664
      %6666 = vset.pattern.permute.xlu0 0
      %6667 = vperm.xlu0 %6666, %v5882
      %v6668 = vpop.permute.xlu0 %6667
      %6669 = vset.pattern.permute.xlu0 0
      %6670 = vperm.xlu0 %6669, %v5931
      %v6671 = vpop.permute.xlu0 %6670
      %6672 = vset.pattern.permute.xlu0 0
      %6673 = vperm.xlu0 %6672, %v5980
      %v6674 = vpop.permute.xlu0 %6673
      %6675 = vset.pattern.permute.xlu0 0
      %6676 = vperm.xlu0 %6675, %v6029
      %v6677 = vpop.permute.xlu0 %6676
      %6678 = vset.pattern.permute.xlu0 0
      %6679 = vperm.xlu0 %6678, %v6078
      %v6680 = vpop.permute.xlu0 %6679
      %6681 = vset.pattern.permute.xlu0 0
      %6682 = vperm.xlu0 %6681, %v6127
      %v6683 = vpop.permute.xlu0 %6682
      %6684 = vset.pattern.permute.xlu0 0
      %6685 = vperm.xlu0 %6684, %v6176
      %v6686 = vpop.permute.xlu0 %6685
      %6687 = vset.pattern.permute.xlu0 0
      %6688 = vperm.xlu0 %6687, %v6225
      %v6689 = vpop.permute.xlu0 %6688
      %6690 = vset.pattern.permute.xlu0 0
      %6691 = vperm.xlu0 %6690, %v6274
      %v6692 = vpop.permute.xlu0 %6691
      %6693 = vset.pattern.permute.xlu0 0
      %6694 = vperm.xlu0 %6693, %v6323
      %v6695 = vpop.permute.xlu0 %6694
      %6696 = vset.pattern.permute.xlu0 0
      %6697 = vperm.xlu0 %6696, %v6372
      %v6698 = vpop.permute.xlu0 %6697
      %6699 = vset.pattern.permute.xlu0 0
      %6700 = vperm.xlu0 %6699, %v6421
      %v6701 = vpop.permute.xlu0 %6700
      %6702 = vset.pattern.permute.xlu0 0
      %6703 = vperm.xlu0 %6702, %v6470
      %v6704 = vpop.permute.xlu0 %6703
      %6705 = vset.pattern.permute.xlu0 0
      %6706 = vperm.xlu0 %6705, %v6519
      %v6707 = vpop.permute.xlu0 %6706
      %6708 = vset.pattern.permute.xlu0 0
      %6709 = vperm.xlu0 %6708, %v6568
      %v6710 = vpop.permute.xlu0 %6709
      %6711 = vset.pattern.permute.xlu0 0
      %6712 = vperm.xlu0 %6711, %v6617
      %v6713 = vpop.permute.xlu0 %6712
      %v6714 = vlaneseq
      %v6715 = vand.u32 %v6714, 127
      %v6716 = vlaneseq
      %v6717 = vshrl.u32 %v6716, 7
      %v6718 = vsub.s32 %v6715, %v6717
      %v6719 = vrot.slane %v6620, %v6718
      %v6720 = vadd.s32 %v6715, 4294967288
      %v6721 = vlaneseq
      %v6722 = vshrl.u32 %v6721, 7
      %v6723 = vsub.s32 %v6720, %v6722
      %v6724 = vrot.slane %v6623, %v6723
      %vm6725 = vcmask 130112
      %v6726 = vsel %vm6725, %v6724, %v6719
      %v6727 = vadd.s32 %v6715, 4294967280
      %v6728 = vlaneseq
      %v6729 = vshrl.u32 %v6728, 7
      %v6730 = vsub.s32 %v6727, %v6729
      %v6731 = vrot.slane %v6626, %v6730
      %vm6732 = vcmask 195712
      %v6733 = vsel %vm6732, %v6731, %v6726
      %v6734 = vadd.s32 %v6715, 4294967272
      %v6735 = vlaneseq
      %v6736 = vshrl.u32 %v6735, 7
      %v6737 = vsub.s32 %v6734, %v6736
      %v6738 = vrot.slane %v6629, %v6737
      %vm6739 = vcmask 261312
      %v6740 = vsel %vm6739, %v6738, %v6733
      %v6741 = vadd.s32 %v6715, 4294967264
      %v6742 = vlaneseq
      %v6743 = vshrl.u32 %v6742, 7
      %v6744 = vsub.s32 %v6741, %v6743
      %v6745 = vrot.slane %v6632, %v6744
      %vm6746 = vcmask 326912
      %v6747 = vsel %vm6746, %v6745, %v6740
      %v6748 = vadd.s32 %v6715, 4294967256
      %v6749 = vlaneseq
      %v6750 = vshrl.u32 %v6749, 7
      %v6751 = vsub.s32 %v6748, %v6750
      %v6752 = vrot.slane %v6635, %v6751
      %vm6753 = vcmask 392512
      %v6754 = vsel %vm6753, %v6752, %v6747
      %v6755 = vadd.s32 %v6715, 4294967248
      %v6756 = vlaneseq
      %v6757 = vshrl.u32 %v6756, 7
      %v6758 = vsub.s32 %v6755, %v6757
      %v6759 = vrot.slane %v6638, %v6758
      %vm6760 = vcmask 458112
      %v6761 = vsel %vm6760, %v6759, %v6754
      %v6762 = vadd.s32 %v6715, 4294967240
      %v6763 = vlaneseq
      %v6764 = vshrl.u32 %v6763, 7
      %v6765 = vsub.s32 %v6762, %v6764
      %v6766 = vrot.slane %v6641, %v6765
      %vm6767 = vcmask 523712
      %v6768 = vsel %vm6767, %v6766, %v6761
      %v6769 = vadd.s32 %v6715, 4294967232
      %v6770 = vlaneseq
      %v6771 = vshrl.u32 %v6770, 7
      %v6772 = vsub.s32 %v6769, %v6771
      %v6773 = vrot.slane %v6644, %v6772
      %vm6774 = vcmask 589312
      %v6775 = vsel %vm6774, %v6773, %v6768
      %v6776 = vadd.s32 %v6715, 4294967224
      %v6777 = vlaneseq
      %v6778 = vshrl.u32 %v6777, 7
      %v6779 = vsub.s32 %v6776, %v6778
      %v6780 = vrot.slane %v6647, %v6779
      %vm6781 = vcmask 654912
      %v6782 = vsel %vm6781, %v6780, %v6775
      %v6783 = vadd.s32 %v6715, 4294967216
      %v6784 = vlaneseq
      %v6785 = vshrl.u32 %v6784, 7
      %v6786 = vsub.s32 %v6783, %v6785
      %v6787 = vrot.slane %v6650, %v6786
      %vm6788 = vcmask 720512
      %v6789 = vsel %vm6788, %v6787, %v6782
      %v6790 = vadd.s32 %v6715, 4294967208
      %v6791 = vlaneseq
      %v6792 = vshrl.u32 %v6791, 7
      %v6793 = vsub.s32 %v6790, %v6792
      %v6794 = vrot.slane %v6653, %v6793
      %vm6795 = vcmask 786112
      %v6796 = vsel %vm6795, %v6794, %v6789
      %v6797 = vadd.s32 %v6715, 4294967200
      %v6798 = vlaneseq
      %v6799 = vshrl.u32 %v6798, 7
      %v6800 = vsub.s32 %v6797, %v6799
      %v6801 = vrot.slane %v6656, %v6800
      %vm6802 = vcmask 851712
      %v6803 = vsel %vm6802, %v6801, %v6796
      %v6804 = vadd.s32 %v6715, 4294967192
      %v6805 = vlaneseq
      %v6806 = vshrl.u32 %v6805, 7
      %v6807 = vsub.s32 %v6804, %v6806
      %v6808 = vrot.slane %v6659, %v6807
      %vm6809 = vcmask 917312
      %v6810 = vsel %vm6809, %v6808, %v6803
      %v6811 = vadd.s32 %v6715, 4294967184
      %v6812 = vlaneseq
      %v6813 = vshrl.u32 %v6812, 7
      %v6814 = vsub.s32 %v6811, %v6813
      %v6815 = vrot.slane %v6662, %v6814
      %vm6816 = vcmask 982912
      %v6817 = vsel %vm6816, %v6815, %v6810
      %v6818 = vadd.s32 %v6715, 4294967176
      %v6819 = vlaneseq
      %v6820 = vshrl.u32 %v6819, 7
      %v6821 = vsub.s32 %v6818, %v6820
      %v6822 = vrot.slane %v6665, %v6821
      %vm6823 = vcmask 1048512
      %v6824 = vsel %vm6823, %v6822, %v6817
      %v6825 = vlaneseq
      %v6826 = vshrl.u32 %v6825, 7
      %v6827 = vsub.s32 %v6715, %v6826
      %v6828 = vrot.slane %v6668, %v6827
      %v6829 = vlaneseq
      %v6830 = vshrl.u32 %v6829, 7
      %v6831 = vsub.s32 %v6720, %v6830
      %v6832 = vrot.slane %v6671, %v6831
      %v6833 = vsel %vm6725, %v6832, %v6828
      %v6834 = vlaneseq
      %v6835 = vshrl.u32 %v6834, 7
      %v6836 = vsub.s32 %v6727, %v6835
      %v6837 = vrot.slane %v6674, %v6836
      %v6838 = vsel %vm6732, %v6837, %v6833
      %v6839 = vlaneseq
      %v6840 = vshrl.u32 %v6839, 7
      %v6841 = vsub.s32 %v6734, %v6840
      %v6842 = vrot.slane %v6677, %v6841
      %v6843 = vsel %vm6739, %v6842, %v6838
      %v6844 = vlaneseq
      %v6845 = vshrl.u32 %v6844, 7
      %v6846 = vsub.s32 %v6741, %v6845
      %v6847 = vrot.slane %v6680, %v6846
      %v6848 = vsel %vm6746, %v6847, %v6843
      %v6849 = vlaneseq
      %v6850 = vshrl.u32 %v6849, 7
      %v6851 = vsub.s32 %v6748, %v6850
      %v6852 = vrot.slane %v6683, %v6851
      %v6853 = vsel %vm6753, %v6852, %v6848
      %v6854 = vlaneseq
      %v6855 = vshrl.u32 %v6854, 7
      %v6856 = vsub.s32 %v6755, %v6855
      %v6857 = vrot.slane %v6686, %v6856
      %v6858 = vsel %vm6760, %v6857, %v6853
      %v6859 = vlaneseq
      %v6860 = vshrl.u32 %v6859, 7
      %v6861 = vsub.s32 %v6762, %v6860
      %v6862 = vrot.slane %v6689, %v6861
      %v6863 = vsel %vm6767, %v6862, %v6858
      %v6864 = vlaneseq
      %v6865 = vshrl.u32 %v6864, 7
      %v6866 = vsub.s32 %v6769, %v6865
      %v6867 = vrot.slane %v6692, %v6866
      %v6868 = vsel %vm6774, %v6867, %v6863
      %v6869 = vlaneseq
      %v6870 = vshrl.u32 %v6869, 7
      %v6871 = vsub.s32 %v6776, %v6870
      %v6872 = vrot.slane %v6695, %v6871
      %v6873 = vsel %vm6781, %v6872, %v6868
      %v6874 = vlaneseq
      %v6875 = vshrl.u32 %v6874, 7
      %v6876 = vsub.s32 %v6783, %v6875
      %v6877 = vrot.slane %v6698, %v6876
      %v6878 = vsel %vm6788, %v6877, %v6873
      %v6879 = vlaneseq
      %v6880 = vshrl.u32 %v6879, 7
      %v6881 = vsub.s32 %v6790, %v6880
      %v6882 = vrot.slane %v6701, %v6881
      %v6883 = vsel %vm6795, %v6882, %v6878
      %v6884 = vlaneseq
      %v6885 = vshrl.u32 %v6884, 7
      %v6886 = vsub.s32 %v6797, %v6885
      %v6887 = vrot.slane %v6704, %v6886
      %v6888 = vsel %vm6802, %v6887, %v6883
      %v6889 = vlaneseq
      %v6890 = vshrl.u32 %v6889, 7
      %v6891 = vsub.s32 %v6804, %v6890
      %v6892 = vrot.slane %v6707, %v6891
      %v6893 = vsel %vm6809, %v6892, %v6888
      %v6894 = vlaneseq
      %v6895 = vshrl.u32 %v6894, 7
      %v6896 = vsub.s32 %v6811, %v6895
      %v6897 = vrot.slane %v6710, %v6896
      %v6898 = vsel %vm6816, %v6897, %v6893
      %v6899 = vlaneseq
      %v6900 = vshrl.u32 %v6899, 7
      %v6901 = vsub.s32 %v6818, %v6900
      %v6902 = vrot.slane %v6713, %v6901
      %v6903 = vsel %vm6823, %v6902, %v6898
      %v6904 = vcombine.low %v6824, %v6903
      %v6906 = vunpack.c.l.s4 1966171168
      %v6907 = vunpack.c.0.s8 %v6906
      %v6908 = vlaneseq
      %v6909 = vshrl.u32 %v6908, 7
      %v6910 = vsub.s32 %v6907, %v6909
      %v6911 = vrot.slane %v6904, %v6910
      %v6913 = vunpack.c.l.s4 1966171168
      %v6914 = vunpack.c.0.s8 %v6913
      %v6915 = vlaneseq
      %v6916 = vshrl.u32 %v6915, 7
      %v6917 = vsub.s32 %v6914, %v6916
      %v6918 = vrot.slane %v6911, %v6917
      %v6920 = vlaneseq
      %vm6921 = vcmp.ge.s32.totalorder %v6920, 0
      %vm6922 = vcmp.lt.s32.totalorder %v6920, 256
      %vm6923 = vmand %vm6921, %vm6922
      %6924 = vst.msk [vmem:[%s518] sm:$0x3] %vm6923, %v6918
      %s6925 = smul.u32 2, %s28
      %p6926 = scmp.lt.s32.totalorder %s6925, 3
      %s6927 = scalar_select %p6926, %s6925, 3
      %s6928 = scalar_lea.vmem %s15, %s6927
      // Predicated region
      $region81: #{reward_net_forward.1} parent=79 // pred_check
        %p6929 = pneg %p371
      $region82: #{reward_net_forward.1} parent=79 // pred_check_branch
        %6931 = sbr.rel (%p6929) target = $region84
      $region83: #{reward_net_forward.1} parent=79 // pred_region
        %s6932 = smul.u32 2, %s28
      $region84: #{reward_net_forward.1} parent=79 // pred_fallthru
        _
    $region80: #{reward_net_forward.1} parent=5 // pred_fallthru
      _
    %p6933 = scmp.le.s32.totalorder 2, %s23
    // Predicated region
    $region85: #{reward_net_forward.1} parent=5 // pred_check
      %p6934 = pneg %p6933
    $region86: #{reward_net_forward.1} parent=5 // pred_check_branch
      %6936 = sbr.rel (%p6934) target = $region88
    $region87: #{reward_net_forward.1} parent=5 // pred_region
      %s6937 = ssub.s32 %s23, 2
      // Predicated region
      $region89: #{reward_net_forward.1} parent=87 // pred_check
        %p6938 = pneg %p377
      $region90: #{reward_net_forward.1} parent=87 // pred_check_branch
        %6940 = sbr.rel (%p6938) target = $region92
      $region91: #{reward_net_forward.1} parent=87 // pred_region
        %s6941 = smul.u32 2, %s29
        %p6942 = scmp.lt.s32.totalorder %s6941, 3
        %s6943 = scalar_select %p6942, %s6941, 3
        %s6944 = scalar_lea.vmem %s15, %s6943
      $region92: #{reward_net_forward.1} parent=87 // pred_fallthru
        _
    $region88: #{reward_net_forward.1} parent=5 // pred_fallthru
      _
  $region6: #{reward_net_forward.1} parent=0 // loop_footer
    %s27 = sadd.s32 1, %s23
  $region7: #{reward_net_forward.1} parent=0 // loop_footer_branch
    %22 = sbr.rel target = $region3
  $region8: #{reward_net_forward.1} parent=0 // loop_exit
    _

</llo_original>
